<compile_context>
chip_gen: v7x
topology: tpu7x:2x2x1
jax: 0.10.0
libtpu: 0.0.40
codegen_flags: <defaults>
</compile_context>

<pallas_src>
import functools

import jax
import jax.numpy as jnp
from jax import lax
from jax.experimental import pallas as pl
from jax.experimental.pallas import tpu as pltpu

BN_EPS = 1e-5


# ------------------------------ kernel helpers ------------------------------ #

def _conv_taps(x, w, kh, c, hout):
    """`Valid` conv along the row axis as `kh` accumulating (rows, C)@(C, F) dots.

    x: (N, c) activations (rows = positions; several batches may be stacked).
    w: (kh*c, F) with rows ordered (tap, channel), matching torch's
       (cin, kh, kw) weight flattening.  Returns (hout, F) pre-activation.
    """
    acc = jnp.dot(x[0:hout, :], w[0:c, :], preferred_element_type=jnp.float32)
    for dh in range(1, kh):
        acc = acc + jnp.dot(x[dh:dh + hout, :], w[dh * c:(dh + 1) * c, :],
                            preferred_element_type=jnp.float32)
    return acc


def _relu_bn(y, aff, j):
    """BN(ReLU(y + bias)) with conv-j constants packed in aff rows [3j, 3j+3)."""
    bias = aff[3 * j + 0:3 * j + 1, :]
    scale = aff[3 * j + 1:3 * j + 2, :]
    shift = aff[3 * j + 2:3 * j + 3, :]
    return jnp.maximum(y + bias, 0.0) * scale + shift


# ------------------------------ fused kernel -------------------------------- #

def _deepsense_kernel(x_ref, ws_ref, affs_ref, wt_ref, afft_ref,
                      wl1_ref, bl1_ref, wl2_ref, bl2_ref,
                      o_ref, topin_ref, *, B, L, S, F):
    H3 = L - 4          # per-sensor conv-chain output rows (per batch)
    R = F * H3          # flattened per-sensor feature length (torch Flatten)
    BL = B * L
    BR = B * R

    x = x_ref[...]                                     # (B*L, 3*S)

    # ---- per-sensor conv1->ReLU->BN -> conv2 -> conv3 chains ---------------
    # Batches are stacked along rows: each layer is kh dots for ALL batches.
    for s in range(S):
        w = ws_ref[s]                                  # (6 + 5F, F)
        aff = affs_ref[s]                              # (9, F)
        xs = x[:, 3 * s:3 * s + 3]                     # (B*L, 3)
        a = _relu_bn(_conv_taps(xs, w[0:6, :], 2, 3, BL - 1), aff, 0)
        a = _relu_bn(_conv_taps(a, w[6:6 + 3 * F, :], 3, F, BL - 3), aff, 1)
        a = _relu_bn(_conv_taps(a, w[6 + 3 * F:6 + 5 * F, :], 2, F, BL - 4),
                     aff, 2)                           # (B*L - 4, F)
        # torch Flatten is channel-major: top_in[b, f*H3 + r, s] = a[b*L + r, f]
        # Re-layout goes through a tiny VMEM scratch (no HBM round-trip, no
        # wrapper transpose); each piece is a (H3, 1) column copy.
        for b in range(B):
            for f in range(F):
                topin_ref[b * R + f * H3:b * R + (f + 1) * H3, s:s + 1] = (
                    a[b * L:b * L + H3, f:f + 1])

    # ---- top conv chain over the flattened (channel-major) axis ------------
    wt = wt_ref[...]                                   # (2S + 5F, F)
    afft = afft_ref[...]                               # (9, F)
    tin = topin_ref[...]                               # (B*R, S)
    K1 = 2 * S
    t = _relu_bn(_conv_taps(tin, wt[0:K1, :], 2, S, BR - 1), afft, 0)
    t = _relu_bn(_conv_taps(t, wt[K1:K1 + 3 * F, :], 3, F, BR - 3), afft, 1)
    t = _relu_bn(_conv_taps(t, wt[K1 + 3 * F:K1 + 5 * F, :], 2, F, BR - 4),
                 afft, 2)                              # (B*R - 4, F)

    # ---- flatten -> lin1 -> ReLU -> lin2 ------------------------------------
    # lin1 = F fused MACs over all batch rows at once against a zero-padded,
    # pre-laid-out weight (wl1_ref[f] is (B*R-4, 12)), then one row-reduction
    # per batch.  lin2 is a single MXU dot.
    z = t[:, 0:1] * wl1_ref[0]
    for f in range(1, F):
        z = z + t[:, f:f + 1] * wl1_ref[f]             # (B*R - 4, 12)
    rows = []
    for b in range(B):
        hi = min((b + 1) * R, BR - 4)                  # padding rows have 0 weight
        rows.append(jnp.sum(z[b * R:hi, :], axis=0, keepdims=True))   # (1, 12)
    h1 = jnp.maximum(jnp.concatenate(rows, axis=0) + bl1_ref[...], 0.0)  # (B, 12)
    o_ref[...] = (jnp.dot(h1, wl2_ref[...], preferred_element_type=jnp.float32)
                  + bl2_ref[...])


# --------------------------- parameter preparation -------------------------- #

def prepare_params(params, sensor_num, num_filter, seq_len, out_dim, batch):
    """One-time (outside jit) weight re-layout + eval-mode BN folding."""
    F, S, L, B = num_filter, sensor_num, seq_len, batch
    H3 = L - 4
    R = F * H3
    R3 = R - 4
    O1 = 12

    def conv_mat(w):
        # (Fo, Fi, kh, kw) -> (kh*kw*Fi, Fo) with rows ordered (tap, channel),
        # matching the in-kernel shifted-slice (im2col) tap ordering.
        Fo, Fi, kh, kw = w.shape
        if Fi == 1:
            return jnp.transpose(w[:, 0], (1, 2, 0)).reshape(kh * kw, Fo)
        assert kw == 1
        return jnp.transpose(w[:, :, :, 0], (2, 1, 0)).reshape(kh * Fi, Fo)

    def affine_rows(b, gamma, beta, mean, var):
        scale = gamma / jnp.sqrt(var + BN_EPS)
        shift = beta - mean * scale
        return jnp.stack([b, scale, shift], axis=0)              # (3, F)

    wts_s, aff_s = [], []
    for i in range(S):
        mats, affs = [], []
        for j in (1, 2, 3):
            w, b, gamma, beta, mean, var = params[f"s{i}_conv{j}"]
            mats.append(conv_mat(w))
            affs.append(affine_rows(b, gamma, beta, mean, var))
        wts_s.append(jnp.concatenate(mats, axis=0))              # (6 + 5F, F)
        aff_s.append(jnp.concatenate(affs, axis=0))              # (9, F)
    prep = {"wts_s": jnp.stack(wts_s, axis=0),                   # (S, 6+5F, F)
            "aff_s": jnp.stack(aff_s, axis=0)}                   # (S, 9, F)

    mats, affs = [], []
    for name in ("top_conv1", "top_conv2", "top_conv3"):
        w, b, gamma, beta, mean, var = params[name]
        mats.append(conv_mat(w))
        affs.append(affine_rows(b, gamma, beta, mean, var))
    prep["wts_top"] = jnp.concatenate(mats, axis=0)              # (2S + 5F, F)
    prep["aff_top"] = jnp.concatenate(affs, axis=0)              # (9, F)

    # lin1: torch flat index = f*R3 + r.  Re-layout to (F, B*R - 4, 12) with
    # zeros on the (invalid) batch-boundary rows so the kernel can do the
    # contraction over all stacked batch rows at once.
    w1, b1 = params["lin1"]                                      # (12, F*R3)
    w1v = jnp.transpose(w1.reshape(O1, F, R3), (1, 2, 0))        # (F, R3, 12)
    wl1 = jnp.zeros((F, B * R - 4, O1), jnp.float32)
    for b in range(B):
        wl1 = wl1.at[:, b * R:b * R + R3, :].set(w1v)
    prep["wl1"] = wl1
    prep["b_l1"] = b1.reshape(1, O1)

    w2, b2 = params["lin2"]                                      # (O, 12), (O,)
    prep["w_l2"] = jnp.transpose(w2)                             # (12, O)
    prep["b_l2"] = b2.reshape(1, out_dim)
    return prep


# --------------------------------- forward ---------------------------------- #

def deepsense_forward(x, prep, *, sensor_num, num_filter, seq_len, out_dim):
    B = x.shape[0]
    F, S, L = num_filter, sensor_num, seq_len
    H3 = L - 4
    R = F * H3

    # (B, L, 3S) -> (B*L, 3S): contiguous, layout-preserving reshape (free);
    # NO wrapper transpose and NO grid -- one fused kernel does everything.
    x_flat = x.reshape(B * L, 3 * S)

    return pl.pallas_call(
        functools.partial(_deepsense_kernel, B=B, L=L, S=S, F=F),
        out_shape=jax.ShapeDtypeStruct((B, out_dim), jnp.float32),
        scratch_shapes=[pltpu.VMEM((B * R, S), jnp.float32)],    # top-stage input
    )(x_flat, prep["wts_s"], prep["aff_s"], prep["wts_top"], prep["aff_top"],
      prep["wl1"], prep["b_l1"], prep["w_l2"], prep["b_l2"])


# ------------------------ pure-JAX reference check -------------------------- #

def _ref_conv_relu_bn(x, w, b, gamma, beta, mean, var):
    y = lax.conv_general_dilated(x, w, (1, 1), "VALID",
                                 dimension_numbers=("NCHW", "OIHW", "NCHW"))
    y = jnp.maximum(y + b[None, :, None, None], 0.0)
    scale = gamma / jnp.sqrt(var + BN_EPS)
    shift = beta - mean * scale
    return y * scale[None, :, None, None] + shift[None, :, None, None]


def deepsense_ref(x, params, sensor_num):
    B, L, _ = x.shape
    h = x.reshape(B, L, sensor_num, 3)
    hs = []
    for i in range(sensor_num):
        t = h[:, :, i, :][:, None, :, :]
        for j in (1, 2, 3):
            t = _ref_conv_relu_bn(t, *params[f"s{i}_conv{j}"])
        hs.append(t.reshape(B, -1)[:, :, None])
    h = jnp.concatenate(hs, axis=2)[:, None, :, :]
    for name in ("top_conv1", "top_conv2", "top_conv3"):
        h = _ref_conv_relu_bn(h, *params[name])
    flat = h.reshape(B, -1)
    w1, b1 = params["lin1"]
    w2, b2 = params["lin2"]
    h1 = jnp.maximum(flat @ w1.T + b1, 0.0)
    return h1 @ w2.T + b2


# ------------------------------ parameters ----------------------------------- #

def init_params(key, sensor_num, num_filter, seq_len, out_dim):
    def conv_bn(k, cout, cin, kh, kw):
        ks = jax.random.split(k, 6)
        w = 0.1 * jax.random.normal(ks[0], (cout, cin, kh, kw), jnp.float32)
        b = 0.05 * jax.random.normal(ks[1], (cout,), jnp.float32)
        gamma = 1.0 + 0.1 * jax.random.normal(ks[2], (cout,), jnp.float32)
        beta = 0.1 * jax.random.normal(ks[3], (cout,), jnp.float32)
        mean = 0.05 * jax.random.normal(ks[4], (cout,), jnp.float32)
        var = 1.0 + 0.1 * jnp.abs(jax.random.normal(ks[5], (cout,), jnp.float32))
        return (w, b, gamma, beta, mean, var)

    params = {}
    kidx = 0
    for i in range(sensor_num):
        params[f"s{i}_conv1"] = conv_bn(jax.random.fold_in(key, kidx), num_filter, 1, 2, 3); kidx += 1
        params[f"s{i}_conv2"] = conv_bn(jax.random.fold_in(key, kidx), num_filter, num_filter, 3, 1); kidx += 1
        params[f"s{i}_conv3"] = conv_bn(jax.random.fold_in(key, kidx), num_filter, num_filter, 2, 1); kidx += 1
    params["top_conv1"] = conv_bn(jax.random.fold_in(key, kidx), num_filter, 1, 2, sensor_num); kidx += 1
    params["top_conv2"] = conv_bn(jax.random.fold_in(key, kidx), num_filter, num_filter, 3, 1); kidx += 1
    params["top_conv3"] = conv_bn(jax.random.fold_in(key, kidx), num_filter, num_filter, 2, 1); kidx += 1

    flat_num = num_filter * (num_filter * (seq_len - 4) - 4)     # == cfg.flat_num
    k1, k2, k3, k4 = jax.random.split(jax.random.fold_in(key, kidx), 4)
    params["lin1"] = (0.05 * jax.random.normal(k1, (12, flat_num), jnp.float32),
                      0.05 * jax.random.normal(k2, (12,), jnp.float32))
    params["lin2"] = (0.1 * jax.random.normal(k3, (out_dim, 12), jnp.float32),
                      0.05 * jax.random.normal(k4, (out_dim,), jnp.float32))
    return params


# ---------------------------------- main ------------------------------------- #

if __name__ == "__main__":
    B, L = 2, 16                 # batch, sequence length (conv "H" axis)
    sensor_num = 2               # input = 3 * sensor_num = 6
    num_filter = 8
    out_dim = 6

    key = jax.random.PRNGKey(0)
    x = jax.random.normal(jax.random.fold_in(key, 10_000),
                          (B, L, 3 * sensor_num), jnp.float32)
    params = init_params(key, sensor_num, num_filter, L, out_dim)

    # One-time parameter re-layout / BN folding, hoisted outside the jitted forward.
    prep = prepare_params(params, sensor_num, num_filter, L, out_dim, B)

    fwd = jax.jit(functools.partial(deepsense_forward, sensor_num=sensor_num,
                                    num_filter=num_filter, seq_len=L,
                                    out_dim=out_dim))
    out = jax.block_until_ready(fwd(x, prep))

    ref = deepsense_ref(x, params, sensor_num)
    assert out.shape == (B, out_dim), out.shape
    assert jnp.allclose(out, ref, atol=1e-3, rtol=1e-3), (out, ref)
    print("KERNEL_OK")
</pallas_src>

<mosaic_0001>
module attributes {stable_mosaic.version = 11 : i64} {
  func.func @_deepsense_kernel(%arg0: memref<32x6xf32, #tpu.memory_space<vmem>>, %arg1: memref<2x46x8xf32, #tpu.memory_space<vmem>>, %arg2: memref<2x9x8xf32, #tpu.memory_space<vmem>>, %arg3: memref<44x8xf32, #tpu.memory_space<vmem>>, %arg4: memref<9x8xf32, #tpu.memory_space<vmem>>, %arg5: memref<8x188x12xf32, #tpu.memory_space<vmem>>, %arg6: memref<1x12xf32, #tpu.memory_space<vmem>>, %arg7: memref<12x6xf32, #tpu.memory_space<vmem>>, %arg8: memref<1x6xf32, #tpu.memory_space<vmem>>, %arg9: memref<2x6xf32, #tpu.memory_space<vmem>>, %arg10: memref<192x2xf32, #tpu.memory_space<vmem>>) attributes {dimension_semantics = [], scalar_prefetch = 0 : i64, scratch_operands = 1 : i64, tpu.core_type = #tpu.core_type<tc>} {
    %c0 = arith.constant 0 : index
    %c0_0 = arith.constant 0 : index
    %0 = vector.load %arg0[%c0, %c0_0] : memref<32x6xf32, #tpu.memory_space<vmem>>, vector<32x6xf32>
    %c0_1 = arith.constant 0 : index
    %c0_2 = arith.constant 0 : index
    %c0_3 = arith.constant 0 : index
    %1 = vector.load %arg1[%c0_1, %c0_2, %c0_3] : memref<2x46x8xf32, #tpu.memory_space<vmem>>, vector<1x46x8xf32>
    %2 = vector.shape_cast %1 : vector<1x46x8xf32> to vector<46x8xf32>
    %c0_4 = arith.constant 0 : index
    %c0_5 = arith.constant 0 : index
    %c0_6 = arith.constant 0 : index
    %3 = vector.load %arg2[%c0_4, %c0_5, %c0_6] : memref<2x9x8xf32, #tpu.memory_space<vmem>>, vector<1x9x8xf32>
    %4 = vector.shape_cast %3 : vector<1x9x8xf32> to vector<9x8xf32>
    %5 = vector.extract_strided_slice %0 {offsets = [0, 0], sizes = [32, 3], strides = [1, 1]} : vector<32x6xf32> to vector<32x3xf32>
    %6 = vector.extract_strided_slice %2 {offsets = [0, 0], sizes = [6, 8], strides = [1, 1]} : vector<46x8xf32> to vector<6x8xf32>
    %7 = vector.extract_strided_slice %5 {offsets = [0, 0], sizes = [31, 3], strides = [1, 1]} : vector<32x3xf32> to vector<31x3xf32>
    %8 = vector.extract_strided_slice %6 {offsets = [0, 0], sizes = [3, 8], strides = [1, 1]} : vector<6x8xf32> to vector<3x8xf32>
    %cst = arith.constant dense<0.000000e+00> : vector<31x8xf32>
    %9 = tpu.matmul %7, %8, %cst {dimension_numbers = #tpu.dot_dimension_numbers<[1], [0], [0], [1], [0, 0, 1, 1], [], []>} : vector<31x3xf32>, vector<3x8xf32>, vector<31x8xf32> -> vector<31x8xf32>
    %10 = vector.extract_strided_slice %5 {offsets = [1, 0], sizes = [31, 3], strides = [1, 1]} : vector<32x3xf32> to vector<31x3xf32>
    %11 = vector.extract_strided_slice %6 {offsets = [3, 0], sizes = [3, 8], strides = [1, 1]} : vector<6x8xf32> to vector<3x8xf32>
    %cst_7 = arith.constant dense<0.000000e+00> : vector<31x8xf32>
    %12 = tpu.matmul %10, %11, %cst_7 {dimension_numbers = #tpu.dot_dimension_numbers<[1], [0], [0], [1], [0, 0, 1, 1], [], []>} : vector<31x3xf32>, vector<3x8xf32>, vector<31x8xf32> -> vector<31x8xf32>
    %13 = arith.addf %9, %12 : vector<31x8xf32>
    %14 = vector.extract_strided_slice %4 {offsets = [0, 0], sizes = [1, 8], strides = [1, 1]} : vector<9x8xf32> to vector<1x8xf32>
    %15 = vector.extract_strided_slice %4 {offsets = [1, 0], sizes = [1, 8], strides = [1, 1]} : vector<9x8xf32> to vector<1x8xf32>
    %16 = vector.extract_strided_slice %4 {offsets = [2, 0], sizes = [1, 8], strides = [1, 1]} : vector<9x8xf32> to vector<1x8xf32>
    %17 = vector.broadcast %14 : vector<1x8xf32> to vector<31x8xf32>
    %18 = arith.addf %13, %17 : vector<31x8xf32>
    %cst_8 = arith.constant 0.000000e+00 : f32
    %19 = vector.broadcast %cst_8 : f32 to vector<31x8xf32>
    %20 = arith.maximumf %18, %19 : vector<31x8xf32>
    %21 = vector.broadcast %15 : vector<1x8xf32> to vector<31x8xf32>
    %22 = arith.mulf %20, %21 : vector<31x8xf32>
    %23 = vector.broadcast %16 : vector<1x8xf32> to vector<31x8xf32>
    %24 = arith.addf %22, %23 : vector<31x8xf32>
    %25 = vector.extract_strided_slice %2 {offsets = [6, 0], sizes = [24, 8], strides = [1, 1]} : vector<46x8xf32> to vector<24x8xf32>
    %26 = vector.extract_strided_slice %24 {offsets = [0, 0], sizes = [29, 8], strides = [1, 1]} : vector<31x8xf32> to vector<29x8xf32>
    %27 = vector.extract_strided_slice %25 {offsets = [0, 0], sizes = [8, 8], strides = [1, 1]} : vector<24x8xf32> to vector<8x8xf32>
    %cst_9 = arith.constant dense<0.000000e+00> : vector<29x8xf32>
    %28 = tpu.matmul %26, %27, %cst_9 {dimension_numbers = #tpu.dot_dimension_numbers<[1], [0], [0], [1], [0, 0, 1, 1], [], []>} : vector<29x8xf32>, vector<8x8xf32>, vector<29x8xf32> -> vector<29x8xf32>
    %29 = vector.extract_strided_slice %24 {offsets = [1, 0], sizes = [29, 8], strides = [1, 1]} : vector<31x8xf32> to vector<29x8xf32>
    %30 = vector.extract_strided_slice %25 {offsets = [8, 0], sizes = [8, 8], strides = [1, 1]} : vector<24x8xf32> to vector<8x8xf32>
    %cst_10 = arith.constant dense<0.000000e+00> : vector<29x8xf32>
    %31 = tpu.matmul %29, %30, %cst_10 {dimension_numbers = #tpu.dot_dimension_numbers<[1], [0], [0], [1], [0, 0, 1, 1], [], []>} : vector<29x8xf32>, vector<8x8xf32>, vector<29x8xf32> -> vector<29x8xf32>
    %32 = arith.addf %28, %31 : vector<29x8xf32>
    %33 = vector.extract_strided_slice %24 {offsets = [2, 0], sizes = [29, 8], strides = [1, 1]} : vector<31x8xf32> to vector<29x8xf32>
    %34 = vector.extract_strided_slice %25 {offsets = [16, 0], sizes = [8, 8], strides = [1, 1]} : vector<24x8xf32> to vector<8x8xf32>
    %cst_11 = arith.constant dense<0.000000e+00> : vector<29x8xf32>
    %35 = tpu.matmul %33, %34, %cst_11 {dimension_numbers = #tpu.dot_dimension_numbers<[1], [0], [0], [1], [0, 0, 1, 1], [], []>} : vector<29x8xf32>, vector<8x8xf32>, vector<29x8xf32> -> vector<29x8xf32>
    %36 = arith.addf %32, %35 : vector<29x8xf32>
    %37 = vector.extract_strided_slice %4 {offsets = [3, 0], sizes = [1, 8], strides = [1, 1]} : vector<9x8xf32> to vector<1x8xf32>
    %38 = vector.extract_strided_slice %4 {offsets = [4, 0], sizes = [1, 8], strides = [1, 1]} : vector<9x8xf32> to vector<1x8xf32>
    %39 = vector.extract_strided_slice %4 {offsets = [5, 0], sizes = [1, 8], strides = [1, 1]} : vector<9x8xf32> to vector<1x8xf32>
    %40 = vector.broadcast %37 : vector<1x8xf32> to vector<29x8xf32>
    %41 = arith.addf %36, %40 : vector<29x8xf32>
    %cst_12 = arith.constant 0.000000e+00 : f32
    %42 = vector.broadcast %cst_12 : f32 to vector<29x8xf32>
    %43 = arith.maximumf %41, %42 : vector<29x8xf32>
    %44 = vector.broadcast %38 : vector<1x8xf32> to vector<29x8xf32>
    %45 = arith.mulf %43, %44 : vector<29x8xf32>
    %46 = vector.broadcast %39 : vector<1x8xf32> to vector<29x8xf32>
    %47 = arith.addf %45, %46 : vector<29x8xf32>
    %48 = vector.extract_strided_slice %2 {offsets = [30, 0], sizes = [16, 8], strides = [1, 1]} : vector<46x8xf32> to vector<16x8xf32>
    %49 = vector.extract_strided_slice %47 {offsets = [0, 0], sizes = [28, 8], strides = [1, 1]} : vector<29x8xf32> to vector<28x8xf32>
    %50 = vector.extract_strided_slice %48 {offsets = [0, 0], sizes = [8, 8], strides = [1, 1]} : vector<16x8xf32> to vector<8x8xf32>
    %cst_13 = arith.constant dense<0.000000e+00> : vector<28x8xf32>
    %51 = tpu.matmul %49, %50, %cst_13 {dimension_numbers = #tpu.dot_dimension_numbers<[1], [0], [0], [1], [0, 0, 1, 1], [], []>} : vector<28x8xf32>, vector<8x8xf32>, vector<28x8xf32> -> vector<28x8xf32>
    %52 = vector.extract_strided_slice %47 {offsets = [1, 0], sizes = [28, 8], strides = [1, 1]} : vector<29x8xf32> to vector<28x8xf32>
    %53 = vector.extract_strided_slice %48 {offsets = [8, 0], sizes = [8, 8], strides = [1, 1]} : vector<16x8xf32> to vector<8x8xf32>
    %cst_14 = arith.constant dense<0.000000e+00> : vector<28x8xf32>
    %54 = tpu.matmul %52, %53, %cst_14 {dimension_numbers = #tpu.dot_dimension_numbers<[1], [0], [0], [1], [0, 0, 1, 1], [], []>} : vector<28x8xf32>, vector<8x8xf32>, vector<28x8xf32> -> vector<28x8xf32>
    %55 = arith.addf %51, %54 : vector<28x8xf32>
    %56 = vector.extract_strided_slice %4 {offsets = [6, 0], sizes = [1, 8], strides = [1, 1]} : vector<9x8xf32> to vector<1x8xf32>
    %57 = vector.extract_strided_slice %4 {offsets = [7, 0], sizes = [1, 8], strides = [1, 1]} : vector<9x8xf32> to vector<1x8xf32>
    %58 = vector.extract_strided_slice %4 {offsets = [8, 0], sizes = [1, 8], strides = [1, 1]} : vector<9x8xf32> to vector<1x8xf32>
    %59 = vector.broadcast %56 : vector<1x8xf32> to vector<28x8xf32>
    %60 = arith.addf %55, %59 : vector<28x8xf32>
    %cst_15 = arith.constant 0.000000e+00 : f32
    %61 = vector.broadcast %cst_15 : f32 to vector<28x8xf32>
    %62 = arith.maximumf %60, %61 : vector<28x8xf32>
    %63 = vector.broadcast %57 : vector<1x8xf32> to vector<28x8xf32>
    %64 = arith.mulf %62, %63 : vector<28x8xf32>
    %65 = vector.broadcast %58 : vector<1x8xf32> to vector<28x8xf32>
    %66 = arith.addf %64, %65 : vector<28x8xf32>
    %67 = vector.extract_strided_slice %66 {offsets = [0, 0], sizes = [12, 1], strides = [1, 1]} : vector<28x8xf32> to vector<12x1xf32>
    %c0_16 = arith.constant 0 : index
    %c0_17 = arith.constant 0 : index
    %68 = vector.load %arg10[%c0_16, %c0_17] : memref<192x2xf32, #tpu.memory_space<vmem>>, vector<12x1xf32>
    tpu.vector_store %arg10[%c0_16, %c0_17], %67 {strides = array<i32>} : memref<192x2xf32, #tpu.memory_space<vmem>>, vector<12x1xf32>,
    %69 = vector.extract_strided_slice %66 {offsets = [0, 1], sizes = [12, 1], strides = [1, 1]} : vector<28x8xf32> to vector<12x1xf32>
    %c12 = arith.constant 12 : index
    %c0_18 = arith.constant 0 : index
    %70 = vector.load %arg10[%c12, %c0_18] : memref<192x2xf32, #tpu.memory_space<vmem>>, vector<12x1xf32>
    tpu.vector_store %arg10[%c12, %c0_18], %69 {strides = array<i32>} : memref<192x2xf32, #tpu.memory_space<vmem>>, vector<12x1xf32>,
    %71 = vector.extract_strided_slice %66 {offsets = [0, 2], sizes = [12, 1], strides = [1, 1]} : vector<28x8xf32> to vector<12x1xf32>
    %c24 = arith.constant 24 : index
    %c0_19 = arith.constant 0 : index
    %72 = vector.load %arg10[%c24, %c0_19] : memref<192x2xf32, #tpu.memory_space<vmem>>, vector<12x1xf32>
    tpu.vector_store %arg10[%c24, %c0_19], %71 {strides = array<i32>} : memref<192x2xf32, #tpu.memory_space<vmem>>, vector<12x1xf32>,
    %73 = vector.extract_strided_slice %66 {offsets = [0, 3], sizes = [12, 1], strides = [1, 1]} : vector<28x8xf32> to vector<12x1xf32>
    %c36 = arith.constant 36 : index
    %c0_20 = arith.constant 0 : index
    %74 = vector.load %arg10[%c36, %c0_20] : memref<192x2xf32, #tpu.memory_space<vmem>>, vector<12x1xf32>
    tpu.vector_store %arg10[%c36, %c0_20], %73 {strides = array<i32>} : memref<192x2xf32, #tpu.memory_space<vmem>>, vector<12x1xf32>,
    %75 = vector.extract_strided_slice %66 {offsets = [0, 4], sizes = [12, 1], strides = [1, 1]} : vector<28x8xf32> to vector<12x1xf32>
    %c48 = arith.constant 48 : index
    %c0_21 = arith.constant 0 : index
    %76 = vector.load %arg10[%c48, %c0_21] : memref<192x2xf32, #tpu.memory_space<vmem>>, vector<12x1xf32>
    tpu.vector_store %arg10[%c48, %c0_21], %75 {strides = array<i32>} : memref<192x2xf32, #tpu.memory_space<vmem>>, vector<12x1xf32>,
    %77 = vector.extract_strided_slice %66 {offsets = [0, 5], sizes = [12, 1], strides = [1, 1]} : vector<28x8xf32> to vector<12x1xf32>
    %c60 = arith.constant 60 : index
    %c0_22 = arith.constant 0 : index
    %78 = vector.load %arg10[%c60, %c0_22] : memref<192x2xf32, #tpu.memory_space<vmem>>, vector<12x1xf32>
    tpu.vector_store %arg10[%c60, %c0_22], %77 {strides = array<i32>} : memref<192x2xf32, #tpu.memory_space<vmem>>, vector<12x1xf32>,
    %79 = vector.extract_strided_slice %66 {offsets = [0, 6], sizes = [12, 1], strides = [1, 1]} : vector<28x8xf32> to vector<12x1xf32>
    %c72 = arith.constant 72 : index
    %c0_23 = arith.constant 0 : index
    %80 = vector.load %arg10[%c72, %c0_23] : memref<192x2xf32, #tpu.memory_space<vmem>>, vector<12x1xf32>
    tpu.vector_store %arg10[%c72, %c0_23], %79 {strides = array<i32>} : memref<192x2xf32, #tpu.memory_space<vmem>>, vector<12x1xf32>,
    %81 = vector.extract_strided_slice %66 {offsets = [0, 7], sizes = [12, 1], strides = [1, 1]} : vector<28x8xf32> to vector<12x1xf32>
    %c84 = arith.constant 84 : index
    %c0_24 = arith.constant 0 : index
    %82 = vector.load %arg10[%c84, %c0_24] : memref<192x2xf32, #tpu.memory_space<vmem>>, vector<12x1xf32>
    tpu.vector_store %arg10[%c84, %c0_24], %81 {strides = array<i32>} : memref<192x2xf32, #tpu.memory_space<vmem>>, vector<12x1xf32>,
    %83 = vector.extract_strided_slice %66 {offsets = [16, 0], sizes = [12, 1], strides = [1, 1]} : vector<28x8xf32> to vector<12x1xf32>
    %c96 = arith.constant 96 : index
    %c0_25 = arith.constant 0 : index
    %84 = vector.load %arg10[%c96, %c0_25] : memref<192x2xf32, #tpu.memory_space<vmem>>, vector<12x1xf32>
    tpu.vector_store %arg10[%c96, %c0_25], %83 {strides = array<i32>} : memref<192x2xf32, #tpu.memory_space<vmem>>, vector<12x1xf32>,
    %85 = vector.extract_strided_slice %66 {offsets = [16, 1], sizes = [12, 1], strides = [1, 1]} : vector<28x8xf32> to vector<12x1xf32>
    %c108 = arith.constant 108 : index
    %c0_26 = arith.constant 0 : index
    %86 = vector.load %arg10[%c108, %c0_26] : memref<192x2xf32, #tpu.memory_space<vmem>>, vector<12x1xf32>
    tpu.vector_store %arg10[%c108, %c0_26], %85 {strides = array<i32>} : memref<192x2xf32, #tpu.memory_space<vmem>>, vector<12x1xf32>,
    %87 = vector.extract_strided_slice %66 {offsets = [16, 2], sizes = [12, 1], strides = [1, 1]} : vector<28x8xf32> to vector<12x1xf32>
    %c120 = arith.constant 120 : index
    %c0_27 = arith.constant 0 : index
    %88 = vector.load %arg10[%c120, %c0_27] : memref<192x2xf32, #tpu.memory_space<vmem>>, vector<12x1xf32>
    tpu.vector_store %arg10[%c120, %c0_27], %87 {strides = array<i32>} : memref<192x2xf32, #tpu.memory_space<vmem>>, vector<12x1xf32>,
    %89 = vector.extract_strided_slice %66 {offsets = [16, 3], sizes = [12, 1], strides = [1, 1]} : vector<28x8xf32> to vector<12x1xf32>
    %c132 = arith.constant 132 : index
    %c0_28 = arith.constant 0 : index
    %90 = vector.load %arg10[%c132, %c0_28] : memref<192x2xf32, #tpu.memory_space<vmem>>, vector<12x1xf32>
    tpu.vector_store %arg10[%c132, %c0_28], %89 {strides = array<i32>} : memref<192x2xf32, #tpu.memory_space<vmem>>, vector<12x1xf32>,
    %91 = vector.extract_strided_slice %66 {offsets = [16, 4], sizes = [12, 1], strides = [1, 1]} : vector<28x8xf32> to vector<12x1xf32>
    %c144 = arith.constant 144 : index
    %c0_29 = arith.constant 0 : index
    %92 = vector.load %arg10[%c144, %c0_29] : memref<192x2xf32, #tpu.memory_space<vmem>>, vector<12x1xf32>
    tpu.vector_store %arg10[%c144, %c0_29], %91 {strides = array<i32>} : memref<192x2xf32, #tpu.memory_space<vmem>>, vector<12x1xf32>,
    %93 = vector.extract_strided_slice %66 {offsets = [16, 5], sizes = [12, 1], strides = [1, 1]} : vector<28x8xf32> to vector<12x1xf32>
    %c156 = arith.constant 156 : index
    %c0_30 = arith.constant 0 : index
    %94 = vector.load %arg10[%c156, %c0_30] : memref<192x2xf32, #tpu.memory_space<vmem>>, vector<12x1xf32>
    tpu.vector_store %arg10[%c156, %c0_30], %93 {strides = array<i32>} : memref<192x2xf32, #tpu.memory_space<vmem>>, vector<12x1xf32>,
    %95 = vector.extract_strided_slice %66 {offsets = [16, 6], sizes = [12, 1], strides = [1, 1]} : vector<28x8xf32> to vector<12x1xf32>
    %c168 = arith.constant 168 : index
    %c0_31 = arith.constant 0 : index
    %96 = vector.load %arg10[%c168, %c0_31] : memref<192x2xf32, #tpu.memory_space<vmem>>, vector<12x1xf32>
    tpu.vector_store %arg10[%c168, %c0_31], %95 {strides = array<i32>} : memref<192x2xf32, #tpu.memory_space<vmem>>, vector<12x1xf32>,
    %97 = vector.extract_strided_slice %66 {offsets = [16, 7], sizes = [12, 1], strides = [1, 1]} : vector<28x8xf32> to vector<12x1xf32>
    %c180 = arith.constant 180 : index
    %c0_32 = arith.constant 0 : index
    %98 = vector.load %arg10[%c180, %c0_32] : memref<192x2xf32, #tpu.memory_space<vmem>>, vector<12x1xf32>
    tpu.vector_store %arg10[%c180, %c0_32], %97 {strides = array<i32>} : memref<192x2xf32, #tpu.memory_space<vmem>>, vector<12x1xf32>,
    %c1 = arith.constant 1 : index
    %c0_33 = arith.constant 0 : index
    %c0_34 = arith.constant 0 : index
    %99 = vector.load %arg1[%c1, %c0_33, %c0_34] : memref<2x46x8xf32, #tpu.memory_space<vmem>>, vector<1x46x8xf32>
    %100 = vector.shape_cast %99 : vector<1x46x8xf32> to vector<46x8xf32>
    %c1_35 = arith.constant 1 : index
    %c0_36 = arith.constant 0 : index
    %c0_37 = arith.constant 0 : index
    %101 = vector.load %arg2[%c1_35, %c0_36, %c0_37] : memref<2x9x8xf32, #tpu.memory_space<vmem>>, vector<1x9x8xf32>
    %102 = vector.shape_cast %101 : vector<1x9x8xf32> to vector<9x8xf32>
    %103 = vector.extract_strided_slice %0 {offsets = [0, 3], sizes = [32, 3], strides = [1, 1]} : vector<32x6xf32> to vector<32x3xf32>
    %104 = vector.extract_strided_slice %100 {offsets = [0, 0], sizes = [6, 8], strides = [1, 1]} : vector<46x8xf32> to vector<6x8xf32>
    %105 = vector.extract_strided_slice %103 {offsets = [0, 0], sizes = [31, 3], strides = [1, 1]} : vector<32x3xf32> to vector<31x3xf32>
    %106 = vector.extract_strided_slice %104 {offsets = [0, 0], sizes = [3, 8], strides = [1, 1]} : vector<6x8xf32> to vector<3x8xf32>
    %cst_38 = arith.constant dense<0.000000e+00> : vector<31x8xf32>
    %107 = tpu.matmul %105, %106, %cst_38 {dimension_numbers = #tpu.dot_dimension_numbers<[1], [0], [0], [1], [0, 0, 1, 1], [], []>} : vector<31x3xf32>, vector<3x8xf32>, vector<31x8xf32> -> vector<31x8xf32>
    %108 = vector.extract_strided_slice %103 {offsets = [1, 0], sizes = [31, 3], strides = [1, 1]} : vector<32x3xf32> to vector<31x3xf32>
    %109 = vector.extract_strided_slice %104 {offsets = [3, 0], sizes = [3, 8], strides = [1, 1]} : vector<6x8xf32> to vector<3x8xf32>
    %cst_39 = arith.constant dense<0.000000e+00> : vector<31x8xf32>
    %110 = tpu.matmul %108, %109, %cst_39 {dimension_numbers = #tpu.dot_dimension_numbers<[1], [0], [0], [1], [0, 0, 1, 1], [], []>} : vector<31x3xf32>, vector<3x8xf32>, vector<31x8xf32> -> vector<31x8xf32>
    %111 = arith.addf %107, %110 : vector<31x8xf32>
    %112 = vector.extract_strided_slice %102 {offsets = [0, 0], sizes = [1, 8], strides = [1, 1]} : vector<9x8xf32> to vector<1x8xf32>
    %113 = vector.extract_strided_slice %102 {offsets = [1, 0], sizes = [1, 8], strides = [1, 1]} : vector<9x8xf32> to vector<1x8xf32>
    %114 = vector.extract_strided_slice %102 {offsets = [2, 0], sizes = [1, 8], strides = [1, 1]} : vector<9x8xf32> to vector<1x8xf32>
    %115 = vector.broadcast %112 : vector<1x8xf32> to vector<31x8xf32>
    %116 = arith.addf %111, %115 : vector<31x8xf32>
    %cst_40 = arith.constant 0.000000e+00 : f32
    %117 = vector.broadcast %cst_40 : f32 to vector<31x8xf32>
    %118 = arith.maximumf %116, %117 : vector<31x8xf32>
    %119 = vector.broadcast %113 : vector<1x8xf32> to vector<31x8xf32>
    %120 = arith.mulf %118, %119 : vector<31x8xf32>
    %121 = vector.broadcast %114 : vector<1x8xf32> to vector<31x8xf32>
    %122 = arith.addf %120, %121 : vector<31x8xf32>
    %123 = vector.extract_strided_slice %100 {offsets = [6, 0], sizes = [24, 8], strides = [1, 1]} : vector<46x8xf32> to vector<24x8xf32>
    %124 = vector.extract_strided_slice %122 {offsets = [0, 0], sizes = [29, 8], strides = [1, 1]} : vector<31x8xf32> to vector<29x8xf32>
    %125 = vector.extract_strided_slice %123 {offsets = [0, 0], sizes = [8, 8], strides = [1, 1]} : vector<24x8xf32> to vector<8x8xf32>
    %cst_41 = arith.constant dense<0.000000e+00> : vector<29x8xf32>
    %126 = tpu.matmul %124, %125, %cst_41 {dimension_numbers = #tpu.dot_dimension_numbers<[1], [0], [0], [1], [0, 0, 1, 1], [], []>} : vector<29x8xf32>, vector<8x8xf32>, vector<29x8xf32> -> vector<29x8xf32>
    %127 = vector.extract_strided_slice %122 {offsets = [1, 0], sizes = [29, 8], strides = [1, 1]} : vector<31x8xf32> to vector<29x8xf32>
    %128 = vector.extract_strided_slice %123 {offsets = [8, 0], sizes = [8, 8], strides = [1, 1]} : vector<24x8xf32> to vector<8x8xf32>
    %cst_42 = arith.constant dense<0.000000e+00> : vector<29x8xf32>
    %129 = tpu.matmul %127, %128, %cst_42 {dimension_numbers = #tpu.dot_dimension_numbers<[1], [0], [0], [1], [0, 0, 1, 1], [], []>} : vector<29x8xf32>, vector<8x8xf32>, vector<29x8xf32> -> vector<29x8xf32>
    %130 = arith.addf %126, %129 : vector<29x8xf32>
    %131 = vector.extract_strided_slice %122 {offsets = [2, 0], sizes = [29, 8], strides = [1, 1]} : vector<31x8xf32> to vector<29x8xf32>
    %132 = vector.extract_strided_slice %123 {offsets = [16, 0], sizes = [8, 8], strides = [1, 1]} : vector<24x8xf32> to vector<8x8xf32>
    %cst_43 = arith.constant dense<0.000000e+00> : vector<29x8xf32>
    %133 = tpu.matmul %131, %132, %cst_43 {dimension_numbers = #tpu.dot_dimension_numbers<[1], [0], [0], [1], [0, 0, 1, 1], [], []>} : vector<29x8xf32>, vector<8x8xf32>, vector<29x8xf32> -> vector<29x8xf32>
    %134 = arith.addf %130, %133 : vector<29x8xf32>
    %135 = vector.extract_strided_slice %102 {offsets = [3, 0], sizes = [1, 8], strides = [1, 1]} : vector<9x8xf32> to vector<1x8xf32>
    %136 = vector.extract_strided_slice %102 {offsets = [4, 0], sizes = [1, 8], strides = [1, 1]} : vector<9x8xf32> to vector<1x8xf32>
    %137 = vector.extract_strided_slice %102 {offsets = [5, 0], sizes = [1, 8], strides = [1, 1]} : vector<9x8xf32> to vector<1x8xf32>
    %138 = vector.broadcast %135 : vector<1x8xf32> to vector<29x8xf32>
    %139 = arith.addf %134, %138 : vector<29x8xf32>
    %cst_44 = arith.constant 0.000000e+00 : f32
    %140 = vector.broadcast %cst_44 : f32 to vector<29x8xf32>
    %141 = arith.maximumf %139, %140 : vector<29x8xf32>
    %142 = vector.broadcast %136 : vector<1x8xf32> to vector<29x8xf32>
    %143 = arith.mulf %141, %142 : vector<29x8xf32>
    %144 = vector.broadcast %137 : vector<1x8xf32> to vector<29x8xf32>
    %145 = arith.addf %143, %144 : vector<29x8xf32>
    %146 = vector.extract_strided_slice %100 {offsets = [30, 0], sizes = [16, 8], strides = [1, 1]} : vector<46x8xf32> to vector<16x8xf32>
    %147 = vector.extract_strided_slice %145 {offsets = [0, 0], sizes = [28, 8], strides = [1, 1]} : vector<29x8xf32> to vector<28x8xf32>
    %148 = vector.extract_strided_slice %146 {offsets = [0, 0], sizes = [8, 8], strides = [1, 1]} : vector<16x8xf32> to vector<8x8xf32>
    %cst_45 = arith.constant dense<0.000000e+00> : vector<28x8xf32>
    %149 = tpu.matmul %147, %148, %cst_45 {dimension_numbers = #tpu.dot_dimension_numbers<[1], [0], [0], [1], [0, 0, 1, 1], [], []>} : vector<28x8xf32>, vector<8x8xf32>, vector<28x8xf32> -> vector<28x8xf32>
    %150 = vector.extract_strided_slice %145 {offsets = [1, 0], sizes = [28, 8], strides = [1, 1]} : vector<29x8xf32> to vector<28x8xf32>
    %151 = vector.extract_strided_slice %146 {offsets = [8, 0], sizes = [8, 8], strides = [1, 1]} : vector<16x8xf32> to vector<8x8xf32>
    %cst_46 = arith.constant dense<0.000000e+00> : vector<28x8xf32>
    %152 = tpu.matmul %150, %151, %cst_46 {dimension_numbers = #tpu.dot_dimension_numbers<[1], [0], [0], [1], [0, 0, 1, 1], [], []>} : vector<28x8xf32>, vector<8x8xf32>, vector<28x8xf32> -> vector<28x8xf32>
    %153 = arith.addf %149, %152 : vector<28x8xf32>
    %154 = vector.extract_strided_slice %102 {offsets = [6, 0], sizes = [1, 8], strides = [1, 1]} : vector<9x8xf32> to vector<1x8xf32>
    %155 = vector.extract_strided_slice %102 {offsets = [7, 0], sizes = [1, 8], strides = [1, 1]} : vector<9x8xf32> to vector<1x8xf32>
    %156 = vector.extract_strided_slice %102 {offsets = [8, 0], sizes = [1, 8], strides = [1, 1]} : vector<9x8xf32> to vector<1x8xf32>
    %157 = vector.broadcast %154 : vector<1x8xf32> to vector<28x8xf32>
    %158 = arith.addf %153, %157 : vector<28x8xf32>
    %cst_47 = arith.constant 0.000000e+00 : f32
    %159 = vector.broadcast %cst_47 : f32 to vector<28x8xf32>
    %160 = arith.maximumf %158, %159 : vector<28x8xf32>
    %161 = vector.broadcast %155 : vector<1x8xf32> to vector<28x8xf32>
    %162 = arith.mulf %160, %161 : vector<28x8xf32>
    %163 = vector.broadcast %156 : vector<1x8xf32> to vector<28x8xf32>
    %164 = arith.addf %162, %163 : vector<28x8xf32>
    %165 = vector.extract_strided_slice %164 {offsets = [0, 0], sizes = [12, 1], strides = [1, 1]} : vector<28x8xf32> to vector<12x1xf32>
    %c0_48 = arith.constant 0 : index
    %c1_49 = arith.constant 1 : index
    %166 = vector.load %arg10[%c0_48, %c1_49] : memref<192x2xf32, #tpu.memory_space<vmem>>, vector<12x1xf32>
    tpu.vector_store %arg10[%c0_48, %c1_49], %165 {strides = array<i32>} : memref<192x2xf32, #tpu.memory_space<vmem>>, vector<12x1xf32>,
    %167 = vector.extract_strided_slice %164 {offsets = [0, 1], sizes = [12, 1], strides = [1, 1]} : vector<28x8xf32> to vector<12x1xf32>
    %c12_50 = arith.constant 12 : index
    %c1_51 = arith.constant 1 : index
    %168 = vector.load %arg10[%c12_50, %c1_51] : memref<192x2xf32, #tpu.memory_space<vmem>>, vector<12x1xf32>
    tpu.vector_store %arg10[%c12_50, %c1_51], %167 {strides = array<i32>} : memref<192x2xf32, #tpu.memory_space<vmem>>, vector<12x1xf32>,
    %169 = vector.extract_strided_slice %164 {offsets = [0, 2], sizes = [12, 1], strides = [1, 1]} : vector<28x8xf32> to vector<12x1xf32>
    %c24_52 = arith.constant 24 : index
    %c1_53 = arith.constant 1 : index
    %170 = vector.load %arg10[%c24_52, %c1_53] : memref<192x2xf32, #tpu.memory_space<vmem>>, vector<12x1xf32>
    tpu.vector_store %arg10[%c24_52, %c1_53], %169 {strides = array<i32>} : memref<192x2xf32, #tpu.memory_space<vmem>>, vector<12x1xf32>,
    %171 = vector.extract_strided_slice %164 {offsets = [0, 3], sizes = [12, 1], strides = [1, 1]} : vector<28x8xf32> to vector<12x1xf32>
    %c36_54 = arith.constant 36 : index
    %c1_55 = arith.constant 1 : index
    %172 = vector.load %arg10[%c36_54, %c1_55] : memref<192x2xf32, #tpu.memory_space<vmem>>, vector<12x1xf32>
    tpu.vector_store %arg10[%c36_54, %c1_55], %171 {strides = array<i32>} : memref<192x2xf32, #tpu.memory_space<vmem>>, vector<12x1xf32>,
    %173 = vector.extract_strided_slice %164 {offsets = [0, 4], sizes = [12, 1], strides = [1, 1]} : vector<28x8xf32> to vector<12x1xf32>
    %c48_56 = arith.constant 48 : index
    %c1_57 = arith.constant 1 : index
    %174 = vector.load %arg10[%c48_56, %c1_57] : memref<192x2xf32, #tpu.memory_space<vmem>>, vector<12x1xf32>
    tpu.vector_store %arg10[%c48_56, %c1_57], %173 {strides = array<i32>} : memref<192x2xf32, #tpu.memory_space<vmem>>, vector<12x1xf32>,
    %175 = vector.extract_strided_slice %164 {offsets = [0, 5], sizes = [12, 1], strides = [1, 1]} : vector<28x8xf32> to vector<12x1xf32>
    %c60_58 = arith.constant 60 : index
    %c1_59 = arith.constant 1 : index
    %176 = vector.load %arg10[%c60_58, %c1_59] : memref<192x2xf32, #tpu.memory_space<vmem>>, vector<12x1xf32>
    tpu.vector_store %arg10[%c60_58, %c1_59], %175 {strides = array<i32>} : memref<192x2xf32, #tpu.memory_space<vmem>>, vector<12x1xf32>,
    %177 = vector.extract_strided_slice %164 {offsets = [0, 6], sizes = [12, 1], strides = [1, 1]} : vector<28x8xf32> to vector<12x1xf32>
    %c72_60 = arith.constant 72 : index
    %c1_61 = arith.constant 1 : index
    %178 = vector.load %arg10[%c72_60, %c1_61] : memref<192x2xf32, #tpu.memory_space<vmem>>, vector<12x1xf32>
    tpu.vector_store %arg10[%c72_60, %c1_61], %177 {strides = array<i32>} : memref<192x2xf32, #tpu.memory_space<vmem>>, vector<12x1xf32>,
    %179 = vector.extract_strided_slice %164 {offsets = [0, 7], sizes = [12, 1], strides = [1, 1]} : vector<28x8xf32> to vector<12x1xf32>
    %c84_62 = arith.constant 84 : index
    %c1_63 = arith.constant 1 : index
    %180 = vector.load %arg10[%c84_62, %c1_63] : memref<192x2xf32, #tpu.memory_space<vmem>>, vector<12x1xf32>
    tpu.vector_store %arg10[%c84_62, %c1_63], %179 {strides = array<i32>} : memref<192x2xf32, #tpu.memory_space<vmem>>, vector<12x1xf32>,
    %181 = vector.extract_strided_slice %164 {offsets = [16, 0], sizes = [12, 1], strides = [1, 1]} : vector<28x8xf32> to vector<12x1xf32>
    %c96_64 = arith.constant 96 : index
    %c1_65 = arith.constant 1 : index
    %182 = vector.load %arg10[%c96_64, %c1_65] : memref<192x2xf32, #tpu.memory_space<vmem>>, vector<12x1xf32>
    tpu.vector_store %arg10[%c96_64, %c1_65], %181 {strides = array<i32>} : memref<192x2xf32, #tpu.memory_space<vmem>>, vector<12x1xf32>,
    %183 = vector.extract_strided_slice %164 {offsets = [16, 1], sizes = [12, 1], strides = [1, 1]} : vector<28x8xf32> to vector<12x1xf32>
    %c108_66 = arith.constant 108 : index
    %c1_67 = arith.constant 1 : index
    %184 = vector.load %arg10[%c108_66, %c1_67] : memref<192x2xf32, #tpu.memory_space<vmem>>, vector<12x1xf32>
    tpu.vector_store %arg10[%c108_66, %c1_67], %183 {strides = array<i32>} : memref<192x2xf32, #tpu.memory_space<vmem>>, vector<12x1xf32>,
    %185 = vector.extract_strided_slice %164 {offsets = [16, 2], sizes = [12, 1], strides = [1, 1]} : vector<28x8xf32> to vector<12x1xf32>
    %c120_68 = arith.constant 120 : index
    %c1_69 = arith.constant 1 : index
    %186 = vector.load %arg10[%c120_68, %c1_69] : memref<192x2xf32, #tpu.memory_space<vmem>>, vector<12x1xf32>
    tpu.vector_store %arg10[%c120_68, %c1_69], %185 {strides = array<i32>} : memref<192x2xf32, #tpu.memory_space<vmem>>, vector<12x1xf32>,
    %187 = vector.extract_strided_slice %164 {offsets = [16, 3], sizes = [12, 1], strides = [1, 1]} : vector<28x8xf32> to vector<12x1xf32>
    %c132_70 = arith.constant 132 : index
    %c1_71 = arith.constant 1 : index
    %188 = vector.load %arg10[%c132_70, %c1_71] : memref<192x2xf32, #tpu.memory_space<vmem>>, vector<12x1xf32>
    tpu.vector_store %arg10[%c132_70, %c1_71], %187 {strides = array<i32>} : memref<192x2xf32, #tpu.memory_space<vmem>>, vector<12x1xf32>,
    %189 = vector.extract_strided_slice %164 {offsets = [16, 4], sizes = [12, 1], strides = [1, 1]} : vector<28x8xf32> to vector<12x1xf32>
    %c144_72 = arith.constant 144 : index
    %c1_73 = arith.constant 1 : index
    %190 = vector.load %arg10[%c144_72, %c1_73] : memref<192x2xf32, #tpu.memory_space<vmem>>, vector<12x1xf32>
    tpu.vector_store %arg10[%c144_72, %c1_73], %189 {strides = array<i32>} : memref<192x2xf32, #tpu.memory_space<vmem>>, vector<12x1xf32>,
    %191 = vector.extract_strided_slice %164 {offsets = [16, 5], sizes = [12, 1], strides = [1, 1]} : vector<28x8xf32> to vector<12x1xf32>
    %c156_74 = arith.constant 156 : index
    %c1_75 = arith.constant 1 : index
    %192 = vector.load %arg10[%c156_74, %c1_75] : memref<192x2xf32, #tpu.memory_space<vmem>>, vector<12x1xf32>
    tpu.vector_store %arg10[%c156_74, %c1_75], %191 {strides = array<i32>} : memref<192x2xf32, #tpu.memory_space<vmem>>, vector<12x1xf32>,
    %193 = vector.extract_strided_slice %164 {offsets = [16, 6], sizes = [12, 1], strides = [1, 1]} : vector<28x8xf32> to vector<12x1xf32>
    %c168_76 = arith.constant 168 : index
    %c1_77 = arith.constant 1 : index
    %194 = vector.load %arg10[%c168_76, %c1_77] : memref<192x2xf32, #tpu.memory_space<vmem>>, vector<12x1xf32>
    tpu.vector_store %arg10[%c168_76, %c1_77], %193 {strides = array<i32>} : memref<192x2xf32, #tpu.memory_space<vmem>>, vector<12x1xf32>,
    %195 = vector.extract_strided_slice %164 {offsets = [16, 7], sizes = [12, 1], strides = [1, 1]} : vector<28x8xf32> to vector<12x1xf32>
    %c180_78 = arith.constant 180 : index
    %c1_79 = arith.constant 1 : index
    %196 = vector.load %arg10[%c180_78, %c1_79] : memref<192x2xf32, #tpu.memory_space<vmem>>, vector<12x1xf32>
    tpu.vector_store %arg10[%c180_78, %c1_79], %195 {strides = array<i32>} : memref<192x2xf32, #tpu.memory_space<vmem>>, vector<12x1xf32>,
    %c0_80 = arith.constant 0 : index
    %c0_81 = arith.constant 0 : index
    %197 = vector.load %arg3[%c0_80, %c0_81] : memref<44x8xf32, #tpu.memory_space<vmem>>, vector<44x8xf32>
    %c0_82 = arith.constant 0 : index
    %c0_83 = arith.constant 0 : index
    %198 = vector.load %arg4[%c0_82, %c0_83] : memref<9x8xf32, #tpu.memory_space<vmem>>, vector<9x8xf32>
    %c0_84 = arith.constant 0 : index
    %c0_85 = arith.constant 0 : index
    %199 = vector.load %arg10[%c0_84, %c0_85] : memref<192x2xf32, #tpu.memory_space<vmem>>, vector<192x2xf32>
    %200 = vector.extract_strided_slice %197 {offsets = [0, 0], sizes = [4, 8], strides = [1, 1]} : vector<44x8xf32> to vector<4x8xf32>
    %201 = vector.extract_strided_slice %199 {offsets = [0, 0], sizes = [191, 2], strides = [1, 1]} : vector<192x2xf32> to vector<191x2xf32>
    %202 = vector.extract_strided_slice %200 {offsets = [0, 0], sizes = [2, 8], strides = [1, 1]} : vector<4x8xf32> to vector<2x8xf32>
    %cst_86 = arith.constant dense<0.000000e+00> : vector<191x8xf32>
    %203 = tpu.matmul %201, %202, %cst_86 {dimension_numbers = #tpu.dot_dimension_numbers<[1], [0], [0], [1], [0, 0, 1, 1], [], []>} : vector<191x2xf32>, vector<2x8xf32>, vector<191x8xf32> -> vector<191x8xf32>
    %204 = vector.extract_strided_slice %199 {offsets = [1, 0], sizes = [191, 2], strides = [1, 1]} : vector<192x2xf32> to vector<191x2xf32>
    %205 = vector.extract_strided_slice %200 {offsets = [2, 0], sizes = [2, 8], strides = [1, 1]} : vector<4x8xf32> to vector<2x8xf32>
    %cst_87 = arith.constant dense<0.000000e+00> : vector<191x8xf32>
    %206 = tpu.matmul %204, %205, %cst_87 {dimension_numbers = #tpu.dot_dimension_numbers<[1], [0], [0], [1], [0, 0, 1, 1], [], []>} : vector<191x2xf32>, vector<2x8xf32>, vector<191x8xf32> -> vector<191x8xf32>
    %207 = arith.addf %203, %206 : vector<191x8xf32>
    %208 = vector.extract_strided_slice %198 {offsets = [0, 0], sizes = [1, 8], strides = [1, 1]} : vector<9x8xf32> to vector<1x8xf32>
    %209 = vector.extract_strided_slice %198 {offsets = [1, 0], sizes = [1, 8], strides = [1, 1]} : vector<9x8xf32> to vector<1x8xf32>
    %210 = vector.extract_strided_slice %198 {offsets = [2, 0], sizes = [1, 8], strides = [1, 1]} : vector<9x8xf32> to vector<1x8xf32>
    %211 = vector.broadcast %208 : vector<1x8xf32> to vector<191x8xf32>
    %212 = arith.addf %207, %211 : vector<191x8xf32>
    %cst_88 = arith.constant 0.000000e+00 : f32
    %213 = vector.broadcast %cst_88 : f32 to vector<191x8xf32>
    %214 = arith.maximumf %212, %213 : vector<191x8xf32>
    %215 = vector.broadcast %209 : vector<1x8xf32> to vector<191x8xf32>
    %216 = arith.mulf %214, %215 : vector<191x8xf32>
    %217 = vector.broadcast %210 : vector<1x8xf32> to vector<191x8xf32>
    %218 = arith.addf %216, %217 : vector<191x8xf32>
    %219 = vector.extract_strided_slice %197 {offsets = [4, 0], sizes = [24, 8], strides = [1, 1]} : vector<44x8xf32> to vector<24x8xf32>
    %220 = vector.extract_strided_slice %218 {offsets = [0, 0], sizes = [189, 8], strides = [1, 1]} : vector<191x8xf32> to vector<189x8xf32>
    %221 = vector.extract_strided_slice %219 {offsets = [0, 0], sizes = [8, 8], strides = [1, 1]} : vector<24x8xf32> to vector<8x8xf32>
    %cst_89 = arith.constant dense<0.000000e+00> : vector<189x8xf32>
    %222 = tpu.matmul %220, %221, %cst_89 {dimension_numbers = #tpu.dot_dimension_numbers<[1], [0], [0], [1], [0, 0, 1, 1], [], []>} : vector<189x8xf32>, vector<8x8xf32>, vector<189x8xf32> -> vector<189x8xf32>
    %223 = vector.extract_strided_slice %218 {offsets = [1, 0], sizes = [189, 8], strides = [1, 1]} : vector<191x8xf32> to vector<189x8xf32>
    %224 = vector.extract_strided_slice %219 {offsets = [8, 0], sizes = [8, 8], strides = [1, 1]} : vector<24x8xf32> to vector<8x8xf32>
    %cst_90 = arith.constant dense<0.000000e+00> : vector<189x8xf32>
    %225 = tpu.matmul %223, %224, %cst_90 {dimension_numbers = #tpu.dot_dimension_numbers<[1], [0], [0], [1], [0, 0, 1, 1], [], []>} : vector<189x8xf32>, vector<8x8xf32>, vector<189x8xf32> -> vector<189x8xf32>
    %226 = arith.addf %222, %225 : vector<189x8xf32>
    %227 = vector.extract_strided_slice %218 {offsets = [2, 0], sizes = [189, 8], strides = [1, 1]} : vector<191x8xf32> to vector<189x8xf32>
    %228 = vector.extract_strided_slice %219 {offsets = [16, 0], sizes = [8, 8], strides = [1, 1]} : vector<24x8xf32> to vector<8x8xf32>
    %cst_91 = arith.constant dense<0.000000e+00> : vector<189x8xf32>
    %229 = tpu.matmul %227, %228, %cst_91 {dimension_numbers = #tpu.dot_dimension_numbers<[1], [0], [0], [1], [0, 0, 1, 1], [], []>} : vector<189x8xf32>, vector<8x8xf32>, vector<189x8xf32> -> vector<189x8xf32>
    %230 = arith.addf %226, %229 : vector<189x8xf32>
    %231 = vector.extract_strided_slice %198 {offsets = [3, 0], sizes = [1, 8], strides = [1, 1]} : vector<9x8xf32> to vector<1x8xf32>
    %232 = vector.extract_strided_slice %198 {offsets = [4, 0], sizes = [1, 8], strides = [1, 1]} : vector<9x8xf32> to vector<1x8xf32>
    %233 = vector.extract_strided_slice %198 {offsets = [5, 0], sizes = [1, 8], strides = [1, 1]} : vector<9x8xf32> to vector<1x8xf32>
    %234 = vector.broadcast %231 : vector<1x8xf32> to vector<189x8xf32>
    %235 = arith.addf %230, %234 : vector<189x8xf32>
    %cst_92 = arith.constant 0.000000e+00 : f32
    %236 = vector.broadcast %cst_92 : f32 to vector<189x8xf32>
    %237 = arith.maximumf %235, %236 : vector<189x8xf32>
    %238 = vector.broadcast %232 : vector<1x8xf32> to vector<189x8xf32>
    %239 = arith.mulf %237, %238 : vector<189x8xf32>
    %240 = vector.broadcast %233 : vector<1x8xf32> to vector<189x8xf32>
    %241 = arith.addf %239, %240 : vector<189x8xf32>
    %242 = vector.extract_strided_slice %197 {offsets = [28, 0], sizes = [16, 8], strides = [1, 1]} : vector<44x8xf32> to vector<16x8xf32>
    %243 = vector.extract_strided_slice %241 {offsets = [0, 0], sizes = [188, 8], strides = [1, 1]} : vector<189x8xf32> to vector<188x8xf32>
    %244 = vector.extract_strided_slice %242 {offsets = [0, 0], sizes = [8, 8], strides = [1, 1]} : vector<16x8xf32> to vector<8x8xf32>
    %cst_93 = arith.constant dense<0.000000e+00> : vector<188x8xf32>
    %245 = tpu.matmul %243, %244, %cst_93 {dimension_numbers = #tpu.dot_dimension_numbers<[1], [0], [0], [1], [0, 0, 1, 1], [], []>} : vector<188x8xf32>, vector<8x8xf32>, vector<188x8xf32> -> vector<188x8xf32>
    %246 = vector.extract_strided_slice %241 {offsets = [1, 0], sizes = [188, 8], strides = [1, 1]} : vector<189x8xf32> to vector<188x8xf32>
    %247 = vector.extract_strided_slice %242 {offsets = [8, 0], sizes = [8, 8], strides = [1, 1]} : vector<16x8xf32> to vector<8x8xf32>
    %cst_94 = arith.constant dense<0.000000e+00> : vector<188x8xf32>
    %248 = tpu.matmul %246, %247, %cst_94 {dimension_numbers = #tpu.dot_dimension_numbers<[1], [0], [0], [1], [0, 0, 1, 1], [], []>} : vector<188x8xf32>, vector<8x8xf32>, vector<188x8xf32> -> vector<188x8xf32>
    %249 = arith.addf %245, %248 : vector<188x8xf32>
    %250 = vector.extract_strided_slice %198 {offsets = [6, 0], sizes = [1, 8], strides = [1, 1]} : vector<9x8xf32> to vector<1x8xf32>
    %251 = vector.extract_strided_slice %198 {offsets = [7, 0], sizes = [1, 8], strides = [1, 1]} : vector<9x8xf32> to vector<1x8xf32>
    %252 = vector.extract_strided_slice %198 {offsets = [8, 0], sizes = [1, 8], strides = [1, 1]} : vector<9x8xf32> to vector<1x8xf32>
    %253 = vector.broadcast %250 : vector<1x8xf32> to vector<188x8xf32>
    %254 = arith.addf %249, %253 : vector<188x8xf32>
    %cst_95 = arith.constant 0.000000e+00 : f32
    %255 = vector.broadcast %cst_95 : f32 to vector<188x8xf32>
    %256 = arith.maximumf %254, %255 : vector<188x8xf32>
    %257 = vector.broadcast %251 : vector<1x8xf32> to vector<188x8xf32>
    %258 = arith.mulf %256, %257 : vector<188x8xf32>
    %259 = vector.broadcast %252 : vector<1x8xf32> to vector<188x8xf32>
    %260 = arith.addf %258, %259 : vector<188x8xf32>
    %261 = vector.extract_strided_slice %260 {offsets = [0, 0], sizes = [188, 1], strides = [1, 1]} : vector<188x8xf32> to vector<188x1xf32>
    %c0_96 = arith.constant 0 : index
    %c0_97 = arith.constant 0 : index
    %c0_98 = arith.constant 0 : index
    %262 = vector.load %arg5[%c0_96, %c0_97, %c0_98] : memref<8x188x12xf32, #tpu.memory_space<vmem>>, vector<1x188x12xf32>
    %263 = vector.shape_cast %262 : vector<1x188x12xf32> to vector<188x12xf32>
    %264 = vector.broadcast %261 : vector<188x1xf32> to vector<188x12xf32>
    %265 = arith.mulf %264, %263 : vector<188x12xf32>
    %266 = vector.extract_strided_slice %260 {offsets = [0, 1], sizes = [188, 1], strides = [1, 1]} : vector<188x8xf32> to vector<188x1xf32>
    %c1_99 = arith.constant 1 : index
    %c0_100 = arith.constant 0 : index
    %c0_101 = arith.constant 0 : index
    %267 = vector.load %arg5[%c1_99, %c0_100, %c0_101] : memref<8x188x12xf32, #tpu.memory_space<vmem>>, vector<1x188x12xf32>
    %268 = vector.shape_cast %267 : vector<1x188x12xf32> to vector<188x12xf32>
    %269 = vector.broadcast %266 : vector<188x1xf32> to vector<188x12xf32>
    %270 = arith.mulf %269, %268 : vector<188x12xf32>
    %271 = arith.addf %265, %270 : vector<188x12xf32>
    %272 = vector.extract_strided_slice %260 {offsets = [0, 2], sizes = [188, 1], strides = [1, 1]} : vector<188x8xf32> to vector<188x1xf32>
    %c2 = arith.constant 2 : index
    %c0_102 = arith.constant 0 : index
    %c0_103 = arith.constant 0 : index
    %273 = vector.load %arg5[%c2, %c0_102, %c0_103] : memref<8x188x12xf32, #tpu.memory_space<vmem>>, vector<1x188x12xf32>
    %274 = vector.shape_cast %273 : vector<1x188x12xf32> to vector<188x12xf32>
    %275 = vector.broadcast %272 : vector<188x1xf32> to vector<188x12xf32>
    %276 = arith.mulf %275, %274 : vector<188x12xf32>
    %277 = arith.addf %271, %276 : vector<188x12xf32>
    %278 = vector.extract_strided_slice %260 {offsets = [0, 3], sizes = [188, 1], strides = [1, 1]} : vector<188x8xf32> to vector<188x1xf32>
    %c3 = arith.constant 3 : index
    %c0_104 = arith.constant 0 : index
    %c0_105 = arith.constant 0 : index
    %279 = vector.load %arg5[%c3, %c0_104, %c0_105] : memref<8x188x12xf32, #tpu.memory_space<vmem>>, vector<1x188x12xf32>
    %280 = vector.shape_cast %279 : vector<1x188x12xf32> to vector<188x12xf32>
    %281 = vector.broadcast %278 : vector<188x1xf32> to vector<188x12xf32>
    %282 = arith.mulf %281, %280 : vector<188x12xf32>
    %283 = arith.addf %277, %282 : vector<188x12xf32>
    %284 = vector.extract_strided_slice %260 {offsets = [0, 4], sizes = [188, 1], strides = [1, 1]} : vector<188x8xf32> to vector<188x1xf32>
    %c4 = arith.constant 4 : index
    %c0_106 = arith.constant 0 : index
    %c0_107 = arith.constant 0 : index
    %285 = vector.load %arg5[%c4, %c0_106, %c0_107] : memref<8x188x12xf32, #tpu.memory_space<vmem>>, vector<1x188x12xf32>
    %286 = vector.shape_cast %285 : vector<1x188x12xf32> to vector<188x12xf32>
    %287 = vector.broadcast %284 : vector<188x1xf32> to vector<188x12xf32>
    %288 = arith.mulf %287, %286 : vector<188x12xf32>
    %289 = arith.addf %283, %288 : vector<188x12xf32>
    %290 = vector.extract_strided_slice %260 {offsets = [0, 5], sizes = [188, 1], strides = [1, 1]} : vector<188x8xf32> to vector<188x1xf32>
    %c5 = arith.constant 5 : index
    %c0_108 = arith.constant 0 : index
    %c0_109 = arith.constant 0 : index
    %291 = vector.load %arg5[%c5, %c0_108, %c0_109] : memref<8x188x12xf32, #tpu.memory_space<vmem>>, vector<1x188x12xf32>
    %292 = vector.shape_cast %291 : vector<1x188x12xf32> to vector<188x12xf32>
    %293 = vector.broadcast %290 : vector<188x1xf32> to vector<188x12xf32>
    %294 = arith.mulf %293, %292 : vector<188x12xf32>
    %295 = arith.addf %289, %294 : vector<188x12xf32>
    %296 = vector.extract_strided_slice %260 {offsets = [0, 6], sizes = [188, 1], strides = [1, 1]} : vector<188x8xf32> to vector<188x1xf32>
    %c6 = arith.constant 6 : index
    %c0_110 = arith.constant 0 : index
    %c0_111 = arith.constant 0 : index
    %297 = vector.load %arg5[%c6, %c0_110, %c0_111] : memref<8x188x12xf32, #tpu.memory_space<vmem>>, vector<1x188x12xf32>
    %298 = vector.shape_cast %297 : vector<1x188x12xf32> to vector<188x12xf32>
    %299 = vector.broadcast %296 : vector<188x1xf32> to vector<188x12xf32>
    %300 = arith.mulf %299, %298 : vector<188x12xf32>
    %301 = arith.addf %295, %300 : vector<188x12xf32>
    %302 = vector.extract_strided_slice %260 {offsets = [0, 7], sizes = [188, 1], strides = [1, 1]} : vector<188x8xf32> to vector<188x1xf32>
    %c7 = arith.constant 7 : index
    %c0_112 = arith.constant 0 : index
    %c0_113 = arith.constant 0 : index
    %303 = vector.load %arg5[%c7, %c0_112, %c0_113] : memref<8x188x12xf32, #tpu.memory_space<vmem>>, vector<1x188x12xf32>
    %304 = vector.shape_cast %303 : vector<1x188x12xf32> to vector<188x12xf32>
    %305 = vector.broadcast %302 : vector<188x1xf32> to vector<188x12xf32>
    %306 = arith.mulf %305, %304 : vector<188x12xf32>
    %307 = arith.addf %301, %306 : vector<188x12xf32>
    %308 = vector.extract_strided_slice %307 {offsets = [0, 0], sizes = [96, 12], strides = [1, 1]} : vector<188x12xf32> to vector<96x12xf32>
    %cst_114 = arith.constant dense<0.000000e+00> : vector<12xf32>
    %309 = vector.multi_reduction <add>, %308, %cst_114 [0] : vector<96x12xf32> to vector<12xf32>
    %310 = vector.shape_cast %309 : vector<12xf32> to vector<1x12xf32>
    %311 = vector.extract_strided_slice %307 {offsets = [96, 0], sizes = [92, 12], strides = [1, 1]} : vector<188x12xf32> to vector<92x12xf32>
    %cst_115 = arith.constant dense<0.000000e+00> : vector<12xf32>
    %312 = vector.multi_reduction <add>, %311, %cst_115 [0] : vector<92x12xf32> to vector<12xf32>
    %313 = vector.shape_cast %312 : vector<12xf32> to vector<1x12xf32>
    %314 = tpu.concatenate %310, %313 in 0 : vector<1x12xf32>, vector<1x12xf32> -> vector<2x12xf32>
    %c0_116 = arith.constant 0 : index
    %c0_117 = arith.constant 0 : index
    %315 = vector.load %arg6[%c0_116, %c0_117] : memref<1x12xf32, #tpu.memory_space<vmem>>, vector<1x12xf32>
    %316 = vector.broadcast %315 : vector<1x12xf32> to vector<2x12xf32>
    %317 = arith.addf %314, %316 : vector<2x12xf32>
    %cst_118 = arith.constant 0.000000e+00 : f32
    %318 = vector.broadcast %cst_118 : f32 to vector<2x12xf32>
    %319 = arith.maximumf %317, %318 : vector<2x12xf32>
    %c0_119 = arith.constant 0 : index
    %c0_120 = arith.constant 0 : index
    %320 = vector.load %arg7[%c0_119, %c0_120] : memref<12x6xf32, #tpu.memory_space<vmem>>, vector<12x6xf32>
    %cst_121 = arith.constant dense<0.000000e+00> : vector<2x6xf32>
    %321 = tpu.matmul %319, %320, %cst_121 {dimension_numbers = #tpu.dot_dimension_numbers<[1], [0], [0], [1], [0, 0, 1, 1], [], []>} : vector<2x12xf32>, vector<12x6xf32>, vector<2x6xf32> -> vector<2x6xf32>
    %c0_122 = arith.constant 0 : index
    %c0_123 = arith.constant 0 : index
    %322 = vector.load %arg8[%c0_122, %c0_123] : memref<1x6xf32, #tpu.memory_space<vmem>>, vector<1x6xf32>
    %323 = vector.broadcast %322 : vector<1x6xf32> to vector<2x6xf32>
    %324 = arith.addf %321, %323 : vector<2x6xf32>
    %c0_124 = arith.constant 0 : index
    %c0_125 = arith.constant 0 : index
    %325 = vector.load %arg9[%c0_124, %c0_125] : memref<2x6xf32, #tpu.memory_space<vmem>>, vector<2x6xf32>
    tpu.vector_store %arg9[%c0_124, %c0_125], %324 {strides = array<i32>} : memref<2x6xf32, #tpu.memory_space<vmem>>, vector<2x6xf32>,
    return
  }
}

</mosaic_0001>

<llo_original>
// kernel: deepsense_forward.1
$region0: #{deepsense_forward.1}
  #allocation0 [shape = 'u32[]', space=smem, size = 0x4, offset = 0x4, fixed_abs, tag = 'smem constant byte address 0x4 - core index']
  #allocation1 [shape = 'u32[144,128]{1,0:T(1,128)}', space=vmem, size = 0x12000, scoped, tag = 'internal scratch']
  #allocation2 [shape = 'f32[192,2]{1,0:T(8,128)}', space=vmem, size = 0x18000, scoped, tag = 'scratch operand']
  %s0 = inlined_call_operand.vmem [shape: f32[32,6], index: 0, kind: input, shape index: {}]
  %s1 = inlined_call_operand.vmem [shape: f32[2,46,8], index: 1, kind: input, shape index: {}]
  %s2 = inlined_call_operand.vmem [shape: f32[2,9,8], index: 2, kind: input, shape index: {}]
  %s3 = inlined_call_operand.vmem [shape: f32[44,8], index: 3, kind: input, shape index: {}]
  %s4 = inlined_call_operand.vmem [shape: f32[9,8], index: 4, kind: input, shape index: {}]
  %s5 = inlined_call_operand.vmem [shape: f32[8,188,12], index: 5, kind: input, shape index: {}]
  %s6 = inlined_call_operand.vmem [shape: f32[1,12], index: 6, kind: input, shape index: {}]
  %s7 = inlined_call_operand.vmem [shape: f32[12,6], index: 7, kind: input, shape index: {}]
  %s8 = inlined_call_operand.vmem [shape: f32[1,6], index: 8, kind: input, shape index: {}]
  %s9 = inlined_call_operand.hbm [shape: f32[2,6], index: 9, kind: output, shape index: {}]
  %s10 = sld [smem:[#allocation0]]
  $region46: #{deepsense_forward.1} parent=0
    _
  %s12 = ssub.s32 1, %s10
  %s13 = scalar_select 0, %s12, %s10
  $region1: #{deepsense_forward.1} parent=0
    #allocation3 [shape = 'u8[1024]{0}', space=vmem, size = 0x400, scoped, tag = 'output window, operand 0, single buffered']
    #allocation4 [shape = 's32[1]{0}', space=sflag, size = 0x4, scoped, tag = 'scoped memory for deepsense_forward.1']
    %14 = vsyncpa [#allocation4], 0
    // Predicated region
    $region2: #{deepsense_forward.1} parent=1 // pred_check
      _
    $region3: #{deepsense_forward.1} parent=1 // pred_check_branch
      %16 = sbr.rel (0) target = $region5
    $region4: #{deepsense_forward.1} parent=1 // pred_region
      _
    $region5: #{deepsense_forward.1} parent=1 // pred_fallthru
      _
    // Predicated region
    $region6: #{deepsense_forward.1} parent=1 // pred_check
      _
    $region7: #{deepsense_forward.1} parent=1 // pred_check_branch
      %18 = sbr.rel (0) target = $region9
    $region8: #{deepsense_forward.1} parent=1 // pred_region
      _
    $region9: #{deepsense_forward.1} parent=1 // pred_fallthru
      _
    // Predicated region
    $region10: #{deepsense_forward.1} parent=1 // pred_check
      _
    $region11: #{deepsense_forward.1} parent=1 // pred_check_branch
      %20 = sbr.rel (0) target = $region13
    $region12: #{deepsense_forward.1} parent=1 // pred_region
      _
    $region13: #{deepsense_forward.1} parent=1 // pred_fallthru
      _
    // Predicated region
    $region14: #{deepsense_forward.1} parent=1 // pred_check
      _
    $region15: #{deepsense_forward.1} parent=1 // pred_check_branch
      %22 = sbr.rel (0) target = $region17
    $region16: #{deepsense_forward.1} parent=1 // pred_region
      _
    $region17: #{deepsense_forward.1} parent=1 // pred_fallthru
      _
    // Predicated region
    $region18: #{deepsense_forward.1} parent=1 // pred_check
      _
    $region19: #{deepsense_forward.1} parent=1 // pred_check_branch
      %24 = sbr.rel (0) target = $region21
    $region20: #{deepsense_forward.1} parent=1 // pred_region
      _
    $region21: #{deepsense_forward.1} parent=1 // pred_fallthru
      _
    // Predicated region
    $region22: #{deepsense_forward.1} parent=1 // pred_check
      _
    $region23: #{deepsense_forward.1} parent=1 // pred_check_branch
      %26 = sbr.rel (0) target = $region25
    $region24: #{deepsense_forward.1} parent=1 // pred_region
      _
    $region25: #{deepsense_forward.1} parent=1 // pred_fallthru
      _
    // Predicated region
    $region26: #{deepsense_forward.1} parent=1 // pred_check
      _
    $region27: #{deepsense_forward.1} parent=1 // pred_check_branch
      %28 = sbr.rel (0) target = $region29
    $region28: #{deepsense_forward.1} parent=1 // pred_region
      _
    $region29: #{deepsense_forward.1} parent=1 // pred_fallthru
      _
    // Predicated region
    $region30: #{deepsense_forward.1} parent=1 // pred_check
      _
    $region31: #{deepsense_forward.1} parent=1 // pred_check_branch
      %30 = sbr.rel (0) target = $region33
    $region32: #{deepsense_forward.1} parent=1 // pred_region
      _
    $region33: #{deepsense_forward.1} parent=1 // pred_fallthru
      _
    // Predicated region
    $region34: #{deepsense_forward.1} parent=1 // pred_check
      _
    $region35: #{deepsense_forward.1} parent=1 // pred_check_branch
      %32 = sbr.rel (0) target = $region37
    $region36: #{deepsense_forward.1} parent=1 // pred_region
      _
    $region37: #{deepsense_forward.1} parent=1 // pred_fallthru
      _
    %v33 = vld [vmem:[%s0] sm:$0xff]
    %v34 = vld [vmem:[%s0 + $0x8] sm:$0xff]
    %v35 = vld [vmem:[%s0 + $0x10] sm:$0xff]
    %v36 = vld [vmem:[%s0 + $0x18] sm:$0xff]
    %v37 = vld [vmem:[%s1] sm:$0xff]
    %v38 = vld [vmem:[%s1 + $0x8] sm:$0xff]
    %v39 = vld [vmem:[%s1 + $0x10] sm:$0xff]
    %v40 = vld [vmem:[%s1 + $0x18] sm:$0xff]
    %v41 = vld [vmem:[%s1 + $0x20] sm:$0xff]
    %v42 = vld [vmem:[%s1 + $0x28] sm:$0x3f]
    %v43 = vld [vmem:[%s2] sm:$0xff]
    %v44 = vld [vmem:[%s2 + $0x8] sm:$0x1]
    %vm49 = vcmask 1046528
    %v50 = vrot.slane %v33, 1
    %v51 = vrot.slane %v34, 1
    %v52 = vsel %vm49, %v50, %v51
    %v53 = vrot.slane %v35, 1
    %v54 = vsel %vm49, %v51, %v53
    %v55 = vrot.slane %v36, 1
    %v56 = vsel %vm49, %v53, %v55
    %v58 = vrot.slane %v37, 3
    %vm59 = vcmask 23552
    %v60 = vsel %vm59, %v52, 0
    %v62 = vsel %vm59, %v54, 0
    %v64 = vsel %vm59, %v56, 0
    %v66 = vsel %vm59, %v55, 0
    %vm68 = vcmask 1042432
    %v69 = vsel %vm68, %v58, 0
    %71 = vmatprep.subr.mxu0 0.0
    %72 = vmatpush1.msra.mxu0 %v69
    %73 = vmatprep.subr.mxu0 0.0
    %74 = vmatpush1.msra.mxu0 0.0
    %75 = vmatprep.subr.mxu0 0.0
    %76 = vmatpush1.msra.mxu0 0.0
    %77 = vmatprep.subr.mxu0 0.0
    %78 = vmatpush1.msra.mxu0 0.0
    %79 = vmatprep.subr.mxu0 0.0
    %80 = vmatpush1.msra.mxu0 0.0
    %81 = vmatprep.subr.mxu0 0.0
    %82 = vmatpush1.msra.mxu0 0.0
    %83 = vmatprep.subr.mxu0 0.0
    %84 = vmatpush1.msra.mxu0 0.0
    %85 = vmatprep.subr.mxu0 0.0
    %86 = vmatpush1.msra.mxu0 0.0
    %87 = vmatprep.subr.mxu0 0.0
    %88 = vmatpush1.msra.mxu0 0.0
    %89 = vmatprep.subr.mxu0 0.0
    %90 = vmatpush1.msra.mxu0 0.0
    %91 = vmatprep.subr.mxu0 0.0
    %92 = vmatpush1.msra.mxu0 0.0
    %93 = vmatprep.subr.mxu0 0.0
    %94 = vmatpush1.msra.mxu0 0.0
    %95 = vmatprep.subr.mxu0 0.0
    %96 = vmatpush1.msra.mxu0 0.0
    %97 = vmatprep.subr.mxu0 0.0
    %98 = vmatpush1.msra.mxu0 0.0
    %99 = vmatprep.subr.mxu0 0.0
    %100 = vmatpush1.msra.mxu0 0.0
    %101 = vmatprep.subr.mxu0 0.0
    %102 = vmatpush1.msra.mxu0 0.0
    %103 = vmatprep.subr.mxu0 0.0
    %104 = vmatpush1.msra.mxu0 0.0
    %105 = vmatprep.subr.mxu0 0.0
    %106 = vmatpush1.msra.mxu0 0.0
    %107 = vmatprep.subr.mxu0 0.0
    %108 = vmatpush1.msra.mxu0 0.0
    %109 = vmatprep.subr.mxu0 0.0
    %110 = vmatpush1.msra.mxu0 0.0
    %111 = vmatprep.subr.mxu0 0.0
    %112 = vmatpush1.msra.mxu0 0.0
    %113 = vmatprep.subr.mxu0 0.0
    %114 = vmatpush1.msra.mxu0 0.0
    %115 = vmatprep.subr.mxu0 0.0
    %116 = vmatpush1.msra.mxu0 0.0
    %117 = vmatprep.subr.mxu0 0.0
    %118 = vmatpush1.msra.mxu0 0.0
    %119 = vmatprep.subr.mxu0 0.0
    %120 = vmatpush1.msra.mxu0 0.0
    %121 = vmatprep.subr.mxu0 0.0
    %122 = vmatpush1.msra.mxu0 0.0
    %123 = vmatprep.subr.mxu0 0.0
    %124 = vmatpush1.msra.mxu0 0.0
    %125 = vmatprep.subr.mxu0 0.0
    %126 = vmatpush1.msra.mxu0 0.0
    %127 = vmatprep.subr.mxu0 0.0
    %128 = vmatpush1.msra.mxu0 0.0
    %129 = vmatprep.subr.mxu0 0.0
    %130 = vmatpush1.msra.mxu0 0.0
    %131 = vmatprep.subr.mxu0 0.0
    %132 = vmatpush1.msra.mxu0 0.0
    %133 = vmatprep.subr.mxu0 0.0
    %134 = vmatpush1.msra.mxu0 0.0
    %135 = vmatprep.mubr.f32.mxu0 0.0
    %136 = vmatmul.mubr.f32.gmra.mrb[0].mxu0 %v60
    %v137 = vpop.f32.mrb[0].mxu0
    %v138 = vadd.f32 0.0, %v137
    %v139 = vpop.f32.mrb[0].mxu0
    %140 = vmatprep.mubr.f32.mxu0 0.0
    %141 = vmatmul.mubr.f32.gmra.mrb[0].mxu0 %v62
    %v142 = vpop.f32.mrb[0].mxu0
    %v143 = vadd.f32 0.0, %v142
    %v144 = vpop.f32.mrb[0].mxu0
    %145 = vmatprep.mubr.f32.mxu0 0.0
    %146 = vmatmul.mubr.f32.gmra.mrb[0].mxu0 %v64
    %v147 = vpop.f32.mrb[0].mxu0
    %v148 = vadd.f32 0.0, %v147
    %v149 = vpop.f32.mrb[0].mxu0
    %150 = vmatprep.mubr.f32.mxu0 0.0
    %151 = vmatmul.mubr.f32.gmra.mrb[0].mxu0 %v66
    %v152 = vpop.f32.mrb[0].mxu0
    %v153 = vadd.f32 0.0, %v152
    %v154 = vpop.f32.mrb[0].mxu0
    %155 = vdwg.mxu0
    %v156 = vsel %vm59, %v33, 0
    %v158 = vsel %vm59, %v34, 0
    %v160 = vsel %vm59, %v35, 0
    %v162 = vsel %vm59, %v36, 0
    %v164 = vsel %vm68, %v37, 0
    %166 = vmatprep.subr.mxu0 0.0
    %167 = vmatpush1.msra.mxu0 %v164
    %168 = vmatprep.subr.mxu0 0.0
    %169 = vmatpush1.msra.mxu0 0.0
    %170 = vmatprep.subr.mxu0 0.0
    %171 = vmatpush1.msra.mxu0 0.0
    %172 = vmatprep.subr.mxu0 0.0
    %173 = vmatpush1.msra.mxu0 0.0
    %174 = vmatprep.subr.mxu0 0.0
    %175 = vmatpush1.msra.mxu0 0.0
    %176 = vmatprep.subr.mxu0 0.0
    %177 = vmatpush1.msra.mxu0 0.0
    %178 = vmatprep.subr.mxu0 0.0
    %179 = vmatpush1.msra.mxu0 0.0
    %180 = vmatprep.subr.mxu0 0.0
    %181 = vmatpush1.msra.mxu0 0.0
    %182 = vmatprep.subr.mxu0 0.0
    %183 = vmatpush1.msra.mxu0 0.0
    %184 = vmatprep.subr.mxu0 0.0
    %185 = vmatpush1.msra.mxu0 0.0
    %186 = vmatprep.subr.mxu0 0.0
    %187 = vmatpush1.msra.mxu0 0.0
    %188 = vmatprep.subr.mxu0 0.0
    %189 = vmatpush1.msra.mxu0 0.0
    %190 = vmatprep.subr.mxu0 0.0
    %191 = vmatpush1.msra.mxu0 0.0
    %192 = vmatprep.subr.mxu0 0.0
    %193 = vmatpush1.msra.mxu0 0.0
    %194 = vmatprep.subr.mxu0 0.0
    %195 = vmatpush1.msra.mxu0 0.0
    %196 = vmatprep.subr.mxu0 0.0
    %197 = vmatpush1.msra.mxu0 0.0
    %198 = vmatprep.subr.mxu0 0.0
    %199 = vmatpush1.msra.mxu0 0.0
    %200 = vmatprep.subr.mxu0 0.0
    %201 = vmatpush1.msra.mxu0 0.0
    %202 = vmatprep.subr.mxu0 0.0
    %203 = vmatpush1.msra.mxu0 0.0
    %204 = vmatprep.subr.mxu0 0.0
    %205 = vmatpush1.msra.mxu0 0.0
    %206 = vmatprep.subr.mxu0 0.0
    %207 = vmatpush1.msra.mxu0 0.0
    %208 = vmatprep.subr.mxu0 0.0
    %209 = vmatpush1.msra.mxu0 0.0
    %210 = vmatprep.subr.mxu0 0.0
    %211 = vmatpush1.msra.mxu0 0.0
    %212 = vmatprep.subr.mxu0 0.0
    %213 = vmatpush1.msra.mxu0 0.0
    %214 = vmatprep.subr.mxu0 0.0
    %215 = vmatpush1.msra.mxu0 0.0
    %216 = vmatprep.subr.mxu0 0.0
    %217 = vmatpush1.msra.mxu0 0.0
    %218 = vmatprep.subr.mxu0 0.0
    %219 = vmatpush1.msra.mxu0 0.0
    %220 = vmatprep.subr.mxu0 0.0
    %221 = vmatpush1.msra.mxu0 0.0
    %222 = vmatprep.subr.mxu0 0.0
    %223 = vmatpush1.msra.mxu0 0.0
    %224 = vmatprep.subr.mxu0 0.0
    %225 = vmatpush1.msra.mxu0 0.0
    %226 = vmatprep.subr.mxu0 0.0
    %227 = vmatpush1.msra.mxu0 0.0
    %228 = vmatprep.subr.mxu0 0.0
    %229 = vmatpush1.msra.mxu0 0.0
    %230 = vmatprep.mubr.f32.mxu0 0.0
    %231 = vmatmul.mubr.f32.gmra.mrb[0].mxu0 %v156
    %v232 = vpop.f32.mrb[0].mxu0
    %v233 = vadd.f32 %v138, %v232
    %v234 = vpop.f32.mrb[0].mxu0
    %235 = vmatprep.mubr.f32.mxu0 0.0
    %236 = vmatmul.mubr.f32.gmra.mrb[0].mxu0 %v158
    %v237 = vpop.f32.mrb[0].mxu0
    %v238 = vadd.f32 %v143, %v237
    %v239 = vpop.f32.mrb[0].mxu0
    %240 = vmatprep.mubr.f32.mxu0 0.0
    %241 = vmatmul.mubr.f32.gmra.mrb[0].mxu0 %v160
    %v242 = vpop.f32.mrb[0].mxu0
    %v243 = vadd.f32 %v148, %v242
    %v244 = vpop.f32.mrb[0].mxu0
    %245 = vmatprep.mubr.f32.mxu0 0.0
    %246 = vmatmul.mubr.f32.gmra.mrb[0].mxu0 %v162
    %v247 = vpop.f32.mrb[0].mxu0
    %v248 = vadd.f32 %v153, %v247
    %v249 = vpop.f32.mrb[0].mxu0
    %250 = vdwg.mxu0
    %v251 = vlaneseq
    %v252 = vshrl.u32 %v251, 7
    %v253 = vsub.s32 0, %v252
    %v254 = vrot.slane %v43, %v253
    %v255 = vadd.f32 %v233, %v254
    %v256 = vadd.f32 %v238, %v254
    %v257 = vadd.f32 %v243, %v254
    %v258 = vadd.f32 %v248, %v254
    %v259 = vmax.f32 %v255, 0.0
    %v260 = vmax.f32 %v256, 0.0
    %v261 = vmax.f32 %v257, 0.0
    %v262 = vmax.f32 %v258, 0.0
    %v263 = vlaneseq
    %v264 = vshrl.u32 %v263, 7
    %v265 = vsub.s32 1, %v264
    %v266 = vrot.slane %v43, %v265
    %v267 = vmul.f32 %v259, %v266
    %v268 = vmul.f32 %v260, %v266
    %v269 = vmul.f32 %v261, %v266
    %v270 = vmul.f32 %v262, %v266
    %v271 = vlaneseq
    %v272 = vshrl.u32 %v271, 7
    %v273 = vsub.s32 2, %v272
    %v274 = vrot.slane %v43, %v273
    %v275 = vadd.f32 %v267, %v274
    %v276 = vadd.f32 %v268, %v274
    %v277 = vadd.f32 %v269, %v274
    %v278 = vadd.f32 %v270, %v274
    %v283 = vrot.slane %v275, 1
    %v284 = vrot.slane %v276, 1
    %v285 = vsel %vm49, %v283, %v284
    %v286 = vrot.slane %v277, 1
    %v287 = vsel %vm49, %v284, %v286
    %v288 = vrot.slane %v278, 1
    %v289 = vsel %vm49, %v286, %v288
    %vm292 = vcmask 1041408
    %v293 = vrot.slane %v38, 6
    %v294 = vrot.slane %v39, 6
    %v295 = vsel %vm292, %v293, %v294
    %vm297 = vcmask 64512
    %v298 = vsel %vm297, %v285, 0
    %v300 = vsel %vm297, %v287, 0
    %v302 = vsel %vm297, %v289, 0
    %v304 = vsel %vm297, %v288, 0
    %306 = vmatprep.subr.mxu0 0.0
    %307 = vmatpush1.msra.mxu0 %v295
    %308 = vmatprep.subr.mxu0 0.0
    %309 = vmatpush1.msra.mxu0 0.0
    %310 = vmatprep.subr.mxu0 0.0
    %311 = vmatpush1.msra.mxu0 0.0
    %312 = vmatprep.subr.mxu0 0.0
    %313 = vmatpush1.msra.mxu0 0.0
    %314 = vmatprep.subr.mxu0 0.0
    %315 = vmatpush1.msra.mxu0 0.0
    %316 = vmatprep.subr.mxu0 0.0
    %317 = vmatpush1.msra.mxu0 0.0
    %318 = vmatprep.subr.mxu0 0.0
    %319 = vmatpush1.msra.mxu0 0.0
    %320 = vmatprep.subr.mxu0 0.0
    %321 = vmatpush1.msra.mxu0 0.0
    %322 = vmatprep.subr.mxu0 0.0
    %323 = vmatpush1.msra.mxu0 0.0
    %324 = vmatprep.subr.mxu0 0.0
    %325 = vmatpush1.msra.mxu0 0.0
    %326 = vmatprep.subr.mxu0 0.0
    %327 = vmatpush1.msra.mxu0 0.0
    %328 = vmatprep.subr.mxu0 0.0
    %329 = vmatpush1.msra.mxu0 0.0
    %330 = vmatprep.subr.mxu0 0.0
    %331 = vmatpush1.msra.mxu0 0.0
    %332 = vmatprep.subr.mxu0 0.0
    %333 = vmatpush1.msra.mxu0 0.0
    %334 = vmatprep.subr.mxu0 0.0
    %335 = vmatpush1.msra.mxu0 0.0
    %336 = vmatprep.subr.mxu0 0.0
    %337 = vmatpush1.msra.mxu0 0.0
    %338 = vmatprep.subr.mxu0 0.0
    %339 = vmatpush1.msra.mxu0 0.0
    %340 = vmatprep.subr.mxu0 0.0
    %341 = vmatpush1.msra.mxu0 0.0
    %342 = vmatprep.subr.mxu0 0.0
    %343 = vmatpush1.msra.mxu0 0.0
    %344 = vmatprep.subr.mxu0 0.0
    %345 = vmatpush1.msra.mxu0 0.0
    %346 = vmatprep.subr.mxu0 0.0
    %347 = vmatpush1.msra.mxu0 0.0
    %348 = vmatprep.subr.mxu0 0.0
    %349 = vmatpush1.msra.mxu0 0.0
    %350 = vmatprep.subr.mxu0 0.0
    %351 = vmatpush1.msra.mxu0 0.0
    %352 = vmatprep.subr.mxu0 0.0
    %353 = vmatpush1.msra.mxu0 0.0
    %354 = vmatprep.subr.mxu0 0.0
    %355 = vmatpush1.msra.mxu0 0.0
    %356 = vmatprep.subr.mxu0 0.0
    %357 = vmatpush1.msra.mxu0 0.0
    %358 = vmatprep.subr.mxu0 0.0
    %359 = vmatpush1.msra.mxu0 0.0
    %360 = vmatprep.subr.mxu0 0.0
    %361 = vmatpush1.msra.mxu0 0.0
    %362 = vmatprep.subr.mxu0 0.0
    %363 = vmatpush1.msra.mxu0 0.0
    %364 = vmatprep.subr.mxu0 0.0
    %365 = vmatpush1.msra.mxu0 0.0
    %366 = vmatprep.subr.mxu0 0.0
    %367 = vmatpush1.msra.mxu0 0.0
    %368 = vmatprep.subr.mxu0 0.0
    %369 = vmatpush1.msra.mxu0 0.0
    %370 = vmatprep.mubr.f32.mxu0 0.0
    %371 = vmatmul.mubr.f32.gmra.mrb[0].mxu0 %v298
    %v372 = vpop.f32.mrb[0].mxu0
    %v373 = vadd.f32 0.0, %v372
    %v374 = vpop.f32.mrb[0].mxu0
    %375 = vmatprep.mubr.f32.mxu0 0.0
    %376 = vmatmul.mubr.f32.gmra.mrb[0].mxu0 %v300
    %v377 = vpop.f32.mrb[0].mxu0
    %v378 = vadd.f32 0.0, %v377
    %v379 = vpop.f32.mrb[0].mxu0
    %380 = vmatprep.mubr.f32.mxu0 0.0
    %381 = vmatmul.mubr.f32.gmra.mrb[0].mxu0 %v302
    %v382 = vpop.f32.mrb[0].mxu0
    %v383 = vadd.f32 0.0, %v382
    %v384 = vpop.f32.mrb[0].mxu0
    %385 = vmatprep.mubr.f32.mxu0 0.0
    %386 = vmatmul.mubr.f32.gmra.mrb[0].mxu0 %v304
    %v387 = vpop.f32.mrb[0].mxu0
    %v388 = vadd.f32 0.0, %v387
    %v389 = vpop.f32.mrb[0].mxu0
    %390 = vdwg.mxu0
    %v391 = vrot.slane %v37, 6
    %v392 = vsel %vm292, %v391, %v293
    %v394 = vsel %vm297, %v275, 0
    %v396 = vsel %vm297, %v276, 0
    %v398 = vsel %vm297, %v277, 0
    %v400 = vsel %vm297, %v278, 0
    %402 = vmatprep.subr.mxu0 0.0
    %403 = vmatpush1.msra.mxu0 %v392
    %404 = vmatprep.subr.mxu0 0.0
    %405 = vmatpush1.msra.mxu0 0.0
    %406 = vmatprep.subr.mxu0 0.0
    %407 = vmatpush1.msra.mxu0 0.0
    %408 = vmatprep.subr.mxu0 0.0
    %409 = vmatpush1.msra.mxu0 0.0
    %410 = vmatprep.subr.mxu0 0.0
    %411 = vmatpush1.msra.mxu0 0.0
    %412 = vmatprep.subr.mxu0 0.0
    %413 = vmatpush1.msra.mxu0 0.0
    %414 = vmatprep.subr.mxu0 0.0
    %415 = vmatpush1.msra.mxu0 0.0
    %416 = vmatprep.subr.mxu0 0.0
    %417 = vmatpush1.msra.mxu0 0.0
    %418 = vmatprep.subr.mxu0 0.0
    %419 = vmatpush1.msra.mxu0 0.0
    %420 = vmatprep.subr.mxu0 0.0
    %421 = vmatpush1.msra.mxu0 0.0
    %422 = vmatprep.subr.mxu0 0.0
    %423 = vmatpush1.msra.mxu0 0.0
    %424 = vmatprep.subr.mxu0 0.0
    %425 = vmatpush1.msra.mxu0 0.0
    %426 = vmatprep.subr.mxu0 0.0
    %427 = vmatpush1.msra.mxu0 0.0
    %428 = vmatprep.subr.mxu0 0.0
    %429 = vmatpush1.msra.mxu0 0.0
    %430 = vmatprep.subr.mxu0 0.0
    %431 = vmatpush1.msra.mxu0 0.0
    %432 = vmatprep.subr.mxu0 0.0
    %433 = vmatpush1.msra.mxu0 0.0
    %434 = vmatprep.subr.mxu0 0.0
    %435 = vmatpush1.msra.mxu0 0.0
    %436 = vmatprep.subr.mxu0 0.0
    %437 = vmatpush1.msra.mxu0 0.0
    %438 = vmatprep.subr.mxu0 0.0
    %439 = vmatpush1.msra.mxu0 0.0
    %440 = vmatprep.subr.mxu0 0.0
    %441 = vmatpush1.msra.mxu0 0.0
    %442 = vmatprep.subr.mxu0 0.0
    %443 = vmatpush1.msra.mxu0 0.0
    %444 = vmatprep.subr.mxu0 0.0
    %445 = vmatpush1.msra.mxu0 0.0
    %446 = vmatprep.subr.mxu0 0.0
    %447 = vmatpush1.msra.mxu0 0.0
    %448 = vmatprep.subr.mxu0 0.0
    %449 = vmatpush1.msra.mxu0 0.0
    %450 = vmatprep.subr.mxu0 0.0
    %451 = vmatpush1.msra.mxu0 0.0
    %452 = vmatprep.subr.mxu0 0.0
    %453 = vmatpush1.msra.mxu0 0.0
    %454 = vmatprep.subr.mxu0 0.0
    %455 = vmatpush1.msra.mxu0 0.0
    %456 = vmatprep.subr.mxu0 0.0
    %457 = vmatpush1.msra.mxu0 0.0
    %458 = vmatprep.subr.mxu0 0.0
    %459 = vmatpush1.msra.mxu0 0.0
    %460 = vmatprep.subr.mxu0 0.0
    %461 = vmatpush1.msra.mxu0 0.0
    %462 = vmatprep.subr.mxu0 0.0
    %463 = vmatpush1.msra.mxu0 0.0
    %464 = vmatprep.subr.mxu0 0.0
    %465 = vmatpush1.msra.mxu0 0.0
    %466 = vmatprep.mubr.f32.mxu0 0.0
    %467 = vmatmul.mubr.f32.gmra.mrb[0].mxu0 %v394
    %v468 = vpop.f32.mrb[0].mxu0
    %v469 = vadd.f32 %v373, %v468
    %v470 = vpop.f32.mrb[0].mxu0
    %471 = vmatprep.mubr.f32.mxu0 0.0
    %472 = vmatmul.mubr.f32.gmra.mrb[0].mxu0 %v396
    %v473 = vpop.f32.mrb[0].mxu0
    %v474 = vadd.f32 %v378, %v473
    %v475 = vpop.f32.mrb[0].mxu0
    %476 = vmatprep.mubr.f32.mxu0 0.0
    %477 = vmatmul.mubr.f32.gmra.mrb[0].mxu0 %v398
    %v478 = vpop.f32.mrb[0].mxu0
    %v479 = vadd.f32 %v383, %v478
    %v480 = vpop.f32.mrb[0].mxu0
    %481 = vmatprep.mubr.f32.mxu0 0.0
    %482 = vmatmul.mubr.f32.gmra.mrb[0].mxu0 %v400
    %v483 = vpop.f32.mrb[0].mxu0
    %v484 = vadd.f32 %v388, %v483
    %v485 = vpop.f32.mrb[0].mxu0
    %486 = vdwg.mxu0
    %vm487 = vcmask 1045504
    %v488 = vrot.slane %v275, 2
    %v489 = vrot.slane %v276, 2
    %v490 = vsel %vm487, %v488, %v489
    %v491 = vrot.slane %v277, 2
    %v492 = vsel %vm487, %v489, %v491
    %v493 = vrot.slane %v278, 2
    %v494 = vsel %vm487, %v491, %v493
    %v496 = vrot.slane %v40, 6
    %v497 = vsel %vm292, %v294, %v496
    %v499 = vsel %vm297, %v490, 0
    %v501 = vsel %vm297, %v492, 0
    %v503 = vsel %vm297, %v494, 0
    %v505 = vsel %vm297, %v493, 0
    %507 = vmatprep.subr.mxu0 0.0
    %508 = vmatpush1.msra.mxu0 %v497
    %509 = vmatprep.subr.mxu0 0.0
    %510 = vmatpush1.msra.mxu0 0.0
    %511 = vmatprep.subr.mxu0 0.0
    %512 = vmatpush1.msra.mxu0 0.0
    %513 = vmatprep.subr.mxu0 0.0
    %514 = vmatpush1.msra.mxu0 0.0
    %515 = vmatprep.subr.mxu0 0.0
    %516 = vmatpush1.msra.mxu0 0.0
    %517 = vmatprep.subr.mxu0 0.0
    %518 = vmatpush1.msra.mxu0 0.0
    %519 = vmatprep.subr.mxu0 0.0
    %520 = vmatpush1.msra.mxu0 0.0
    %521 = vmatprep.subr.mxu0 0.0
    %522 = vmatpush1.msra.mxu0 0.0
    %523 = vmatprep.subr.mxu0 0.0
    %524 = vmatpush1.msra.mxu0 0.0
    %525 = vmatprep.subr.mxu0 0.0
    %526 = vmatpush1.msra.mxu0 0.0
    %527 = vmatprep.subr.mxu0 0.0
    %528 = vmatpush1.msra.mxu0 0.0
    %529 = vmatprep.subr.mxu0 0.0
    %530 = vmatpush1.msra.mxu0 0.0
    %531 = vmatprep.subr.mxu0 0.0
    %532 = vmatpush1.msra.mxu0 0.0
    %533 = vmatprep.subr.mxu0 0.0
    %534 = vmatpush1.msra.mxu0 0.0
    %535 = vmatprep.subr.mxu0 0.0
    %536 = vmatpush1.msra.mxu0 0.0
    %537 = vmatprep.subr.mxu0 0.0
    %538 = vmatpush1.msra.mxu0 0.0
    %539 = vmatprep.subr.mxu0 0.0
    %540 = vmatpush1.msra.mxu0 0.0
    %541 = vmatprep.subr.mxu0 0.0
    %542 = vmatpush1.msra.mxu0 0.0
    %543 = vmatprep.subr.mxu0 0.0
    %544 = vmatpush1.msra.mxu0 0.0
    %545 = vmatprep.subr.mxu0 0.0
    %546 = vmatpush1.msra.mxu0 0.0
    %547 = vmatprep.subr.mxu0 0.0
    %548 = vmatpush1.msra.mxu0 0.0
    %549 = vmatprep.subr.mxu0 0.0
    %550 = vmatpush1.msra.mxu0 0.0
    %551 = vmatprep.subr.mxu0 0.0
    %552 = vmatpush1.msra.mxu0 0.0
    %553 = vmatprep.subr.mxu0 0.0
    %554 = vmatpush1.msra.mxu0 0.0
    %555 = vmatprep.subr.mxu0 0.0
    %556 = vmatpush1.msra.mxu0 0.0
    %557 = vmatprep.subr.mxu0 0.0
    %558 = vmatpush1.msra.mxu0 0.0
    %559 = vmatprep.subr.mxu0 0.0
    %560 = vmatpush1.msra.mxu0 0.0
    %561 = vmatprep.subr.mxu0 0.0
    %562 = vmatpush1.msra.mxu0 0.0
    %563 = vmatprep.subr.mxu0 0.0
    %564 = vmatpush1.msra.mxu0 0.0
    %565 = vmatprep.subr.mxu0 0.0
    %566 = vmatpush1.msra.mxu0 0.0
    %567 = vmatprep.subr.mxu0 0.0
    %568 = vmatpush1.msra.mxu0 0.0
    %569 = vmatprep.subr.mxu0 0.0
    %570 = vmatpush1.msra.mxu0 0.0
    %571 = vmatprep.mubr.f32.mxu0 0.0
    %572 = vmatmul.mubr.f32.gmra.mrb[0].mxu0 %v499
    %v573 = vpop.f32.mrb[0].mxu0
    %v574 = vadd.f32 0.0, %v573
    %v575 = vpop.f32.mrb[0].mxu0
    %576 = vmatprep.mubr.f32.mxu0 0.0
    %577 = vmatmul.mubr.f32.gmra.mrb[0].mxu0 %v501
    %v578 = vpop.f32.mrb[0].mxu0
    %v579 = vadd.f32 0.0, %v578
    %v580 = vpop.f32.mrb[0].mxu0
    %581 = vmatprep.mubr.f32.mxu0 0.0
    %582 = vmatmul.mubr.f32.gmra.mrb[0].mxu0 %v503
    %v583 = vpop.f32.mrb[0].mxu0
    %v584 = vadd.f32 0.0, %v583
    %v585 = vpop.f32.mrb[0].mxu0
    %586 = vmatprep.mubr.f32.mxu0 0.0
    %587 = vmatmul.mubr.f32.gmra.mrb[0].mxu0 %v505
    %v588 = vpop.f32.mrb[0].mxu0
    %v589 = vadd.f32 0.0, %v588
    %v590 = vpop.f32.mrb[0].mxu0
    %591 = vdwg.mxu0
    %v592 = vadd.f32 %v469, %v574
    %v593 = vadd.f32 %v474, %v579
    %v594 = vadd.f32 %v479, %v584
    %v595 = vadd.f32 %v484, %v589
    %v596 = vlaneseq
    %v597 = vshrl.u32 %v596, 7
    %v598 = vsub.s32 3, %v597
    %v599 = vrot.slane %v43, %v598
    %v600 = vadd.f32 %v592, %v599
    %v601 = vadd.f32 %v593, %v599
    %v602 = vadd.f32 %v594, %v599
    %v603 = vadd.f32 %v595, %v599
    %v604 = vmax.f32 %v600, 0.0
    %v605 = vmax.f32 %v601, 0.0
    %v606 = vmax.f32 %v602, 0.0
    %v607 = vmax.f32 %v603, 0.0
    %v608 = vlaneseq
    %v609 = vshrl.u32 %v608, 7
    %v610 = vsub.s32 4, %v609
    %v611 = vrot.slane %v43, %v610
    %v612 = vmul.f32 %v604, %v611
    %v613 = vmul.f32 %v605, %v611
    %v614 = vmul.f32 %v606, %v611
    %v615 = vmul.f32 %v607, %v611
    %v616 = vlaneseq
    %v617 = vshrl.u32 %v616, 7
    %v618 = vsub.s32 5, %v617
    %v619 = vrot.slane %v43, %v618
    %v620 = vadd.f32 %v612, %v619
    %v621 = vadd.f32 %v613, %v619
    %v622 = vadd.f32 %v614, %v619
    %v623 = vadd.f32 %v615, %v619
    %v628 = vrot.slane %v620, 1
    %v629 = vrot.slane %v621, 1
    %v630 = vsel %vm49, %v628, %v629
    %v631 = vrot.slane %v622, 1
    %v632 = vsel %vm49, %v629, %v631
    %v633 = vrot.slane %v623, 1
    %v634 = vsel %vm49, %v631, %v633
    %v637 = vrot.slane %v41, 6
    %v638 = vrot.slane %v42, 6
    %v639 = vsel %vm292, %v637, %v638
    %v641 = vsel %vm297, %v630, 0
    %v643 = vsel %vm297, %v632, 0
    %v645 = vsel %vm297, %v634, 0
    %v647 = vsel %vm297, %v633, 0
    %649 = vmatprep.subr.mxu0 0.0
    %650 = vmatpush1.msra.mxu0 %v639
    %651 = vmatprep.subr.mxu0 0.0
    %652 = vmatpush1.msra.mxu0 0.0
    %653 = vmatprep.subr.mxu0 0.0
    %654 = vmatpush1.msra.mxu0 0.0
    %655 = vmatprep.subr.mxu0 0.0
    %656 = vmatpush1.msra.mxu0 0.0
    %657 = vmatprep.subr.mxu0 0.0
    %658 = vmatpush1.msra.mxu0 0.0
    %659 = vmatprep.subr.mxu0 0.0
    %660 = vmatpush1.msra.mxu0 0.0
    %661 = vmatprep.subr.mxu0 0.0
    %662 = vmatpush1.msra.mxu0 0.0
    %663 = vmatprep.subr.mxu0 0.0
    %664 = vmatpush1.msra.mxu0 0.0
    %665 = vmatprep.subr.mxu0 0.0
    %666 = vmatpush1.msra.mxu0 0.0
    %667 = vmatprep.subr.mxu0 0.0
    %668 = vmatpush1.msra.mxu0 0.0
    %669 = vmatprep.subr.mxu0 0.0
    %670 = vmatpush1.msra.mxu0 0.0
    %671 = vmatprep.subr.mxu0 0.0
    %672 = vmatpush1.msra.mxu0 0.0
    %673 = vmatprep.subr.mxu0 0.0
    %674 = vmatpush1.msra.mxu0 0.0
    %675 = vmatprep.subr.mxu0 0.0
    %676 = vmatpush1.msra.mxu0 0.0
    %677 = vmatprep.subr.mxu0 0.0
    %678 = vmatpush1.msra.mxu0 0.0
    %679 = vmatprep.subr.mxu0 0.0
    %680 = vmatpush1.msra.mxu0 0.0
    %681 = vmatprep.subr.mxu0 0.0
    %682 = vmatpush1.msra.mxu0 0.0
    %683 = vmatprep.subr.mxu0 0.0
    %684 = vmatpush1.msra.mxu0 0.0
    %685 = vmatprep.subr.mxu0 0.0
    %686 = vmatpush1.msra.mxu0 0.0
    %687 = vmatprep.subr.mxu0 0.0
    %688 = vmatpush1.msra.mxu0 0.0
    %689 = vmatprep.subr.mxu0 0.0
    %690 = vmatpush1.msra.mxu0 0.0
    %691 = vmatprep.subr.mxu0 0.0
    %692 = vmatpush1.msra.mxu0 0.0
    %693 = vmatprep.subr.mxu0 0.0
    %694 = vmatpush1.msra.mxu0 0.0
    %695 = vmatprep.subr.mxu0 0.0
    %696 = vmatpush1.msra.mxu0 0.0
    %697 = vmatprep.subr.mxu0 0.0
    %698 = vmatpush1.msra.mxu0 0.0
    %699 = vmatprep.subr.mxu0 0.0
    %700 = vmatpush1.msra.mxu0 0.0
    %701 = vmatprep.subr.mxu0 0.0
    %702 = vmatpush1.msra.mxu0 0.0
    %703 = vmatprep.subr.mxu0 0.0
    %704 = vmatpush1.msra.mxu0 0.0
    %705 = vmatprep.subr.mxu0 0.0
    %706 = vmatpush1.msra.mxu0 0.0
    %707 = vmatprep.subr.mxu0 0.0
    %708 = vmatpush1.msra.mxu0 0.0
    %709 = vmatprep.subr.mxu0 0.0
    %710 = vmatpush1.msra.mxu0 0.0
    %711 = vmatprep.subr.mxu0 0.0
    %712 = vmatpush1.msra.mxu0 0.0
    %713 = vmatprep.mubr.f32.mxu0 0.0
    %714 = vmatmul.mubr.f32.gmra.mrb[0].mxu0 %v641
    %v715 = vpop.f32.mrb[0].mxu0
    %v716 = vadd.f32 0.0, %v715
    %v717 = vpop.f32.mrb[0].mxu0
    %718 = vmatprep.mubr.f32.mxu0 0.0
    %719 = vmatmul.mubr.f32.gmra.mrb[0].mxu0 %v643
    %v720 = vpop.f32.mrb[0].mxu0
    %v721 = vadd.f32 0.0, %v720
    %v722 = vpop.f32.mrb[0].mxu0
    %723 = vmatprep.mubr.f32.mxu0 0.0
    %724 = vmatmul.mubr.f32.gmra.mrb[0].mxu0 %v645
    %v725 = vpop.f32.mrb[0].mxu0
    %v726 = vadd.f32 0.0, %v725
    %v727 = vpop.f32.mrb[0].mxu0
    %728 = vmatprep.mubr.f32.mxu0 0.0
    %729 = vmatmul.mubr.f32.gmra.mrb[0].mxu0 %v647
    %v730 = vpop.f32.mrb[0].mxu0
    %v731 = vadd.f32 0.0, %v730
    %v732 = vpop.f32.mrb[0].mxu0
    %733 = vdwg.mxu0
    %v734 = vsel %vm292, %v496, %v637
    %v736 = vsel %vm297, %v620, 0
    %v738 = vsel %vm297, %v621, 0
    %v740 = vsel %vm297, %v622, 0
    %v742 = vsel %vm297, %v623, 0
    %744 = vmatprep.subr.mxu0 0.0
    %745 = vmatpush1.msra.mxu0 %v734
    %746 = vmatprep.subr.mxu0 0.0
    %747 = vmatpush1.msra.mxu0 0.0
    %748 = vmatprep.subr.mxu0 0.0
    %749 = vmatpush1.msra.mxu0 0.0
    %750 = vmatprep.subr.mxu0 0.0
    %751 = vmatpush1.msra.mxu0 0.0
    %752 = vmatprep.subr.mxu0 0.0
    %753 = vmatpush1.msra.mxu0 0.0
    %754 = vmatprep.subr.mxu0 0.0
    %755 = vmatpush1.msra.mxu0 0.0
    %756 = vmatprep.subr.mxu0 0.0
    %757 = vmatpush1.msra.mxu0 0.0
    %758 = vmatprep.subr.mxu0 0.0
    %759 = vmatpush1.msra.mxu0 0.0
    %760 = vmatprep.subr.mxu0 0.0
    %761 = vmatpush1.msra.mxu0 0.0
    %762 = vmatprep.subr.mxu0 0.0
    %763 = vmatpush1.msra.mxu0 0.0
    %764 = vmatprep.subr.mxu0 0.0
    %765 = vmatpush1.msra.mxu0 0.0
    %766 = vmatprep.subr.mxu0 0.0
    %767 = vmatpush1.msra.mxu0 0.0
    %768 = vmatprep.subr.mxu0 0.0
    %769 = vmatpush1.msra.mxu0 0.0
    %770 = vmatprep.subr.mxu0 0.0
    %771 = vmatpush1.msra.mxu0 0.0
    %772 = vmatprep.subr.mxu0 0.0
    %773 = vmatpush1.msra.mxu0 0.0
    %774 = vmatprep.subr.mxu0 0.0
    %775 = vmatpush1.msra.mxu0 0.0
    %776 = vmatprep.subr.mxu0 0.0
    %777 = vmatpush1.msra.mxu0 0.0
    %778 = vmatprep.subr.mxu0 0.0
    %779 = vmatpush1.msra.mxu0 0.0
    %780 = vmatprep.subr.mxu0 0.0
    %781 = vmatpush1.msra.mxu0 0.0
    %782 = vmatprep.subr.mxu0 0.0
    %783 = vmatpush1.msra.mxu0 0.0
    %784 = vmatprep.subr.mxu0 0.0
    %785 = vmatpush1.msra.mxu0 0.0
    %786 = vmatprep.subr.mxu0 0.0
    %787 = vmatpush1.msra.mxu0 0.0
    %788 = vmatprep.subr.mxu0 0.0
    %789 = vmatpush1.msra.mxu0 0.0
    %790 = vmatprep.subr.mxu0 0.0
    %791 = vmatpush1.msra.mxu0 0.0
    %792 = vmatprep.subr.mxu0 0.0
    %793 = vmatpush1.msra.mxu0 0.0
    %794 = vmatprep.subr.mxu0 0.0
    %795 = vmatpush1.msra.mxu0 0.0
    %796 = vmatprep.subr.mxu0 0.0
    %797 = vmatpush1.msra.mxu0 0.0
    %798 = vmatprep.subr.mxu0 0.0
    %799 = vmatpush1.msra.mxu0 0.0
    %800 = vmatprep.subr.mxu0 0.0
    %801 = vmatpush1.msra.mxu0 0.0
    %802 = vmatprep.subr.mxu0 0.0
    %803 = vmatpush1.msra.mxu0 0.0
    %804 = vmatprep.subr.mxu0 0.0
    %805 = vmatpush1.msra.mxu0 0.0
    %806 = vmatprep.subr.mxu0 0.0
    %807 = vmatpush1.msra.mxu0 0.0
    %808 = vmatprep.mubr.f32.mxu0 0.0
    %809 = vmatmul.mubr.f32.gmra.mrb[0].mxu0 %v736
    %v810 = vpop.f32.mrb[0].mxu0
    %v811 = vadd.f32 %v716, %v810
    %v812 = vpop.f32.mrb[0].mxu0
    %813 = vmatprep.mubr.f32.mxu0 0.0
    %814 = vmatmul.mubr.f32.gmra.mrb[0].mxu0 %v738
    %v815 = vpop.f32.mrb[0].mxu0
    %v816 = vadd.f32 %v721, %v815
    %v817 = vpop.f32.mrb[0].mxu0
    %818 = vmatprep.mubr.f32.mxu0 0.0
    %819 = vmatmul.mubr.f32.gmra.mrb[0].mxu0 %v740
    %v820 = vpop.f32.mrb[0].mxu0
    %v821 = vadd.f32 %v726, %v820
    %v822 = vpop.f32.mrb[0].mxu0
    %823 = vmatprep.mubr.f32.mxu0 0.0
    %824 = vmatmul.mubr.f32.gmra.mrb[0].mxu0 %v742
    %v825 = vpop.f32.mrb[0].mxu0
    %v826 = vadd.f32 %v731, %v825
    %v827 = vpop.f32.mrb[0].mxu0
    %828 = vdwg.mxu0
    %v829 = vlaneseq
    %v830 = vshrl.u32 %v829, 7
    %v831 = vsub.s32 6, %v830
    %v832 = vrot.slane %v43, %v831
    %v833 = vadd.f32 %v811, %v832
    %v834 = vadd.f32 %v816, %v832
    %v835 = vadd.f32 %v821, %v832
    %v836 = vadd.f32 %v826, %v832
    %v837 = vmax.f32 %v833, 0.0
    %v838 = vmax.f32 %v834, 0.0
    %v839 = vmax.f32 %v835, 0.0
    %v840 = vmax.f32 %v836, 0.0
    %v841 = vlaneseq
    %v842 = vshrl.u32 %v841, 7
    %v843 = vsub.s32 7, %v842
    %v844 = vrot.slane %v43, %v843
    %v845 = vmul.f32 %v837, %v844
    %v846 = vmul.f32 %v838, %v844
    %v847 = vmul.f32 %v839, %v844
    %v848 = vmul.f32 %v840, %v844
    %v849 = vlaneseq
    %v850 = vshrl.u32 %v849, 7
    %v851 = vsub.s32 0, %v850
    %v852 = vrot.slane %v44, %v851
    %v853 = vadd.f32 %v845, %v852
    %v854 = vadd.f32 %v846, %v852
    %v855 = vadd.f32 %v847, %v852
    %v856 = vadd.f32 %v848, %v852
    %vm857 = vcmask 7168
    %858 = vst.msk [vmem:[#allocation2] sm:$0xff] %vm857, %v853
    %vm859 = vcmask 3072
    %860 = vst.msk [vmem:[#allocation2 + $0x8] sm:$0xf] %vm859, %v854
    %863 = vrot.lane.b32.xlu0 %v853, 127
    %v864 = vpop.permute.xlu0 %863
    %865 = vrot.lane.b32.xlu0 %v854, 127
    %v866 = vpop.permute.xlu0 %865
    %869 = vst.msk [vmem:[#allocation2 + $0xc] sm:$0xff] %vm857, %v864
    %870 = vst.msk [vmem:[#allocation2 + $0x14] sm:$0xf] %vm859, %v866
    %871 = vrot.lane.b32.xlu0 %v853, 126
    %v872 = vpop.permute.xlu0 %871
    %873 = vrot.lane.b32.xlu0 %v854, 126
    %v874 = vpop.permute.xlu0 %873
    %877 = vst.msk [vmem:[#allocation2 + $0x18] sm:$0xff] %vm857, %v872
    %878 = vst.msk [vmem:[#allocation2 + $0x20] sm:$0xf] %vm859, %v874
    %879 = vrot.lane.b32.xlu0 %v853, 125
    %v880 = vpop.permute.xlu0 %879
    %881 = vrot.lane.b32.xlu0 %v854, 125
    %v882 = vpop.permute.xlu0 %881
    %885 = vst.msk [vmem:[#allocation2 + $0x24] sm:$0xff] %vm857, %v880
    %886 = vst.msk [vmem:[#allocation2 + $0x2c] sm:$0xf] %vm859, %v882
    %887 = vrot.lane.b32.xlu0 %v853, 124
    %v888 = vpop.permute.xlu0 %887
    %889 = vrot.lane.b32.xlu0 %v854, 124
    %v890 = vpop.permute.xlu0 %889
    %893 = vst.msk [vmem:[#allocation2 + $0x30] sm:$0xff] %vm857, %v888
    %894 = vst.msk [vmem:[#allocation2 + $0x38] sm:$0xf] %vm859, %v890
    %895 = vrot.lane.b32.xlu0 %v853, 123
    %v896 = vpop.permute.xlu0 %895
    %897 = vrot.lane.b32.xlu0 %v854, 123
    %v898 = vpop.permute.xlu0 %897
    %901 = vst.msk [vmem:[#allocation2 + $0x3c] sm:$0xff] %vm857, %v896
    %902 = vst.msk [vmem:[#allocation2 + $0x44] sm:$0xf] %vm859, %v898
    %903 = vrot.lane.b32.xlu0 %v853, 122
    %v904 = vpop.permute.xlu0 %903
    %905 = vrot.lane.b32.xlu0 %v854, 122
    %v906 = vpop.permute.xlu0 %905
    %909 = vst.msk [vmem:[#allocation2 + $0x48] sm:$0xff] %vm857, %v904
    %910 = vst.msk [vmem:[#allocation2 + $0x50] sm:$0xf] %vm859, %v906
    %911 = vrot.lane.b32.xlu0 %v853, 121
    %v912 = vpop.permute.xlu0 %911
    %913 = vrot.lane.b32.xlu0 %v854, 121
    %v914 = vpop.permute.xlu0 %913
    %917 = vst.msk [vmem:[#allocation2 + $0x54] sm:$0xff] %vm857, %v912
    %918 = vst.msk [vmem:[#allocation2 + $0x5c] sm:$0xf] %vm859, %v914
    %919 = vst.msk [vmem:[#allocation2 + $0x60] sm:$0xff] %vm857, %v855
    %920 = vst.msk [vmem:[#allocation2 + $0x68] sm:$0xf] %vm859, %v856
    %923 = vrot.lane.b32.xlu0 %v855, 127
    %v924 = vpop.permute.xlu0 %923
    %925 = vrot.lane.b32.xlu0 %v856, 127
    %v926 = vpop.permute.xlu0 %925
    %929 = vst.msk [vmem:[#allocation2 + $0x6c] sm:$0xff] %vm857, %v924
    %930 = vst.msk [vmem:[#allocation2 + $0x74] sm:$0xf] %vm859, %v926
    %931 = vrot.lane.b32.xlu0 %v855, 126
    %v932 = vpop.permute.xlu0 %931
    %933 = vrot.lane.b32.xlu0 %v856, 126
    %v934 = vpop.permute.xlu0 %933
    %937 = vst.msk [vmem:[#allocation2 + $0x78] sm:$0xff] %vm857, %v932
    %938 = vst.msk [vmem:[#allocation2 + $0x80] sm:$0xf] %vm859, %v934
    %939 = vrot.lane.b32.xlu0 %v855, 125
    %v940 = vpop.permute.xlu0 %939
    %941 = vrot.lane.b32.xlu0 %v856, 125
    %v942 = vpop.permute.xlu0 %941
    %945 = vst.msk [vmem:[#allocation2 + $0x84] sm:$0xff] %vm857, %v940
    %946 = vst.msk [vmem:[#allocation2 + $0x8c] sm:$0xf] %vm859, %v942
    %947 = vrot.lane.b32.xlu0 %v855, 124
    %v948 = vpop.permute.xlu0 %947
    %949 = vrot.lane.b32.xlu0 %v856, 124
    %v950 = vpop.permute.xlu0 %949
    %953 = vst.msk [vmem:[#allocation2 + $0x90] sm:$0xff] %vm857, %v948
    %954 = vst.msk [vmem:[#allocation2 + $0x98] sm:$0xf] %vm859, %v950
    %955 = vrot.lane.b32.xlu0 %v855, 123
    %v956 = vpop.permute.xlu0 %955
    %957 = vrot.lane.b32.xlu0 %v856, 123
    %v958 = vpop.permute.xlu0 %957
    %961 = vst.msk [vmem:[#allocation2 + $0x9c] sm:$0xff] %vm857, %v956
    %962 = vst.msk [vmem:[#allocation2 + $0xa4] sm:$0xf] %vm859, %v958
    %963 = vrot.lane.b32.xlu0 %v855, 122
    %v964 = vpop.permute.xlu0 %963
    %965 = vrot.lane.b32.xlu0 %v856, 122
    %v966 = vpop.permute.xlu0 %965
    %969 = vst.msk [vmem:[#allocation2 + $0xa8] sm:$0xff] %vm857, %v964
    %970 = vst.msk [vmem:[#allocation2 + $0xb0] sm:$0xf] %vm859, %v966
    %971 = vrot.lane.b32.xlu0 %v855, 121
    %v972 = vpop.permute.xlu0 %971
    %973 = vrot.lane.b32.xlu0 %v856, 121
    %v974 = vpop.permute.xlu0 %973
    %977 = vst.msk [vmem:[#allocation2 + $0xb4] sm:$0xff] %vm857, %v972
    %978 = vst.msk [vmem:[#allocation2 + $0xbc] sm:$0xf] %vm859, %v974
    %s979 = scalar_lea.vmem %s1, 48
    %v980 = vld [vmem:[%s979] sm:$0xff]
    %v981 = vld [vmem:[%s979 + $0x8] sm:$0xff]
    %v982 = vld [vmem:[%s979 + $0x10] sm:$0xff]
    %v983 = vld [vmem:[%s979 + $0x18] sm:$0xff]
    %v984 = vld [vmem:[%s979 + $0x20] sm:$0xff]
    %v985 = vld [vmem:[%s979 + $0x28] sm:$0x3f]
    %s986 = scalar_lea.vmem %s2, 16
    %v987 = vld [vmem:[%s986] sm:$0xff]
    %v988 = vld [vmem:[%s986 + $0x8] sm:$0x1]
    %989 = vrot.lane.b32.xlu0 %v52, 125
    %v990 = vpop.permute.xlu0 %989
    %991 = vrot.lane.b32.xlu0 %v54, 125
    %v992 = vpop.permute.xlu0 %991
    %993 = vrot.lane.b32.xlu0 %v56, 125
    %v994 = vpop.permute.xlu0 %993
    %995 = vrot.lane.b32.xlu0 %v55, 125
    %v996 = vpop.permute.xlu0 %995
    %v998 = vrot.slane %v980, 3
    %v999 = vsel %vm59, %v990, 0
    %v1001 = vsel %vm59, %v992, 0
    %v1003 = vsel %vm59, %v994, 0
    %v1005 = vsel %vm59, %v996, 0
    %v1007 = vsel %vm68, %v998, 0
    %1009 = vmatprep.subr.mxu0 0.0
    %1010 = vmatpush1.msra.mxu0 %v1007
    %1011 = vmatprep.subr.mxu0 0.0
    %1012 = vmatpush1.msra.mxu0 0.0
    %1013 = vmatprep.subr.mxu0 0.0
    %1014 = vmatpush1.msra.mxu0 0.0
    %1015 = vmatprep.subr.mxu0 0.0
    %1016 = vmatpush1.msra.mxu0 0.0
    %1017 = vmatprep.subr.mxu0 0.0
    %1018 = vmatpush1.msra.mxu0 0.0
    %1019 = vmatprep.subr.mxu0 0.0
    %1020 = vmatpush1.msra.mxu0 0.0
    %1021 = vmatprep.subr.mxu0 0.0
    %1022 = vmatpush1.msra.mxu0 0.0
    %1023 = vmatprep.subr.mxu0 0.0
    %1024 = vmatpush1.msra.mxu0 0.0
    %1025 = vmatprep.subr.mxu0 0.0
    %1026 = vmatpush1.msra.mxu0 0.0
    %1027 = vmatprep.subr.mxu0 0.0
    %1028 = vmatpush1.msra.mxu0 0.0
    %1029 = vmatprep.subr.mxu0 0.0
    %1030 = vmatpush1.msra.mxu0 0.0
    %1031 = vmatprep.subr.mxu0 0.0
    %1032 = vmatpush1.msra.mxu0 0.0
    %1033 = vmatprep.subr.mxu0 0.0
    %1034 = vmatpush1.msra.mxu0 0.0
    %1035 = vmatprep.subr.mxu0 0.0
    %1036 = vmatpush1.msra.mxu0 0.0
    %1037 = vmatprep.subr.mxu0 0.0
    %1038 = vmatpush1.msra.mxu0 0.0
    %1039 = vmatprep.subr.mxu0 0.0
    %1040 = vmatpush1.msra.mxu0 0.0
    %1041 = vmatprep.subr.mxu0 0.0
    %1042 = vmatpush1.msra.mxu0 0.0
    %1043 = vmatprep.subr.mxu0 0.0
    %1044 = vmatpush1.msra.mxu0 0.0
    %1045 = vmatprep.subr.mxu0 0.0
    %1046 = vmatpush1.msra.mxu0 0.0
    %1047 = vmatprep.subr.mxu0 0.0
    %1048 = vmatpush1.msra.mxu0 0.0
    %1049 = vmatprep.subr.mxu0 0.0
    %1050 = vmatpush1.msra.mxu0 0.0
    %1051 = vmatprep.subr.mxu0 0.0
    %1052 = vmatpush1.msra.mxu0 0.0
    %1053 = vmatprep.subr.mxu0 0.0
    %1054 = vmatpush1.msra.mxu0 0.0
    %1055 = vmatprep.subr.mxu0 0.0
    %1056 = vmatpush1.msra.mxu0 0.0
    %1057 = vmatprep.subr.mxu0 0.0
    %1058 = vmatpush1.msra.mxu0 0.0
    %1059 = vmatprep.subr.mxu0 0.0
    %1060 = vmatpush1.msra.mxu0 0.0
    %1061 = vmatprep.subr.mxu0 0.0
    %1062 = vmatpush1.msra.mxu0 0.0
    %1063 = vmatprep.subr.mxu0 0.0
    %1064 = vmatpush1.msra.mxu0 0.0
    %1065 = vmatprep.subr.mxu0 0.0
    %1066 = vmatpush1.msra.mxu0 0.0
    %1067 = vmatprep.subr.mxu0 0.0
    %1068 = vmatpush1.msra.mxu0 0.0
    %1069 = vmatprep.subr.mxu0 0.0
    %1070 = vmatpush1.msra.mxu0 0.0
    %1071 = vmatprep.subr.mxu0 0.0
    %1072 = vmatpush1.msra.mxu0 0.0
    %1073 = vmatprep.mubr.f32.mxu0 0.0
    %1074 = vmatmul.mubr.f32.gmra.mrb[0].mxu0 %v999
    %v1075 = vpop.f32.mrb[0].mxu0
    %v1076 = vadd.f32 0.0, %v1075
    %v1077 = vpop.f32.mrb[0].mxu0
    %1078 = vmatprep.mubr.f32.mxu0 0.0
    %1079 = vmatmul.mubr.f32.gmra.mrb[0].mxu0 %v1001
    %v1080 = vpop.f32.mrb[0].mxu0
    %v1081 = vadd.f32 0.0, %v1080
    %v1082 = vpop.f32.mrb[0].mxu0
    %1083 = vmatprep.mubr.f32.mxu0 0.0
    %1084 = vmatmul.mubr.f32.gmra.mrb[0].mxu0 %v1003
    %v1085 = vpop.f32.mrb[0].mxu0
    %v1086 = vadd.f32 0.0, %v1085
    %v1087 = vpop.f32.mrb[0].mxu0
    %1088 = vmatprep.mubr.f32.mxu0 0.0
    %1089 = vmatmul.mubr.f32.gmra.mrb[0].mxu0 %v1005
    %v1090 = vpop.f32.mrb[0].mxu0
    %v1091 = vadd.f32 0.0, %v1090
    %v1092 = vpop.f32.mrb[0].mxu0
    %1093 = vdwg.mxu0
    %1094 = vrot.lane.b32.xlu0 %v33, 125
    %v1095 = vpop.permute.xlu0 %1094
    %1096 = vrot.lane.b32.xlu0 %v34, 125
    %v1097 = vpop.permute.xlu0 %1096
    %1098 = vrot.lane.b32.xlu0 %v35, 125
    %v1099 = vpop.permute.xlu0 %1098
    %1100 = vrot.lane.b32.xlu0 %v36, 125
    %v1101 = vpop.permute.xlu0 %1100
    %v1102 = vsel %vm59, %v1095, 0
    %v1104 = vsel %vm59, %v1097, 0
    %v1106 = vsel %vm59, %v1099, 0
    %v1108 = vsel %vm59, %v1101, 0
    %v1110 = vsel %vm68, %v980, 0
    %1112 = vmatprep.subr.mxu0 0.0
    %1113 = vmatpush1.msra.mxu0 %v1110
    %1114 = vmatprep.subr.mxu0 0.0
    %1115 = vmatpush1.msra.mxu0 0.0
    %1116 = vmatprep.subr.mxu0 0.0
    %1117 = vmatpush1.msra.mxu0 0.0
    %1118 = vmatprep.subr.mxu0 0.0
    %1119 = vmatpush1.msra.mxu0 0.0
    %1120 = vmatprep.subr.mxu0 0.0
    %1121 = vmatpush1.msra.mxu0 0.0
    %1122 = vmatprep.subr.mxu0 0.0
    %1123 = vmatpush1.msra.mxu0 0.0
    %1124 = vmatprep.subr.mxu0 0.0
    %1125 = vmatpush1.msra.mxu0 0.0
    %1126 = vmatprep.subr.mxu0 0.0
    %1127 = vmatpush1.msra.mxu0 0.0
    %1128 = vmatprep.subr.mxu0 0.0
    %1129 = vmatpush1.msra.mxu0 0.0
    %1130 = vmatprep.subr.mxu0 0.0
    %1131 = vmatpush1.msra.mxu0 0.0
    %1132 = vmatprep.subr.mxu0 0.0
    %1133 = vmatpush1.msra.mxu0 0.0
    %1134 = vmatprep.subr.mxu0 0.0
    %1135 = vmatpush1.msra.mxu0 0.0
    %1136 = vmatprep.subr.mxu0 0.0
    %1137 = vmatpush1.msra.mxu0 0.0
    %1138 = vmatprep.subr.mxu0 0.0
    %1139 = vmatpush1.msra.mxu0 0.0
    %1140 = vmatprep.subr.mxu0 0.0
    %1141 = vmatpush1.msra.mxu0 0.0
    %1142 = vmatprep.subr.mxu0 0.0
    %1143 = vmatpush1.msra.mxu0 0.0
    %1144 = vmatprep.subr.mxu0 0.0
    %1145 = vmatpush1.msra.mxu0 0.0
    %1146 = vmatprep.subr.mxu0 0.0
    %1147 = vmatpush1.msra.mxu0 0.0
    %1148 = vmatprep.subr.mxu0 0.0
    %1149 = vmatpush1.msra.mxu0 0.0
    %1150 = vmatprep.subr.mxu0 0.0
    %1151 = vmatpush1.msra.mxu0 0.0
    %1152 = vmatprep.subr.mxu0 0.0
    %1153 = vmatpush1.msra.mxu0 0.0
    %1154 = vmatprep.subr.mxu0 0.0
    %1155 = vmatpush1.msra.mxu0 0.0
    %1156 = vmatprep.subr.mxu0 0.0
    %1157 = vmatpush1.msra.mxu0 0.0
    %1158 = vmatprep.subr.mxu0 0.0
    %1159 = vmatpush1.msra.mxu0 0.0
    %1160 = vmatprep.subr.mxu0 0.0
    %1161 = vmatpush1.msra.mxu0 0.0
    %1162 = vmatprep.subr.mxu0 0.0
    %1163 = vmatpush1.msra.mxu0 0.0
    %1164 = vmatprep.subr.mxu0 0.0
    %1165 = vmatpush1.msra.mxu0 0.0
    %1166 = vmatprep.subr.mxu0 0.0
    %1167 = vmatpush1.msra.mxu0 0.0
    %1168 = vmatprep.subr.mxu0 0.0
    %1169 = vmatpush1.msra.mxu0 0.0
    %1170 = vmatprep.subr.mxu0 0.0
    %1171 = vmatpush1.msra.mxu0 0.0
    %1172 = vmatprep.subr.mxu0 0.0
    %1173 = vmatpush1.msra.mxu0 0.0
    %1174 = vmatprep.subr.mxu0 0.0
    %1175 = vmatpush1.msra.mxu0 0.0
    %1176 = vmatprep.mubr.f32.mxu0 0.0
    %1177 = vmatmul.mubr.f32.gmra.mrb[0].mxu0 %v1102
    %v1178 = vpop.f32.mrb[0].mxu0
    %v1179 = vadd.f32 %v1076, %v1178
    %v1180 = vpop.f32.mrb[0].mxu0
    %1181 = vmatprep.mubr.f32.mxu0 0.0
    %1182 = vmatmul.mubr.f32.gmra.mrb[0].mxu0 %v1104
    %v1183 = vpop.f32.mrb[0].mxu0
    %v1184 = vadd.f32 %v1081, %v1183
    %v1185 = vpop.f32.mrb[0].mxu0
    %1186 = vmatprep.mubr.f32.mxu0 0.0
    %1187 = vmatmul.mubr.f32.gmra.mrb[0].mxu0 %v1106
    %v1188 = vpop.f32.mrb[0].mxu0
    %v1189 = vadd.f32 %v1086, %v1188
    %v1190 = vpop.f32.mrb[0].mxu0
    %1191 = vmatprep.mubr.f32.mxu0 0.0
    %1192 = vmatmul.mubr.f32.gmra.mrb[0].mxu0 %v1108
    %v1193 = vpop.f32.mrb[0].mxu0
    %v1194 = vadd.f32 %v1091, %v1193
    %v1195 = vpop.f32.mrb[0].mxu0
    %1196 = vdwg.mxu0
    %v1197 = vlaneseq
    %v1198 = vshrl.u32 %v1197, 7
    %v1199 = vsub.s32 0, %v1198
    %v1200 = vrot.slane %v987, %v1199
    %v1201 = vadd.f32 %v1179, %v1200
    %v1202 = vadd.f32 %v1184, %v1200
    %v1203 = vadd.f32 %v1189, %v1200
    %v1204 = vadd.f32 %v1194, %v1200
    %v1205 = vmax.f32 %v1201, 0.0
    %v1206 = vmax.f32 %v1202, 0.0
    %v1207 = vmax.f32 %v1203, 0.0
    %v1208 = vmax.f32 %v1204, 0.0
    %v1209 = vlaneseq
    %v1210 = vshrl.u32 %v1209, 7
    %v1211 = vsub.s32 1, %v1210
    %v1212 = vrot.slane %v987, %v1211
    %v1213 = vmul.f32 %v1205, %v1212
    %v1214 = vmul.f32 %v1206, %v1212
    %v1215 = vmul.f32 %v1207, %v1212
    %v1216 = vmul.f32 %v1208, %v1212
    %v1217 = vlaneseq
    %v1218 = vshrl.u32 %v1217, 7
    %v1219 = vsub.s32 2, %v1218
    %v1220 = vrot.slane %v987, %v1219
    %v1221 = vadd.f32 %v1213, %v1220
    %v1222 = vadd.f32 %v1214, %v1220
    %v1223 = vadd.f32 %v1215, %v1220
    %v1224 = vadd.f32 %v1216, %v1220
    %v1229 = vrot.slane %v1221, 1
    %v1230 = vrot.slane %v1222, 1
    %v1231 = vsel %vm49, %v1229, %v1230
    %v1232 = vrot.slane %v1223, 1
    %v1233 = vsel %vm49, %v1230, %v1232
    %v1234 = vrot.slane %v1224, 1
    %v1235 = vsel %vm49, %v1232, %v1234
    %v1238 = vrot.slane %v981, 6
    %v1239 = vrot.slane %v982, 6
    %v1240 = vsel %vm292, %v1238, %v1239
    %v1242 = vsel %vm297, %v1231, 0
    %v1244 = vsel %vm297, %v1233, 0
    %v1246 = vsel %vm297, %v1235, 0
    %v1248 = vsel %vm297, %v1234, 0
    %1250 = vmatprep.subr.mxu0 0.0
    %1251 = vmatpush1.msra.mxu0 %v1240
    %1252 = vmatprep.subr.mxu0 0.0
    %1253 = vmatpush1.msra.mxu0 0.0
    %1254 = vmatprep.subr.mxu0 0.0
    %1255 = vmatpush1.msra.mxu0 0.0
    %1256 = vmatprep.subr.mxu0 0.0
    %1257 = vmatpush1.msra.mxu0 0.0
    %1258 = vmatprep.subr.mxu0 0.0
    %1259 = vmatpush1.msra.mxu0 0.0
    %1260 = vmatprep.subr.mxu0 0.0
    %1261 = vmatpush1.msra.mxu0 0.0
    %1262 = vmatprep.subr.mxu0 0.0
    %1263 = vmatpush1.msra.mxu0 0.0
    %1264 = vmatprep.subr.mxu0 0.0
    %1265 = vmatpush1.msra.mxu0 0.0
    %1266 = vmatprep.subr.mxu0 0.0
    %1267 = vmatpush1.msra.mxu0 0.0
    %1268 = vmatprep.subr.mxu0 0.0
    %1269 = vmatpush1.msra.mxu0 0.0
    %1270 = vmatprep.subr.mxu0 0.0
    %1271 = vmatpush1.msra.mxu0 0.0
    %1272 = vmatprep.subr.mxu0 0.0
    %1273 = vmatpush1.msra.mxu0 0.0
    %1274 = vmatprep.subr.mxu0 0.0
    %1275 = vmatpush1.msra.mxu0 0.0
    %1276 = vmatprep.subr.mxu0 0.0
    %1277 = vmatpush1.msra.mxu0 0.0
    %1278 = vmatprep.subr.mxu0 0.0
    %1279 = vmatpush1.msra.mxu0 0.0
    %1280 = vmatprep.subr.mxu0 0.0
    %1281 = vmatpush1.msra.mxu0 0.0
    %1282 = vmatprep.subr.mxu0 0.0
    %1283 = vmatpush1.msra.mxu0 0.0
    %1284 = vmatprep.subr.mxu0 0.0
    %1285 = vmatpush1.msra.mxu0 0.0
    %1286 = vmatprep.subr.mxu0 0.0
    %1287 = vmatpush1.msra.mxu0 0.0
    %1288 = vmatprep.subr.mxu0 0.0
    %1289 = vmatpush1.msra.mxu0 0.0
    %1290 = vmatprep.subr.mxu0 0.0
    %1291 = vmatpush1.msra.mxu0 0.0
    %1292 = vmatprep.subr.mxu0 0.0
    %1293 = vmatpush1.msra.mxu0 0.0
    %1294 = vmatprep.subr.mxu0 0.0
    %1295 = vmatpush1.msra.mxu0 0.0
    %1296 = vmatprep.subr.mxu0 0.0
    %1297 = vmatpush1.msra.mxu0 0.0
    %1298 = vmatprep.subr.mxu0 0.0
    %1299 = vmatpush1.msra.mxu0 0.0
    %1300 = vmatprep.subr.mxu0 0.0
    %1301 = vmatpush1.msra.mxu0 0.0
    %1302 = vmatprep.subr.mxu0 0.0
    %1303 = vmatpush1.msra.mxu0 0.0
    %1304 = vmatprep.subr.mxu0 0.0
    %1305 = vmatpush1.msra.mxu0 0.0
    %1306 = vmatprep.subr.mxu0 0.0
    %1307 = vmatpush1.msra.mxu0 0.0
    %1308 = vmatprep.subr.mxu0 0.0
    %1309 = vmatpush1.msra.mxu0 0.0
    %1310 = vmatprep.subr.mxu0 0.0
    %1311 = vmatpush1.msra.mxu0 0.0
    %1312 = vmatprep.subr.mxu0 0.0
    %1313 = vmatpush1.msra.mxu0 0.0
    %1314 = vmatprep.mubr.f32.mxu0 0.0
    %1315 = vmatmul.mubr.f32.gmra.mrb[0].mxu0 %v1242
    %v1316 = vpop.f32.mrb[0].mxu0
    %v1317 = vadd.f32 0.0, %v1316
    %v1318 = vpop.f32.mrb[0].mxu0
    %1319 = vmatprep.mubr.f32.mxu0 0.0
    %1320 = vmatmul.mubr.f32.gmra.mrb[0].mxu0 %v1244
    %v1321 = vpop.f32.mrb[0].mxu0
    %v1322 = vadd.f32 0.0, %v1321
    %v1323 = vpop.f32.mrb[0].mxu0
    %1324 = vmatprep.mubr.f32.mxu0 0.0
    %1325 = vmatmul.mubr.f32.gmra.mrb[0].mxu0 %v1246
    %v1326 = vpop.f32.mrb[0].mxu0
    %v1327 = vadd.f32 0.0, %v1326
    %v1328 = vpop.f32.mrb[0].mxu0
    %1329 = vmatprep.mubr.f32.mxu0 0.0
    %1330 = vmatmul.mubr.f32.gmra.mrb[0].mxu0 %v1248
    %v1331 = vpop.f32.mrb[0].mxu0
    %v1332 = vadd.f32 0.0, %v1331
    %v1333 = vpop.f32.mrb[0].mxu0
    %1334 = vdwg.mxu0
    %v1335 = vrot.slane %v980, 6
    %v1336 = vsel %vm292, %v1335, %v1238
    %v1338 = vsel %vm297, %v1221, 0
    %v1340 = vsel %vm297, %v1222, 0
    %v1342 = vsel %vm297, %v1223, 0
    %v1344 = vsel %vm297, %v1224, 0
    %1346 = vmatprep.subr.mxu0 0.0
    %1347 = vmatpush1.msra.mxu0 %v1336
    %1348 = vmatprep.subr.mxu0 0.0
    %1349 = vmatpush1.msra.mxu0 0.0
    %1350 = vmatprep.subr.mxu0 0.0
    %1351 = vmatpush1.msra.mxu0 0.0
    %1352 = vmatprep.subr.mxu0 0.0
    %1353 = vmatpush1.msra.mxu0 0.0
    %1354 = vmatprep.subr.mxu0 0.0
    %1355 = vmatpush1.msra.mxu0 0.0
    %1356 = vmatprep.subr.mxu0 0.0
    %1357 = vmatpush1.msra.mxu0 0.0
    %1358 = vmatprep.subr.mxu0 0.0
    %1359 = vmatpush1.msra.mxu0 0.0
    %1360 = vmatprep.subr.mxu0 0.0
    %1361 = vmatpush1.msra.mxu0 0.0
    %1362 = vmatprep.subr.mxu0 0.0
    %1363 = vmatpush1.msra.mxu0 0.0
    %1364 = vmatprep.subr.mxu0 0.0
    %1365 = vmatpush1.msra.mxu0 0.0
    %1366 = vmatprep.subr.mxu0 0.0
    %1367 = vmatpush1.msra.mxu0 0.0
    %1368 = vmatprep.subr.mxu0 0.0
    %1369 = vmatpush1.msra.mxu0 0.0
    %1370 = vmatprep.subr.mxu0 0.0
    %1371 = vmatpush1.msra.mxu0 0.0
    %1372 = vmatprep.subr.mxu0 0.0
    %1373 = vmatpush1.msra.mxu0 0.0
    %1374 = vmatprep.subr.mxu0 0.0
    %1375 = vmatpush1.msra.mxu0 0.0
    %1376 = vmatprep.subr.mxu0 0.0
    %1377 = vmatpush1.msra.mxu0 0.0
    %1378 = vmatprep.subr.mxu0 0.0
    %1379 = vmatpush1.msra.mxu0 0.0
    %1380 = vmatprep.subr.mxu0 0.0
    %1381 = vmatpush1.msra.mxu0 0.0
    %1382 = vmatprep.subr.mxu0 0.0
    %1383 = vmatpush1.msra.mxu0 0.0
    %1384 = vmatprep.subr.mxu0 0.0
    %1385 = vmatpush1.msra.mxu0 0.0
    %1386 = vmatprep.subr.mxu0 0.0
    %1387 = vmatpush1.msra.mxu0 0.0
    %1388 = vmatprep.subr.mxu0 0.0
    %1389 = vmatpush1.msra.mxu0 0.0
    %1390 = vmatprep.subr.mxu0 0.0
    %1391 = vmatpush1.msra.mxu0 0.0
    %1392 = vmatprep.subr.mxu0 0.0
    %1393 = vmatpush1.msra.mxu0 0.0
    %1394 = vmatprep.subr.mxu0 0.0
    %1395 = vmatpush1.msra.mxu0 0.0
    %1396 = vmatprep.subr.mxu0 0.0
    %1397 = vmatpush1.msra.mxu0 0.0
    %1398 = vmatprep.subr.mxu0 0.0
    %1399 = vmatpush1.msra.mxu0 0.0
    %1400 = vmatprep.subr.mxu0 0.0
    %1401 = vmatpush1.msra.mxu0 0.0
    %1402 = vmatprep.subr.mxu0 0.0
    %1403 = vmatpush1.msra.mxu0 0.0
    %1404 = vmatprep.subr.mxu0 0.0
    %1405 = vmatpush1.msra.mxu0 0.0
    %1406 = vmatprep.subr.mxu0 0.0
    %1407 = vmatpush1.msra.mxu0 0.0
    %1408 = vmatprep.subr.mxu0 0.0
    %1409 = vmatpush1.msra.mxu0 0.0
    %1410 = vmatprep.mubr.f32.mxu0 0.0
    %1411 = vmatmul.mubr.f32.gmra.mrb[0].mxu0 %v1338
    %v1412 = vpop.f32.mrb[0].mxu0
    %v1413 = vadd.f32 %v1317, %v1412
    %v1414 = vpop.f32.mrb[0].mxu0
    %1415 = vmatprep.mubr.f32.mxu0 0.0
    %1416 = vmatmul.mubr.f32.gmra.mrb[0].mxu0 %v1340
    %v1417 = vpop.f32.mrb[0].mxu0
    %v1418 = vadd.f32 %v1322, %v1417
    %v1419 = vpop.f32.mrb[0].mxu0
    %1420 = vmatprep.mubr.f32.mxu0 0.0
    %1421 = vmatmul.mubr.f32.gmra.mrb[0].mxu0 %v1342
    %v1422 = vpop.f32.mrb[0].mxu0
    %v1423 = vadd.f32 %v1327, %v1422
    %v1424 = vpop.f32.mrb[0].mxu0
    %1425 = vmatprep.mubr.f32.mxu0 0.0
    %1426 = vmatmul.mubr.f32.gmra.mrb[0].mxu0 %v1344
    %v1427 = vpop.f32.mrb[0].mxu0
    %v1428 = vadd.f32 %v1332, %v1427
    %v1429 = vpop.f32.mrb[0].mxu0
    %1430 = vdwg.mxu0
    %v1431 = vrot.slane %v1221, 2
    %v1432 = vrot.slane %v1222, 2
    %v1433 = vsel %vm487, %v1431, %v1432
    %v1434 = vrot.slane %v1223, 2
    %v1435 = vsel %vm487, %v1432, %v1434
    %v1436 = vrot.slane %v1224, 2
    %v1437 = vsel %vm487, %v1434, %v1436
    %v1439 = vrot.slane %v983, 6
    %v1440 = vsel %vm292, %v1239, %v1439
    %v1442 = vsel %vm297, %v1433, 0
    %v1444 = vsel %vm297, %v1435, 0
    %v1446 = vsel %vm297, %v1437, 0
    %v1448 = vsel %vm297, %v1436, 0
    %1450 = vmatprep.subr.mxu0 0.0
    %1451 = vmatpush1.msra.mxu0 %v1440
    %1452 = vmatprep.subr.mxu0 0.0
    %1453 = vmatpush1.msra.mxu0 0.0
    %1454 = vmatprep.subr.mxu0 0.0
    %1455 = vmatpush1.msra.mxu0 0.0
    %1456 = vmatprep.subr.mxu0 0.0
    %1457 = vmatpush1.msra.mxu0 0.0
    %1458 = vmatprep.subr.mxu0 0.0
    %1459 = vmatpush1.msra.mxu0 0.0
    %1460 = vmatprep.subr.mxu0 0.0
    %1461 = vmatpush1.msra.mxu0 0.0
    %1462 = vmatprep.subr.mxu0 0.0
    %1463 = vmatpush1.msra.mxu0 0.0
    %1464 = vmatprep.subr.mxu0 0.0
    %1465 = vmatpush1.msra.mxu0 0.0
    %1466 = vmatprep.subr.mxu0 0.0
    %1467 = vmatpush1.msra.mxu0 0.0
    %1468 = vmatprep.subr.mxu0 0.0
    %1469 = vmatpush1.msra.mxu0 0.0
    %1470 = vmatprep.subr.mxu0 0.0
    %1471 = vmatpush1.msra.mxu0 0.0
    %1472 = vmatprep.subr.mxu0 0.0
    %1473 = vmatpush1.msra.mxu0 0.0
    %1474 = vmatprep.subr.mxu0 0.0
    %1475 = vmatpush1.msra.mxu0 0.0
    %1476 = vmatprep.subr.mxu0 0.0
    %1477 = vmatpush1.msra.mxu0 0.0
    %1478 = vmatprep.subr.mxu0 0.0
    %1479 = vmatpush1.msra.mxu0 0.0
    %1480 = vmatprep.subr.mxu0 0.0
    %1481 = vmatpush1.msra.mxu0 0.0
    %1482 = vmatprep.subr.mxu0 0.0
    %1483 = vmatpush1.msra.mxu0 0.0
    %1484 = vmatprep.subr.mxu0 0.0
    %1485 = vmatpush1.msra.mxu0 0.0
    %1486 = vmatprep.subr.mxu0 0.0
    %1487 = vmatpush1.msra.mxu0 0.0
    %1488 = vmatprep.subr.mxu0 0.0
    %1489 = vmatpush1.msra.mxu0 0.0
    %1490 = vmatprep.subr.mxu0 0.0
    %1491 = vmatpush1.msra.mxu0 0.0
    %1492 = vmatprep.subr.mxu0 0.0
    %1493 = vmatpush1.msra.mxu0 0.0
    %1494 = vmatprep.subr.mxu0 0.0
    %1495 = vmatpush1.msra.mxu0 0.0
    %1496 = vmatprep.subr.mxu0 0.0
    %1497 = vmatpush1.msra.mxu0 0.0
    %1498 = vmatprep.subr.mxu0 0.0
    %1499 = vmatpush1.msra.mxu0 0.0
    %1500 = vmatprep.subr.mxu0 0.0
    %1501 = vmatpush1.msra.mxu0 0.0
    %1502 = vmatprep.subr.mxu0 0.0
    %1503 = vmatpush1.msra.mxu0 0.0
    %1504 = vmatprep.subr.mxu0 0.0
    %1505 = vmatpush1.msra.mxu0 0.0
    %1506 = vmatprep.subr.mxu0 0.0
    %1507 = vmatpush1.msra.mxu0 0.0
    %1508 = vmatprep.subr.mxu0 0.0
    %1509 = vmatpush1.msra.mxu0 0.0
    %1510 = vmatprep.subr.mxu0 0.0
    %1511 = vmatpush1.msra.mxu0 0.0
    %1512 = vmatprep.subr.mxu0 0.0
    %1513 = vmatpush1.msra.mxu0 0.0
    %1514 = vmatprep.mubr.f32.mxu0 0.0
    %1515 = vmatmul.mubr.f32.gmra.mrb[0].mxu0 %v1442
    %v1516 = vpop.f32.mrb[0].mxu0
    %v1517 = vadd.f32 0.0, %v1516
    %v1518 = vpop.f32.mrb[0].mxu0
    %1519 = vmatprep.mubr.f32.mxu0 0.0
    %1520 = vmatmul.mubr.f32.gmra.mrb[0].mxu0 %v1444
    %v1521 = vpop.f32.mrb[0].mxu0
    %v1522 = vadd.f32 0.0, %v1521
    %v1523 = vpop.f32.mrb[0].mxu0
    %1524 = vmatprep.mubr.f32.mxu0 0.0
    %1525 = vmatmul.mubr.f32.gmra.mrb[0].mxu0 %v1446
    %v1526 = vpop.f32.mrb[0].mxu0
    %v1527 = vadd.f32 0.0, %v1526
    %v1528 = vpop.f32.mrb[0].mxu0
    %1529 = vmatprep.mubr.f32.mxu0 0.0
    %1530 = vmatmul.mubr.f32.gmra.mrb[0].mxu0 %v1448
    %v1531 = vpop.f32.mrb[0].mxu0
    %v1532 = vadd.f32 0.0, %v1531
    %v1533 = vpop.f32.mrb[0].mxu0
    %1534 = vdwg.mxu0
    %v1535 = vadd.f32 %v1413, %v1517
    %v1536 = vadd.f32 %v1418, %v1522
    %v1537 = vadd.f32 %v1423, %v1527
    %v1538 = vadd.f32 %v1428, %v1532
    %v1539 = vlaneseq
    %v1540 = vshrl.u32 %v1539, 7
    %v1541 = vsub.s32 3, %v1540
    %v1542 = vrot.slane %v987, %v1541
    %v1543 = vadd.f32 %v1535, %v1542
    %v1544 = vadd.f32 %v1536, %v1542
    %v1545 = vadd.f32 %v1537, %v1542
    %v1546 = vadd.f32 %v1538, %v1542
    %v1547 = vmax.f32 %v1543, 0.0
    %v1548 = vmax.f32 %v1544, 0.0
    %v1549 = vmax.f32 %v1545, 0.0
    %v1550 = vmax.f32 %v1546, 0.0
    %v1551 = vlaneseq
    %v1552 = vshrl.u32 %v1551, 7
    %v1553 = vsub.s32 4, %v1552
    %v1554 = vrot.slane %v987, %v1553
    %v1555 = vmul.f32 %v1547, %v1554
    %v1556 = vmul.f32 %v1548, %v1554
    %v1557 = vmul.f32 %v1549, %v1554
    %v1558 = vmul.f32 %v1550, %v1554
    %v1559 = vlaneseq
    %v1560 = vshrl.u32 %v1559, 7
    %v1561 = vsub.s32 5, %v1560
    %v1562 = vrot.slane %v987, %v1561
    %v1563 = vadd.f32 %v1555, %v1562
    %v1564 = vadd.f32 %v1556, %v1562
    %v1565 = vadd.f32 %v1557, %v1562
    %v1566 = vadd.f32 %v1558, %v1562
    %v1571 = vrot.slane %v1563, 1
    %v1572 = vrot.slane %v1564, 1
    %v1573 = vsel %vm49, %v1571, %v1572
    %v1574 = vrot.slane %v1565, 1
    %v1575 = vsel %vm49, %v1572, %v1574
    %v1576 = vrot.slane %v1566, 1
    %v1577 = vsel %vm49, %v1574, %v1576
    %v1580 = vrot.slane %v984, 6
    %v1581 = vrot.slane %v985, 6
    %v1582 = vsel %vm292, %v1580, %v1581
    %v1584 = vsel %vm297, %v1573, 0
    %v1586 = vsel %vm297, %v1575, 0
    %v1588 = vsel %vm297, %v1577, 0
    %v1590 = vsel %vm297, %v1576, 0
    %1592 = vmatprep.subr.mxu0 0.0
    %1593 = vmatpush1.msra.mxu0 %v1582
    %1594 = vmatprep.subr.mxu0 0.0
    %1595 = vmatpush1.msra.mxu0 0.0
    %1596 = vmatprep.subr.mxu0 0.0
    %1597 = vmatpush1.msra.mxu0 0.0
    %1598 = vmatprep.subr.mxu0 0.0
    %1599 = vmatpush1.msra.mxu0 0.0
    %1600 = vmatprep.subr.mxu0 0.0
    %1601 = vmatpush1.msra.mxu0 0.0
    %1602 = vmatprep.subr.mxu0 0.0
    %1603 = vmatpush1.msra.mxu0 0.0
    %1604 = vmatprep.subr.mxu0 0.0
    %1605 = vmatpush1.msra.mxu0 0.0
    %1606 = vmatprep.subr.mxu0 0.0
    %1607 = vmatpush1.msra.mxu0 0.0
    %1608 = vmatprep.subr.mxu0 0.0
    %1609 = vmatpush1.msra.mxu0 0.0
    %1610 = vmatprep.subr.mxu0 0.0
    %1611 = vmatpush1.msra.mxu0 0.0
    %1612 = vmatprep.subr.mxu0 0.0
    %1613 = vmatpush1.msra.mxu0 0.0
    %1614 = vmatprep.subr.mxu0 0.0
    %1615 = vmatpush1.msra.mxu0 0.0
    %1616 = vmatprep.subr.mxu0 0.0
    %1617 = vmatpush1.msra.mxu0 0.0
    %1618 = vmatprep.subr.mxu0 0.0
    %1619 = vmatpush1.msra.mxu0 0.0
    %1620 = vmatprep.subr.mxu0 0.0
    %1621 = vmatpush1.msra.mxu0 0.0
    %1622 = vmatprep.subr.mxu0 0.0
    %1623 = vmatpush1.msra.mxu0 0.0
    %1624 = vmatprep.subr.mxu0 0.0
    %1625 = vmatpush1.msra.mxu0 0.0
    %1626 = vmatprep.subr.mxu0 0.0
    %1627 = vmatpush1.msra.mxu0 0.0
    %1628 = vmatprep.subr.mxu0 0.0
    %1629 = vmatpush1.msra.mxu0 0.0
    %1630 = vmatprep.subr.mxu0 0.0
    %1631 = vmatpush1.msra.mxu0 0.0
    %1632 = vmatprep.subr.mxu0 0.0
    %1633 = vmatpush1.msra.mxu0 0.0
    %1634 = vmatprep.subr.mxu0 0.0
    %1635 = vmatpush1.msra.mxu0 0.0
    %1636 = vmatprep.subr.mxu0 0.0
    %1637 = vmatpush1.msra.mxu0 0.0
    %1638 = vmatprep.subr.mxu0 0.0
    %1639 = vmatpush1.msra.mxu0 0.0
    %1640 = vmatprep.subr.mxu0 0.0
    %1641 = vmatpush1.msra.mxu0 0.0
    %1642 = vmatprep.subr.mxu0 0.0
    %1643 = vmatpush1.msra.mxu0 0.0
    %1644 = vmatprep.subr.mxu0 0.0
    %1645 = vmatpush1.msra.mxu0 0.0
    %1646 = vmatprep.subr.mxu0 0.0
    %1647 = vmatpush1.msra.mxu0 0.0
    %1648 = vmatprep.subr.mxu0 0.0
    %1649 = vmatpush1.msra.mxu0 0.0
    %1650 = vmatprep.subr.mxu0 0.0
    %1651 = vmatpush1.msra.mxu0 0.0
    %1652 = vmatprep.subr.mxu0 0.0
    %1653 = vmatpush1.msra.mxu0 0.0
    %1654 = vmatprep.subr.mxu0 0.0
    %1655 = vmatpush1.msra.mxu0 0.0
    %1656 = vmatprep.mubr.f32.mxu0 0.0
    %1657 = vmatmul.mubr.f32.gmra.mrb[0].mxu0 %v1584
    %v1658 = vpop.f32.mrb[0].mxu0
    %v1659 = vadd.f32 0.0, %v1658
    %v1660 = vpop.f32.mrb[0].mxu0
    %1661 = vmatprep.mubr.f32.mxu0 0.0
    %1662 = vmatmul.mubr.f32.gmra.mrb[0].mxu0 %v1586
    %v1663 = vpop.f32.mrb[0].mxu0
    %v1664 = vadd.f32 0.0, %v1663
    %v1665 = vpop.f32.mrb[0].mxu0
    %1666 = vmatprep.mubr.f32.mxu0 0.0
    %1667 = vmatmul.mubr.f32.gmra.mrb[0].mxu0 %v1588
    %v1668 = vpop.f32.mrb[0].mxu0
    %v1669 = vadd.f32 0.0, %v1668
    %v1670 = vpop.f32.mrb[0].mxu0
    %1671 = vmatprep.mubr.f32.mxu0 0.0
    %1672 = vmatmul.mubr.f32.gmra.mrb[0].mxu0 %v1590
    %v1673 = vpop.f32.mrb[0].mxu0
    %v1674 = vadd.f32 0.0, %v1673
    %v1675 = vpop.f32.mrb[0].mxu0
    %1676 = vdwg.mxu0
    %v1677 = vsel %vm292, %v1439, %v1580
    %v1679 = vsel %vm297, %v1563, 0
    %v1681 = vsel %vm297, %v1564, 0
    %v1683 = vsel %vm297, %v1565, 0
    %v1685 = vsel %vm297, %v1566, 0
    %1687 = vmatprep.subr.mxu0 0.0
    %1688 = vmatpush1.msra.mxu0 %v1677
    %1689 = vmatprep.subr.mxu0 0.0
    %1690 = vmatpush1.msra.mxu0 0.0
    %1691 = vmatprep.subr.mxu0 0.0
    %1692 = vmatpush1.msra.mxu0 0.0
    %1693 = vmatprep.subr.mxu0 0.0
    %1694 = vmatpush1.msra.mxu0 0.0
    %1695 = vmatprep.subr.mxu0 0.0
    %1696 = vmatpush1.msra.mxu0 0.0
    %1697 = vmatprep.subr.mxu0 0.0
    %1698 = vmatpush1.msra.mxu0 0.0
    %1699 = vmatprep.subr.mxu0 0.0
    %1700 = vmatpush1.msra.mxu0 0.0
    %1701 = vmatprep.subr.mxu0 0.0
    %1702 = vmatpush1.msra.mxu0 0.0
    %1703 = vmatprep.subr.mxu0 0.0
    %1704 = vmatpush1.msra.mxu0 0.0
    %1705 = vmatprep.subr.mxu0 0.0
    %1706 = vmatpush1.msra.mxu0 0.0
    %1707 = vmatprep.subr.mxu0 0.0
    %1708 = vmatpush1.msra.mxu0 0.0
    %1709 = vmatprep.subr.mxu0 0.0
    %1710 = vmatpush1.msra.mxu0 0.0
    %1711 = vmatprep.subr.mxu0 0.0
    %1712 = vmatpush1.msra.mxu0 0.0
    %1713 = vmatprep.subr.mxu0 0.0
    %1714 = vmatpush1.msra.mxu0 0.0
    %1715 = vmatprep.subr.mxu0 0.0
    %1716 = vmatpush1.msra.mxu0 0.0
    %1717 = vmatprep.subr.mxu0 0.0
    %1718 = vmatpush1.msra.mxu0 0.0
    %1719 = vmatprep.subr.mxu0 0.0
    %1720 = vmatpush1.msra.mxu0 0.0
    %1721 = vmatprep.subr.mxu0 0.0
    %1722 = vmatpush1.msra.mxu0 0.0
    %1723 = vmatprep.subr.mxu0 0.0
    %1724 = vmatpush1.msra.mxu0 0.0
    %1725 = vmatprep.subr.mxu0 0.0
    %1726 = vmatpush1.msra.mxu0 0.0
    %1727 = vmatprep.subr.mxu0 0.0
    %1728 = vmatpush1.msra.mxu0 0.0
    %1729 = vmatprep.subr.mxu0 0.0
    %1730 = vmatpush1.msra.mxu0 0.0
    %1731 = vmatprep.subr.mxu0 0.0
    %1732 = vmatpush1.msra.mxu0 0.0
    %1733 = vmatprep.subr.mxu0 0.0
    %1734 = vmatpush1.msra.mxu0 0.0
    %1735 = vmatprep.subr.mxu0 0.0
    %1736 = vmatpush1.msra.mxu0 0.0
    %1737 = vmatprep.subr.mxu0 0.0
    %1738 = vmatpush1.msra.mxu0 0.0
    %1739 = vmatprep.subr.mxu0 0.0
    %1740 = vmatpush1.msra.mxu0 0.0
    %1741 = vmatprep.subr.mxu0 0.0
    %1742 = vmatpush1.msra.mxu0 0.0
    %1743 = vmatprep.subr.mxu0 0.0
    %1744 = vmatpush1.msra.mxu0 0.0
    %1745 = vmatprep.subr.mxu0 0.0
    %1746 = vmatpush1.msra.mxu0 0.0
    %1747 = vmatprep.subr.mxu0 0.0
    %1748 = vmatpush1.msra.mxu0 0.0
    %1749 = vmatprep.subr.mxu0 0.0
    %1750 = vmatpush1.msra.mxu0 0.0
    %1751 = vmatprep.mubr.f32.mxu0 0.0
    %1752 = vmatmul.mubr.f32.gmra.mrb[0].mxu0 %v1679
    %v1753 = vpop.f32.mrb[0].mxu0
    %v1754 = vadd.f32 %v1659, %v1753
    %v1755 = vpop.f32.mrb[0].mxu0
    %1756 = vmatprep.mubr.f32.mxu0 0.0
    %1757 = vmatmul.mubr.f32.gmra.mrb[0].mxu0 %v1681
    %v1758 = vpop.f32.mrb[0].mxu0
    %v1759 = vadd.f32 %v1664, %v1758
    %v1760 = vpop.f32.mrb[0].mxu0
    %1761 = vmatprep.mubr.f32.mxu0 0.0
    %1762 = vmatmul.mubr.f32.gmra.mrb[0].mxu0 %v1683
    %v1763 = vpop.f32.mrb[0].mxu0
    %v1764 = vadd.f32 %v1669, %v1763
    %v1765 = vpop.f32.mrb[0].mxu0
    %1766 = vmatprep.mubr.f32.mxu0 0.0
    %1767 = vmatmul.mubr.f32.gmra.mrb[0].mxu0 %v1685
    %v1768 = vpop.f32.mrb[0].mxu0
    %v1769 = vadd.f32 %v1674, %v1768
    %v1770 = vpop.f32.mrb[0].mxu0
    %1771 = vdwg.mxu0
    %v1772 = vlaneseq
    %v1773 = vshrl.u32 %v1772, 7
    %v1774 = vsub.s32 6, %v1773
    %v1775 = vrot.slane %v987, %v1774
    %v1776 = vadd.f32 %v1754, %v1775
    %v1777 = vadd.f32 %v1759, %v1775
    %v1778 = vadd.f32 %v1764, %v1775
    %v1779 = vadd.f32 %v1769, %v1775
    %v1780 = vmax.f32 %v1776, 0.0
    %v1781 = vmax.f32 %v1777, 0.0
    %v1782 = vmax.f32 %v1778, 0.0
    %v1783 = vmax.f32 %v1779, 0.0
    %v1784 = vlaneseq
    %v1785 = vshrl.u32 %v1784, 7
    %v1786 = vsub.s32 7, %v1785
    %v1787 = vrot.slane %v987, %v1786
    %v1788 = vmul.f32 %v1780, %v1787
    %v1789 = vmul.f32 %v1781, %v1787
    %v1790 = vmul.f32 %v1782, %v1787
    %v1791 = vmul.f32 %v1783, %v1787
    %v1792 = vlaneseq
    %v1793 = vshrl.u32 %v1792, 7
    %v1794 = vsub.s32 0, %v1793
    %v1795 = vrot.slane %v988, %v1794
    %v1796 = vadd.f32 %v1788, %v1795
    %v1797 = vadd.f32 %v1789, %v1795
    %v1798 = vadd.f32 %v1790, %v1795
    %v1799 = vadd.f32 %v1791, %v1795
    %1802 = vrot.lane.b32.xlu0 %v1796, 1
    %v1803 = vpop.permute.xlu0 %1802
    %1804 = vrot.lane.b32.xlu0 %v1797, 1
    %v1805 = vpop.permute.xlu0 %1804
    %vm1808 = vcmask 15368
    %1809 = vst.msk [vmem:[#allocation2] sm:$0xff] %vm1808, %v1803
    %vm1810 = vcmask 11272
    %1811 = vst.msk [vmem:[#allocation2 + $0x8] sm:$0xf] %vm1810, %v1805
    %1812 = vst.msk [vmem:[#allocation2 + $0xc] sm:$0xff] %vm1808, %v1796
    %1813 = vst.msk [vmem:[#allocation2 + $0x14] sm:$0xf] %vm1810, %v1797
    %1814 = vrot.lane.b32.xlu0 %v1796, 127
    %v1815 = vpop.permute.xlu0 %1814
    %1816 = vrot.lane.b32.xlu0 %v1797, 127
    %v1817 = vpop.permute.xlu0 %1816
    %1820 = vst.msk [vmem:[#allocation2 + $0x18] sm:$0xff] %vm1808, %v1815
    %1821 = vst.msk [vmem:[#allocation2 + $0x20] sm:$0xf] %vm1810, %v1817
    %1822 = vrot.lane.b32.xlu0 %v1796, 126
    %v1823 = vpop.permute.xlu0 %1822
    %1824 = vrot.lane.b32.xlu0 %v1797, 126
    %v1825 = vpop.permute.xlu0 %1824
    %1828 = vst.msk [vmem:[#allocation2 + $0x24] sm:$0xff] %vm1808, %v1823
    %1829 = vst.msk [vmem:[#allocation2 + $0x2c] sm:$0xf] %vm1810, %v1825
    %1830 = vrot.lane.b32.xlu0 %v1796, 125
    %v1831 = vpop.permute.xlu0 %1830
    %1832 = vrot.lane.b32.xlu0 %v1797, 125
    %v1833 = vpop.permute.xlu0 %1832
    %1836 = vst.msk [vmem:[#allocation2 + $0x30] sm:$0xff] %vm1808, %v1831
    %1837 = vst.msk [vmem:[#allocation2 + $0x38] sm:$0xf] %vm1810, %v1833
    %1838 = vrot.lane.b32.xlu0 %v1796, 124
    %v1839 = vpop.permute.xlu0 %1838
    %1840 = vrot.lane.b32.xlu0 %v1797, 124
    %v1841 = vpop.permute.xlu0 %1840
    %1844 = vst.msk [vmem:[#allocation2 + $0x3c] sm:$0xff] %vm1808, %v1839
    %1845 = vst.msk [vmem:[#allocation2 + $0x44] sm:$0xf] %vm1810, %v1841
    %1846 = vrot.lane.b32.xlu0 %v1796, 123
    %v1847 = vpop.permute.xlu0 %1846
    %1848 = vrot.lane.b32.xlu0 %v1797, 123
    %v1849 = vpop.permute.xlu0 %1848
    %1852 = vst.msk [vmem:[#allocation2 + $0x48] sm:$0xff] %vm1808, %v1847
    %1853 = vst.msk [vmem:[#allocation2 + $0x50] sm:$0xf] %vm1810, %v1849
    %1854 = vrot.lane.b32.xlu0 %v1796, 122
    %v1855 = vpop.permute.xlu0 %1854
    %1856 = vrot.lane.b32.xlu0 %v1797, 122
    %v1857 = vpop.permute.xlu0 %1856
    %1860 = vst.msk [vmem:[#allocation2 + $0x54] sm:$0xff] %vm1808, %v1855
    %1861 = vst.msk [vmem:[#allocation2 + $0x5c] sm:$0xf] %vm1810, %v1857
    %1864 = vrot.lane.b32.xlu0 %v1798, 1
    %v1865 = vpop.permute.xlu0 %1864
    %1866 = vrot.lane.b32.xlu0 %v1799, 1
    %v1867 = vpop.permute.xlu0 %1866
    %1870 = vst.msk [vmem:[#allocation2 + $0x60] sm:$0xff] %vm1808, %v1865
    %1871 = vst.msk [vmem:[#allocation2 + $0x68] sm:$0xf] %vm1810, %v1867
    %1872 = vst.msk [vmem:[#allocation2 + $0x6c] sm:$0xff] %vm1808, %v1798
    %1873 = vst.msk [vmem:[#allocation2 + $0x74] sm:$0xf] %vm1810, %v1799
    %1874 = vrot.lane.b32.xlu0 %v1798, 127
    %v1875 = vpop.permute.xlu0 %1874
    %1876 = vrot.lane.b32.xlu0 %v1799, 127
    %v1877 = vpop.permute.xlu0 %1876
    %1880 = vst.msk [vmem:[#allocation2 + $0x78] sm:$0xff] %vm1808, %v1875
    %1881 = vst.msk [vmem:[#allocation2 + $0x80] sm:$0xf] %vm1810, %v1877
    %1882 = vrot.lane.b32.xlu0 %v1798, 126
    %v1883 = vpop.permute.xlu0 %1882
    %1884 = vrot.lane.b32.xlu0 %v1799, 126
    %v1885 = vpop.permute.xlu0 %1884
    %1888 = vst.msk [vmem:[#allocation2 + $0x84] sm:$0xff] %vm1808, %v1883
    %1889 = vst.msk [vmem:[#allocation2 + $0x8c] sm:$0xf] %vm1810, %v1885
    %1890 = vrot.lane.b32.xlu0 %v1798, 125
    %v1891 = vpop.permute.xlu0 %1890
    %1892 = vrot.lane.b32.xlu0 %v1799, 125
    %v1893 = vpop.permute.xlu0 %1892
    %1896 = vst.msk [vmem:[#allocation2 + $0x90] sm:$0xff] %vm1808, %v1891
    %1897 = vst.msk [vmem:[#allocation2 + $0x98] sm:$0xf] %vm1810, %v1893
    %1898 = vrot.lane.b32.xlu0 %v1798, 124
    %v1899 = vpop.permute.xlu0 %1898
    %1900 = vrot.lane.b32.xlu0 %v1799, 124
    %v1901 = vpop.permute.xlu0 %1900
    %1904 = vst.msk [vmem:[#allocation2 + $0x9c] sm:$0xff] %vm1808, %v1899
    %1905 = vst.msk [vmem:[#allocation2 + $0xa4] sm:$0xf] %vm1810, %v1901
    %1906 = vrot.lane.b32.xlu0 %v1798, 123
    %v1907 = vpop.permute.xlu0 %1906
    %1908 = vrot.lane.b32.xlu0 %v1799, 123
    %v1909 = vpop.permute.xlu0 %1908
    %1912 = vst.msk [vmem:[#allocation2 + $0xa8] sm:$0xff] %vm1808, %v1907
    %1913 = vst.msk [vmem:[#allocation2 + $0xb0] sm:$0xf] %vm1810, %v1909
    %1914 = vrot.lane.b32.xlu0 %v1798, 122
    %v1915 = vpop.permute.xlu0 %1914
    %1916 = vrot.lane.b32.xlu0 %v1799, 122
    %v1917 = vpop.permute.xlu0 %1916
    %1920 = vst.msk [vmem:[#allocation2 + $0xb4] sm:$0xff] %vm1808, %v1915
    %1921 = vst.msk [vmem:[#allocation2 + $0xbc] sm:$0xf] %vm1810, %v1917
    %v1922 = vld [vmem:[%s3] sm:$0xff]
    %v1923 = vld [vmem:[%s3 + $0x8] sm:$0xff]
    %v1924 = vld [vmem:[%s3 + $0x10] sm:$0xff]
    %v1925 = vld [vmem:[%s3 + $0x18] sm:$0xff]
    %v1926 = vld [vmem:[%s3 + $0x20] sm:$0xff]
    %v1927 = vld [vmem:[%s3 + $0x28] sm:$0xf]
    %v1928 = vld [vmem:[%s4] sm:$0xff]
    %v1929 = vld [vmem:[%s4 + $0x8] sm:$0x1]
    %v1930 = vld [vmem:[#allocation2] sm:$0xff]
    %v1931 = vld [vmem:[#allocation2 + $0x8] sm:$0xff]
    %v1932 = vld [vmem:[#allocation2 + $0x10] sm:$0xff]
    %v1933 = vld [vmem:[#allocation2 + $0x18] sm:$0xff]
    %v1934 = vld [vmem:[#allocation2 + $0x20] sm:$0xff]
    %v1935 = vld [vmem:[#allocation2 + $0x28] sm:$0xff]
    %v1936 = vld [vmem:[#allocation2 + $0x30] sm:$0xff]
    %v1937 = vld [vmem:[#allocation2 + $0x38] sm:$0xff]
    %v1938 = vld [vmem:[#allocation2 + $0x40] sm:$0xff]
    %v1939 = vld [vmem:[#allocation2 + $0x48] sm:$0xff]
    %v1940 = vld [vmem:[#allocation2 + $0x50] sm:$0xff]
    %v1941 = vld [vmem:[#allocation2 + $0x58] sm:$0xff]
    %v1942 = vld [vmem:[#allocation2 + $0x60] sm:$0xff]
    %v1943 = vld [vmem:[#allocation2 + $0x68] sm:$0xff]
    %v1944 = vld [vmem:[#allocation2 + $0x70] sm:$0xff]
    %v1945 = vld [vmem:[#allocation2 + $0x78] sm:$0xff]
    %v1946 = vld [vmem:[#allocation2 + $0x80] sm:$0xff]
    %v1947 = vld [vmem:[#allocation2 + $0x88] sm:$0xff]
    %v1948 = vld [vmem:[#allocation2 + $0x90] sm:$0xff]
    %v1949 = vld [vmem:[#allocation2 + $0x98] sm:$0xff]
    %v1950 = vld [vmem:[#allocation2 + $0xa0] sm:$0xff]
    %v1951 = vld [vmem:[#allocation2 + $0xa8] sm:$0xff]
    %v1952 = vld [vmem:[#allocation2 + $0xb0] sm:$0xff]
    %v1953 = vld [vmem:[#allocation2 + $0xb8] sm:$0xff]
    %v1978 = vrot.slane %v1930, 1
    %v1979 = vrot.slane %v1931, 1
    %v1980 = vsel %vm49, %v1978, %v1979
    %v1981 = vrot.slane %v1932, 1
    %v1982 = vsel %vm49, %v1979, %v1981
    %v1983 = vrot.slane %v1933, 1
    %v1984 = vsel %vm49, %v1981, %v1983
    %v1985 = vrot.slane %v1934, 1
    %v1986 = vsel %vm49, %v1983, %v1985
    %v1987 = vrot.slane %v1935, 1
    %v1988 = vsel %vm49, %v1985, %v1987
    %v1989 = vrot.slane %v1936, 1
    %v1990 = vsel %vm49, %v1987, %v1989
    %v1991 = vrot.slane %v1937, 1
    %v1992 = vsel %vm49, %v1989, %v1991
    %v1993 = vrot.slane %v1938, 1
    %v1994 = vsel %vm49, %v1991, %v1993
    %v1995 = vrot.slane %v1939, 1
    %v1996 = vsel %vm49, %v1993, %v1995
    %v1997 = vrot.slane %v1940, 1
    %v1998 = vsel %vm49, %v1995, %v1997
    %v1999 = vrot.slane %v1941, 1
    %v2000 = vsel %vm49, %v1997, %v1999
    %v2001 = vrot.slane %v1942, 1
    %v2002 = vsel %vm49, %v1999, %v2001
    %v2003 = vrot.slane %v1943, 1
    %v2004 = vsel %vm49, %v2001, %v2003
    %v2005 = vrot.slane %v1944, 1
    %v2006 = vsel %vm49, %v2003, %v2005
    %v2007 = vrot.slane %v1945, 1
    %v2008 = vsel %vm49, %v2005, %v2007
    %v2009 = vrot.slane %v1946, 1
    %v2010 = vsel %vm49, %v2007, %v2009
    %v2011 = vrot.slane %v1947, 1
    %v2012 = vsel %vm49, %v2009, %v2011
    %v2013 = vrot.slane %v1948, 1
    %v2014 = vsel %vm49, %v2011, %v2013
    %v2015 = vrot.slane %v1949, 1
    %v2016 = vsel %vm49, %v2013, %v2015
    %v2017 = vrot.slane %v1950, 1
    %v2018 = vsel %vm49, %v2015, %v2017
    %v2019 = vrot.slane %v1951, 1
    %v2020 = vsel %vm49, %v2017, %v2019
    %v2021 = vrot.slane %v1952, 1
    %v2022 = vsel %vm49, %v2019, %v2021
    %v2023 = vrot.slane %v1953, 1
    %v2024 = vsel %vm49, %v2021, %v2023
    %v2026 = vrot.slane %v1922, 2
    %vm2027 = vcmask 15360
    %v2028 = vsel %vm2027, %v1980, 0
    %v2030 = vsel %vm2027, %v1982, 0
    %v2032 = vsel %vm2027, %v1984, 0
    %v2034 = vsel %vm2027, %v1986, 0
    %v2036 = vsel %vm2027, %v1988, 0
    %v2038 = vsel %vm2027, %v1990, 0
    %v2040 = vsel %vm2027, %v1992, 0
    %v2042 = vsel %vm2027, %v1994, 0
    %v2044 = vsel %vm2027, %v1996, 0
    %v2046 = vsel %vm2027, %v1998, 0
    %v2048 = vsel %vm2027, %v2000, 0
    %v2050 = vsel %vm2027, %v2002, 0
    %v2052 = vsel %vm2027, %v2004, 0
    %v2054 = vsel %vm2027, %v2006, 0
    %v2056 = vsel %vm2027, %v2008, 0
    %v2058 = vsel %vm2027, %v2010, 0
    %v2060 = vsel %vm2027, %v2012, 0
    %v2062 = vsel %vm2027, %v2014, 0
    %v2064 = vsel %vm2027, %v2016, 0
    %v2066 = vsel %vm2027, %v2018, 0
    %v2068 = vsel %vm2027, %v2020, 0
    %v2070 = vsel %vm2027, %v2022, 0
    %v2072 = vsel %vm2027, %v2024, 0
    %v2074 = vsel %vm2027, %v2023, 0
    %v2076 = vsel %vm292, %v2026, 0
    %2078 = vmatprep.subr.mxu0 0.0
    %2079 = vmatpush1.msra.mxu0 %v2076
    %2080 = vmatprep.subr.mxu0 0.0
    %2081 = vmatpush1.msra.mxu0 0.0
    %2082 = vmatprep.subr.mxu0 0.0
    %2083 = vmatpush1.msra.mxu0 0.0
    %2084 = vmatprep.subr.mxu0 0.0
    %2085 = vmatpush1.msra.mxu0 0.0
    %2086 = vmatprep.subr.mxu0 0.0
    %2087 = vmatpush1.msra.mxu0 0.0
    %2088 = vmatprep.subr.mxu0 0.0
    %2089 = vmatpush1.msra.mxu0 0.0
    %2090 = vmatprep.subr.mxu0 0.0
    %2091 = vmatpush1.msra.mxu0 0.0
    %2092 = vmatprep.subr.mxu0 0.0
    %2093 = vmatpush1.msra.mxu0 0.0
    %2094 = vmatprep.subr.mxu0 0.0
    %2095 = vmatpush1.msra.mxu0 0.0
    %2096 = vmatprep.subr.mxu0 0.0
    %2097 = vmatpush1.msra.mxu0 0.0
    %2098 = vmatprep.subr.mxu0 0.0
    %2099 = vmatpush1.msra.mxu0 0.0
    %2100 = vmatprep.subr.mxu0 0.0
    %2101 = vmatpush1.msra.mxu0 0.0
    %2102 = vmatprep.subr.mxu0 0.0
    %2103 = vmatpush1.msra.mxu0 0.0
    %2104 = vmatprep.subr.mxu0 0.0
    %2105 = vmatpush1.msra.mxu0 0.0
    %2106 = vmatprep.subr.mxu0 0.0
    %2107 = vmatpush1.msra.mxu0 0.0
    %2108 = vmatprep.subr.mxu0 0.0
    %2109 = vmatpush1.msra.mxu0 0.0
    %2110 = vmatprep.subr.mxu0 0.0
    %2111 = vmatpush1.msra.mxu0 0.0
    %2112 = vmatprep.subr.mxu0 0.0
    %2113 = vmatpush1.msra.mxu0 0.0
    %2114 = vmatprep.subr.mxu0 0.0
    %2115 = vmatpush1.msra.mxu0 0.0
    %2116 = vmatprep.subr.mxu0 0.0
    %2117 = vmatpush1.msra.mxu0 0.0
    %2118 = vmatprep.subr.mxu0 0.0
    %2119 = vmatpush1.msra.mxu0 0.0
    %2120 = vmatprep.subr.mxu0 0.0
    %2121 = vmatpush1.msra.mxu0 0.0
    %2122 = vmatprep.subr.mxu0 0.0
    %2123 = vmatpush1.msra.mxu0 0.0
    %2124 = vmatprep.subr.mxu0 0.0
    %2125 = vmatpush1.msra.mxu0 0.0
    %2126 = vmatprep.subr.mxu0 0.0
    %2127 = vmatpush1.msra.mxu0 0.0
    %2128 = vmatprep.subr.mxu0 0.0
    %2129 = vmatpush1.msra.mxu0 0.0
    %2130 = vmatprep.subr.mxu0 0.0
    %2131 = vmatpush1.msra.mxu0 0.0
    %2132 = vmatprep.subr.mxu0 0.0
    %2133 = vmatpush1.msra.mxu0 0.0
    %2134 = vmatprep.subr.mxu0 0.0
    %2135 = vmatpush1.msra.mxu0 0.0
    %2136 = vmatprep.subr.mxu0 0.0
    %2137 = vmatpush1.msra.mxu0 0.0
    %2138 = vmatprep.subr.mxu0 0.0
    %2139 = vmatpush1.msra.mxu0 0.0
    %2140 = vmatprep.subr.mxu0 0.0
    %2141 = vmatpush1.msra.mxu0 0.0
    %2142 = vmatprep.mubr.f32.mxu0 0.0
    %2143 = vmatmul.mubr.f32.gmra.mrb[0].mxu0 %v2028
    %v2144 = vpop.f32.mrb[0].mxu0
    %v2145 = vadd.f32 0.0, %v2144
    %v2146 = vpop.f32.mrb[0].mxu0
    %2147 = vmatprep.mubr.f32.mxu0 0.0
    %2148 = vmatmul.mubr.f32.gmra.mrb[0].mxu0 %v2030
    %v2149 = vpop.f32.mrb[0].mxu0
    %v2150 = vadd.f32 0.0, %v2149
    %v2151 = vpop.f32.mrb[0].mxu0
    %2152 = vmatprep.mubr.f32.mxu0 0.0
    %2153 = vmatmul.mubr.f32.gmra.mrb[0].mxu0 %v2032
    %v2154 = vpop.f32.mrb[0].mxu0
    %v2155 = vadd.f32 0.0, %v2154
    %v2156 = vpop.f32.mrb[0].mxu0
    %2157 = vmatprep.mubr.f32.mxu0 0.0
    %2158 = vmatmul.mubr.f32.gmra.mrb[0].mxu0 %v2034
    %v2159 = vpop.f32.mrb[0].mxu0
    %v2160 = vadd.f32 0.0, %v2159
    %v2161 = vpop.f32.mrb[0].mxu0
    %2162 = vmatprep.mubr.f32.mxu0 0.0
    %2163 = vmatmul.mubr.f32.gmra.mrb[0].mxu0 %v2036
    %v2164 = vpop.f32.mrb[0].mxu0
    %v2165 = vadd.f32 0.0, %v2164
    %v2166 = vpop.f32.mrb[0].mxu0
    %2167 = vmatprep.mubr.f32.mxu0 0.0
    %2168 = vmatmul.mubr.f32.gmra.mrb[0].mxu0 %v2038
    %v2169 = vpop.f32.mrb[0].mxu0
    %v2170 = vadd.f32 0.0, %v2169
    %v2171 = vpop.f32.mrb[0].mxu0
    %2172 = vmatprep.mubr.f32.mxu0 0.0
    %2173 = vmatmul.mubr.f32.gmra.mrb[0].mxu0 %v2040
    %v2174 = vpop.f32.mrb[0].mxu0
    %v2175 = vadd.f32 0.0, %v2174
    %v2176 = vpop.f32.mrb[0].mxu0
    %2177 = vmatprep.mubr.f32.mxu0 0.0
    %2178 = vmatmul.mubr.f32.gmra.mrb[0].mxu0 %v2042
    %v2179 = vpop.f32.mrb[0].mxu0
    %v2180 = vadd.f32 0.0, %v2179
    %v2181 = vpop.f32.mrb[0].mxu0
    %2182 = vmatprep.mubr.f32.mxu0 0.0
    %2183 = vmatmul.mubr.f32.gmra.mrb[0].mxu0 %v2044
    %v2184 = vpop.f32.mrb[0].mxu0
    %v2185 = vadd.f32 0.0, %v2184
    %v2186 = vpop.f32.mrb[0].mxu0
    %2187 = vmatprep.mubr.f32.mxu0 0.0
    %2188 = vmatmul.mubr.f32.gmra.mrb[0].mxu0 %v2046
    %v2189 = vpop.f32.mrb[0].mxu0
    %v2190 = vadd.f32 0.0, %v2189
    %v2191 = vpop.f32.mrb[0].mxu0
    %2192 = vmatprep.mubr.f32.mxu0 0.0
    %2193 = vmatmul.mubr.f32.gmra.mrb[0].mxu0 %v2048
    %v2194 = vpop.f32.mrb[0].mxu0
    %v2195 = vadd.f32 0.0, %v2194
    %v2196 = vpop.f32.mrb[0].mxu0
    %2197 = vmatprep.mubr.f32.mxu0 0.0
    %2198 = vmatmul.mubr.f32.gmra.mrb[0].mxu0 %v2050
    %v2199 = vpop.f32.mrb[0].mxu0
    %v2200 = vadd.f32 0.0, %v2199
    %v2201 = vpop.f32.mrb[0].mxu0
    %2202 = vmatprep.mubr.f32.mxu0 0.0
    %2203 = vmatmul.mubr.f32.gmra.mrb[0].mxu0 %v2052
    %v2204 = vpop.f32.mrb[0].mxu0
    %v2205 = vadd.f32 0.0, %v2204
    %v2206 = vpop.f32.mrb[0].mxu0
    %2207 = vmatprep.mubr.f32.mxu0 0.0
    %2208 = vmatmul.mubr.f32.gmra.mrb[0].mxu0 %v2054
    %v2209 = vpop.f32.mrb[0].mxu0
    %v2210 = vadd.f32 0.0, %v2209
    %v2211 = vpop.f32.mrb[0].mxu0
    %2212 = vmatprep.mubr.f32.mxu0 0.0
    %2213 = vmatmul.mubr.f32.gmra.mrb[0].mxu0 %v2056
    %v2214 = vpop.f32.mrb[0].mxu0
    %v2215 = vadd.f32 0.0, %v2214
    %v2216 = vpop.f32.mrb[0].mxu0
    %2217 = vmatprep.mubr.f32.mxu0 0.0
    %2218 = vmatmul.mubr.f32.gmra.mrb[0].mxu0 %v2058
    %v2219 = vpop.f32.mrb[0].mxu0
    %v2220 = vadd.f32 0.0, %v2219
    %v2221 = vpop.f32.mrb[0].mxu0
    %2222 = vmatprep.mubr.f32.mxu0 0.0
    %2223 = vmatmul.mubr.f32.gmra.mrb[0].mxu0 %v2060
    %v2224 = vpop.f32.mrb[0].mxu0
    %v2225 = vadd.f32 0.0, %v2224
    %v2226 = vpop.f32.mrb[0].mxu0
    %2227 = vmatprep.mubr.f32.mxu0 0.0
    %2228 = vmatmul.mubr.f32.gmra.mrb[0].mxu0 %v2062
    %v2229 = vpop.f32.mrb[0].mxu0
    %v2230 = vadd.f32 0.0, %v2229
    %v2231 = vpop.f32.mrb[0].mxu0
    %2232 = vmatprep.mubr.f32.mxu0 0.0
    %2233 = vmatmul.mubr.f32.gmra.mrb[0].mxu0 %v2064
    %v2234 = vpop.f32.mrb[0].mxu0
    %v2235 = vadd.f32 0.0, %v2234
    %v2236 = vpop.f32.mrb[0].mxu0
    %2237 = vmatprep.mubr.f32.mxu0 0.0
    %2238 = vmatmul.mubr.f32.gmra.mrb[0].mxu0 %v2066
    %v2239 = vpop.f32.mrb[0].mxu0
    %v2240 = vadd.f32 0.0, %v2239
    %v2241 = vpop.f32.mrb[0].mxu0
    %2242 = vmatprep.mubr.f32.mxu0 0.0
    %2243 = vmatmul.mubr.f32.gmra.mrb[0].mxu0 %v2068
    %v2244 = vpop.f32.mrb[0].mxu0
    %v2245 = vadd.f32 0.0, %v2244
    %v2246 = vpop.f32.mrb[0].mxu0
    %2247 = vmatprep.mubr.f32.mxu0 0.0
    %2248 = vmatmul.mubr.f32.gmra.mrb[0].mxu0 %v2070
    %v2249 = vpop.f32.mrb[0].mxu0
    %v2250 = vadd.f32 0.0, %v2249
    %v2251 = vpop.f32.mrb[0].mxu0
    %2252 = vmatprep.mubr.f32.mxu0 0.0
    %2253 = vmatmul.mubr.f32.gmra.mrb[0].mxu0 %v2072
    %v2254 = vpop.f32.mrb[0].mxu0
    %v2255 = vadd.f32 0.0, %v2254
    %v2256 = vpop.f32.mrb[0].mxu0
    %2257 = vmatprep.mubr.f32.mxu0 0.0
    %2258 = vmatmul.mubr.f32.gmra.mrb[0].mxu0 %v2074
    %v2259 = vpop.f32.mrb[0].mxu0
    %v2260 = vadd.f32 0.0, %v2259
    %v2261 = vpop.f32.mrb[0].mxu0
    %2262 = vdwg.mxu0
    %v2263 = vsel %vm2027, %v1930, 0
    %v2265 = vsel %vm2027, %v1931, 0
    %v2267 = vsel %vm2027, %v1932, 0
    %v2269 = vsel %vm2027, %v1933, 0
    %v2271 = vsel %vm2027, %v1934, 0
    %v2273 = vsel %vm2027, %v1935, 0
    %v2275 = vsel %vm2027, %v1936, 0
    %v2277 = vsel %vm2027, %v1937, 0
    %v2279 = vsel %vm2027, %v1938, 0
    %v2281 = vsel %vm2027, %v1939, 0
    %v2283 = vsel %vm2027, %v1940, 0
    %v2285 = vsel %vm2027, %v1941, 0
    %v2287 = vsel %vm2027, %v1942, 0
    %v2289 = vsel %vm2027, %v1943, 0
    %v2291 = vsel %vm2027, %v1944, 0
    %v2293 = vsel %vm2027, %v1945, 0
    %v2295 = vsel %vm2027, %v1946, 0
    %v2297 = vsel %vm2027, %v1947, 0
    %v2299 = vsel %vm2027, %v1948, 0
    %v2301 = vsel %vm2027, %v1949, 0
    %v2303 = vsel %vm2027, %v1950, 0
    %v2305 = vsel %vm2027, %v1951, 0
    %v2307 = vsel %vm2027, %v1952, 0
    %v2309 = vsel %vm2027, %v1953, 0
    %v2311 = vsel %vm292, %v1922, 0
    %2313 = vmatprep.subr.mxu0 0.0
    %2314 = vmatpush1.msra.mxu0 %v2311
    %2315 = vmatprep.subr.mxu0 0.0
    %2316 = vmatpush1.msra.mxu0 0.0
    %2317 = vmatprep.subr.mxu0 0.0
    %2318 = vmatpush1.msra.mxu0 0.0
    %2319 = vmatprep.subr.mxu0 0.0
    %2320 = vmatpush1.msra.mxu0 0.0
    %2321 = vmatprep.subr.mxu0 0.0
    %2322 = vmatpush1.msra.mxu0 0.0
    %2323 = vmatprep.subr.mxu0 0.0
    %2324 = vmatpush1.msra.mxu0 0.0
    %2325 = vmatprep.subr.mxu0 0.0
    %2326 = vmatpush1.msra.mxu0 0.0
    %2327 = vmatprep.subr.mxu0 0.0
    %2328 = vmatpush1.msra.mxu0 0.0
    %2329 = vmatprep.subr.mxu0 0.0
    %2330 = vmatpush1.msra.mxu0 0.0
    %2331 = vmatprep.subr.mxu0 0.0
    %2332 = vmatpush1.msra.mxu0 0.0
    %2333 = vmatprep.subr.mxu0 0.0
    %2334 = vmatpush1.msra.mxu0 0.0
    %2335 = vmatprep.subr.mxu0 0.0
    %2336 = vmatpush1.msra.mxu0 0.0
    %2337 = vmatprep.subr.mxu0 0.0
    %2338 = vmatpush1.msra.mxu0 0.0
    %2339 = vmatprep.subr.mxu0 0.0
    %2340 = vmatpush1.msra.mxu0 0.0
    %2341 = vmatprep.subr.mxu0 0.0
    %2342 = vmatpush1.msra.mxu0 0.0
    %2343 = vmatprep.subr.mxu0 0.0
    %2344 = vmatpush1.msra.mxu0 0.0
    %2345 = vmatprep.subr.mxu0 0.0
    %2346 = vmatpush1.msra.mxu0 0.0
    %2347 = vmatprep.subr.mxu0 0.0
    %2348 = vmatpush1.msra.mxu0 0.0
    %2349 = vmatprep.subr.mxu0 0.0
    %2350 = vmatpush1.msra.mxu0 0.0
    %2351 = vmatprep.subr.mxu0 0.0
    %2352 = vmatpush1.msra.mxu0 0.0
    %2353 = vmatprep.subr.mxu0 0.0
    %2354 = vmatpush1.msra.mxu0 0.0
    %2355 = vmatprep.subr.mxu0 0.0
    %2356 = vmatpush1.msra.mxu0 0.0
    %2357 = vmatprep.subr.mxu0 0.0
    %2358 = vmatpush1.msra.mxu0 0.0
    %2359 = vmatprep.subr.mxu0 0.0
    %2360 = vmatpush1.msra.mxu0 0.0
    %2361 = vmatprep.subr.mxu0 0.0
    %2362 = vmatpush1.msra.mxu0 0.0
    %2363 = vmatprep.subr.mxu0 0.0
    %2364 = vmatpush1.msra.mxu0 0.0
    %2365 = vmatprep.subr.mxu0 0.0
    %2366 = vmatpush1.msra.mxu0 0.0
    %2367 = vmatprep.subr.mxu0 0.0
    %2368 = vmatpush1.msra.mxu0 0.0
    %2369 = vmatprep.subr.mxu0 0.0
    %2370 = vmatpush1.msra.mxu0 0.0
    %2371 = vmatprep.subr.mxu0 0.0
    %2372 = vmatpush1.msra.mxu0 0.0
    %2373 = vmatprep.subr.mxu0 0.0
    %2374 = vmatpush1.msra.mxu0 0.0
    %2375 = vmatprep.subr.mxu0 0.0
    %2376 = vmatpush1.msra.mxu0 0.0
    %2377 = vmatprep.mubr.f32.mxu0 0.0
    %2378 = vmatmul.mubr.f32.gmra.mrb[0].mxu0 %v2263
    %v2379 = vpop.f32.mrb[0].mxu0
    %v2380 = vadd.f32 %v2145, %v2379
    %v2381 = vpop.f32.mrb[0].mxu0
    %2382 = vmatprep.mubr.f32.mxu0 0.0
    %2383 = vmatmul.mubr.f32.gmra.mrb[0].mxu0 %v2265
    %v2384 = vpop.f32.mrb[0].mxu0
    %v2385 = vadd.f32 %v2150, %v2384
    %v2386 = vpop.f32.mrb[0].mxu0
    %2387 = vmatprep.mubr.f32.mxu0 0.0
    %2388 = vmatmul.mubr.f32.gmra.mrb[0].mxu0 %v2267
    %v2389 = vpop.f32.mrb[0].mxu0
    %v2390 = vadd.f32 %v2155, %v2389
    %v2391 = vpop.f32.mrb[0].mxu0
    %2392 = vmatprep.mubr.f32.mxu0 0.0
    %2393 = vmatmul.mubr.f32.gmra.mrb[0].mxu0 %v2269
    %v2394 = vpop.f32.mrb[0].mxu0
    %v2395 = vadd.f32 %v2160, %v2394
    %v2396 = vpop.f32.mrb[0].mxu0
    %2397 = vmatprep.mubr.f32.mxu0 0.0
    %2398 = vmatmul.mubr.f32.gmra.mrb[0].mxu0 %v2271
    %v2399 = vpop.f32.mrb[0].mxu0
    %v2400 = vadd.f32 %v2165, %v2399
    %v2401 = vpop.f32.mrb[0].mxu0
    %2402 = vmatprep.mubr.f32.mxu0 0.0
    %2403 = vmatmul.mubr.f32.gmra.mrb[0].mxu0 %v2273
    %v2404 = vpop.f32.mrb[0].mxu0
    %v2405 = vadd.f32 %v2170, %v2404
    %v2406 = vpop.f32.mrb[0].mxu0
    %2407 = vmatprep.mubr.f32.mxu0 0.0
    %2408 = vmatmul.mubr.f32.gmra.mrb[0].mxu0 %v2275
    %v2409 = vpop.f32.mrb[0].mxu0
    %v2410 = vadd.f32 %v2175, %v2409
    %v2411 = vpop.f32.mrb[0].mxu0
    %2412 = vmatprep.mubr.f32.mxu0 0.0
    %2413 = vmatmul.mubr.f32.gmra.mrb[0].mxu0 %v2277
    %v2414 = vpop.f32.mrb[0].mxu0
    %v2415 = vadd.f32 %v2180, %v2414
    %v2416 = vpop.f32.mrb[0].mxu0
    %2417 = vmatprep.mubr.f32.mxu0 0.0
    %2418 = vmatmul.mubr.f32.gmra.mrb[0].mxu0 %v2279
    %v2419 = vpop.f32.mrb[0].mxu0
    %v2420 = vadd.f32 %v2185, %v2419
    %v2421 = vpop.f32.mrb[0].mxu0
    %2422 = vmatprep.mubr.f32.mxu0 0.0
    %2423 = vmatmul.mubr.f32.gmra.mrb[0].mxu0 %v2281
    %v2424 = vpop.f32.mrb[0].mxu0
    %v2425 = vadd.f32 %v2190, %v2424
    %v2426 = vpop.f32.mrb[0].mxu0
    %2427 = vmatprep.mubr.f32.mxu0 0.0
    %2428 = vmatmul.mubr.f32.gmra.mrb[0].mxu0 %v2283
    %v2429 = vpop.f32.mrb[0].mxu0
    %v2430 = vadd.f32 %v2195, %v2429
    %v2431 = vpop.f32.mrb[0].mxu0
    %2432 = vmatprep.mubr.f32.mxu0 0.0
    %2433 = vmatmul.mubr.f32.gmra.mrb[0].mxu0 %v2285
    %v2434 = vpop.f32.mrb[0].mxu0
    %v2435 = vadd.f32 %v2200, %v2434
    %v2436 = vpop.f32.mrb[0].mxu0
    %2437 = vmatprep.mubr.f32.mxu0 0.0
    %2438 = vmatmul.mubr.f32.gmra.mrb[0].mxu0 %v2287
    %v2439 = vpop.f32.mrb[0].mxu0
    %v2440 = vadd.f32 %v2205, %v2439
    %v2441 = vpop.f32.mrb[0].mxu0
    %2442 = vmatprep.mubr.f32.mxu0 0.0
    %2443 = vmatmul.mubr.f32.gmra.mrb[0].mxu0 %v2289
    %v2444 = vpop.f32.mrb[0].mxu0
    %v2445 = vadd.f32 %v2210, %v2444
    %v2446 = vpop.f32.mrb[0].mxu0
    %2447 = vmatprep.mubr.f32.mxu0 0.0
    %2448 = vmatmul.mubr.f32.gmra.mrb[0].mxu0 %v2291
    %v2449 = vpop.f32.mrb[0].mxu0
    %v2450 = vadd.f32 %v2215, %v2449
    %v2451 = vpop.f32.mrb[0].mxu0
    %2452 = vmatprep.mubr.f32.mxu0 0.0
    %2453 = vmatmul.mubr.f32.gmra.mrb[0].mxu0 %v2293
    %v2454 = vpop.f32.mrb[0].mxu0
    %v2455 = vadd.f32 %v2220, %v2454
    %v2456 = vpop.f32.mrb[0].mxu0
    %2457 = vmatprep.mubr.f32.mxu0 0.0
    %2458 = vmatmul.mubr.f32.gmra.mrb[0].mxu0 %v2295
    %v2459 = vpop.f32.mrb[0].mxu0
    %v2460 = vadd.f32 %v2225, %v2459
    %v2461 = vpop.f32.mrb[0].mxu0
    %2462 = vmatprep.mubr.f32.mxu0 0.0
    %2463 = vmatmul.mubr.f32.gmra.mrb[0].mxu0 %v2297
    %v2464 = vpop.f32.mrb[0].mxu0
    %v2465 = vadd.f32 %v2230, %v2464
    %v2466 = vpop.f32.mrb[0].mxu0
    %2467 = vmatprep.mubr.f32.mxu0 0.0
    %2468 = vmatmul.mubr.f32.gmra.mrb[0].mxu0 %v2299
    %v2469 = vpop.f32.mrb[0].mxu0
    %v2470 = vadd.f32 %v2235, %v2469
    %v2471 = vpop.f32.mrb[0].mxu0
    %2472 = vmatprep.mubr.f32.mxu0 0.0
    %2473 = vmatmul.mubr.f32.gmra.mrb[0].mxu0 %v2301
    %v2474 = vpop.f32.mrb[0].mxu0
    %v2475 = vadd.f32 %v2240, %v2474
    %v2476 = vpop.f32.mrb[0].mxu0
    %2477 = vmatprep.mubr.f32.mxu0 0.0
    %2478 = vmatmul.mubr.f32.gmra.mrb[0].mxu0 %v2303
    %v2479 = vpop.f32.mrb[0].mxu0
    %v2480 = vadd.f32 %v2245, %v2479
    %v2481 = vpop.f32.mrb[0].mxu0
    %2482 = vmatprep.mubr.f32.mxu0 0.0
    %2483 = vmatmul.mubr.f32.gmra.mrb[0].mxu0 %v2305
    %v2484 = vpop.f32.mrb[0].mxu0
    %v2485 = vadd.f32 %v2250, %v2484
    %v2486 = vpop.f32.mrb[0].mxu0
    %2487 = vmatprep.mubr.f32.mxu0 0.0
    %2488 = vmatmul.mubr.f32.gmra.mrb[0].mxu0 %v2307
    %v2489 = vpop.f32.mrb[0].mxu0
    %v2490 = vadd.f32 %v2255, %v2489
    %v2491 = vpop.f32.mrb[0].mxu0
    %2492 = vmatprep.mubr.f32.mxu0 0.0
    %2493 = vmatmul.mubr.f32.gmra.mrb[0].mxu0 %v2309
    %v2494 = vpop.f32.mrb[0].mxu0
    %v2495 = vadd.f32 %v2260, %v2494
    %v2496 = vpop.f32.mrb[0].mxu0
    %2497 = vdwg.mxu0
    %v2498 = vlaneseq
    %v2499 = vshrl.u32 %v2498, 7
    %v2500 = vsub.s32 0, %v2499
    %v2501 = vrot.slane %v1928, %v2500
    %v2502 = vadd.f32 %v2380, %v2501
    %v2503 = vadd.f32 %v2385, %v2501
    %v2504 = vadd.f32 %v2390, %v2501
    %v2505 = vadd.f32 %v2395, %v2501
    %v2506 = vadd.f32 %v2400, %v2501
    %v2507 = vadd.f32 %v2405, %v2501
    %v2508 = vadd.f32 %v2410, %v2501
    %v2509 = vadd.f32 %v2415, %v2501
    %v2510 = vadd.f32 %v2420, %v2501
    %v2511 = vadd.f32 %v2425, %v2501
    %v2512 = vadd.f32 %v2430, %v2501
    %v2513 = vadd.f32 %v2435, %v2501
    %v2514 = vadd.f32 %v2440, %v2501
    %v2515 = vadd.f32 %v2445, %v2501
    %v2516 = vadd.f32 %v2450, %v2501
    %v2517 = vadd.f32 %v2455, %v2501
    %v2518 = vadd.f32 %v2460, %v2501
    %v2519 = vadd.f32 %v2465, %v2501
    %v2520 = vadd.f32 %v2470, %v2501
    %v2521 = vadd.f32 %v2475, %v2501
    %v2522 = vadd.f32 %v2480, %v2501
    %v2523 = vadd.f32 %v2485, %v2501
    %v2524 = vadd.f32 %v2490, %v2501
    %v2525 = vadd.f32 %v2495, %v2501
    %v2526 = vmax.f32 %v2502, 0.0
    %v2527 = vmax.f32 %v2503, 0.0
    %v2528 = vmax.f32 %v2504, 0.0
    %v2529 = vmax.f32 %v2505, 0.0
    %v2530 = vmax.f32 %v2506, 0.0
    %v2531 = vmax.f32 %v2507, 0.0
    %v2532 = vmax.f32 %v2508, 0.0
    %v2533 = vmax.f32 %v2509, 0.0
    %v2534 = vmax.f32 %v2510, 0.0
    %v2535 = vmax.f32 %v2511, 0.0
    %v2536 = vmax.f32 %v2512, 0.0
    %v2537 = vmax.f32 %v2513, 0.0
    %v2538 = vmax.f32 %v2514, 0.0
    %v2539 = vmax.f32 %v2515, 0.0
    %v2540 = vmax.f32 %v2516, 0.0
    %v2541 = vmax.f32 %v2517, 0.0
    %v2542 = vmax.f32 %v2518, 0.0
    %v2543 = vmax.f32 %v2519, 0.0
    %v2544 = vmax.f32 %v2520, 0.0
    %v2545 = vmax.f32 %v2521, 0.0
    %v2546 = vmax.f32 %v2522, 0.0
    %v2547 = vmax.f32 %v2523, 0.0
    %v2548 = vmax.f32 %v2524, 0.0
    %v2549 = vmax.f32 %v2525, 0.0
    %v2550 = vlaneseq
    %v2551 = vshrl.u32 %v2550, 7
    %v2552 = vsub.s32 1, %v2551
    %v2553 = vrot.slane %v1928, %v2552
    %v2554 = vmul.f32 %v2526, %v2553
    %v2555 = vmul.f32 %v2527, %v2553
    %v2556 = vmul.f32 %v2528, %v2553
    %v2557 = vmul.f32 %v2529, %v2553
    %v2558 = vmul.f32 %v2530, %v2553
    %v2559 = vmul.f32 %v2531, %v2553
    %v2560 = vmul.f32 %v2532, %v2553
    %v2561 = vmul.f32 %v2533, %v2553
    %v2562 = vmul.f32 %v2534, %v2553
    %v2563 = vmul.f32 %v2535, %v2553
    %v2564 = vmul.f32 %v2536, %v2553
    %v2565 = vmul.f32 %v2537, %v2553
    %v2566 = vmul.f32 %v2538, %v2553
    %v2567 = vmul.f32 %v2539, %v2553
    %v2568 = vmul.f32 %v2540, %v2553
    %v2569 = vmul.f32 %v2541, %v2553
    %v2570 = vmul.f32 %v2542, %v2553
    %v2571 = vmul.f32 %v2543, %v2553
    %v2572 = vmul.f32 %v2544, %v2553
    %v2573 = vmul.f32 %v2545, %v2553
    %v2574 = vmul.f32 %v2546, %v2553
    %v2575 = vmul.f32 %v2547, %v2553
    %v2576 = vmul.f32 %v2548, %v2553
    %v2577 = vmul.f32 %v2549, %v2553
    %v2578 = vlaneseq
    %v2579 = vshrl.u32 %v2578, 7
    %v2580 = vsub.s32 2, %v2579
    %v2581 = vrot.slane %v1928, %v2580
    %v2582 = vadd.f32 %v2554, %v2581
    %v2583 = vadd.f32 %v2555, %v2581
    %v2584 = vadd.f32 %v2556, %v2581
    %v2585 = vadd.f32 %v2557, %v2581
    %v2586 = vadd.f32 %v2558, %v2581
    %v2587 = vadd.f32 %v2559, %v2581
    %v2588 = vadd.f32 %v2560, %v2581
    %v2589 = vadd.f32 %v2561, %v2581
    %v2590 = vadd.f32 %v2562, %v2581
    %v2591 = vadd.f32 %v2563, %v2581
    %v2592 = vadd.f32 %v2564, %v2581
    %v2593 = vadd.f32 %v2565, %v2581
    %v2594 = vadd.f32 %v2566, %v2581
    %v2595 = vadd.f32 %v2567, %v2581
    %v2596 = vadd.f32 %v2568, %v2581
    %v2597 = vadd.f32 %v2569, %v2581
    %v2598 = vadd.f32 %v2570, %v2581
    %v2599 = vadd.f32 %v2571, %v2581
    %v2600 = vadd.f32 %v2572, %v2581
    %v2601 = vadd.f32 %v2573, %v2581
    %v2602 = vadd.f32 %v2574, %v2581
    %v2603 = vadd.f32 %v2575, %v2581
    %v2604 = vadd.f32 %v2576, %v2581
    %v2605 = vadd.f32 %v2577, %v2581
    %v2630 = vrot.slane %v2582, 1
    %v2631 = vrot.slane %v2583, 1
    %v2632 = vsel %vm49, %v2630, %v2631
    %v2633 = vrot.slane %v2584, 1
    %v2634 = vsel %vm49, %v2631, %v2633
    %v2635 = vrot.slane %v2585, 1
    %v2636 = vsel %vm49, %v2633, %v2635
    %v2637 = vrot.slane %v2586, 1
    %v2638 = vsel %vm49, %v2635, %v2637
    %v2639 = vrot.slane %v2587, 1
    %v2640 = vsel %vm49, %v2637, %v2639
    %v2641 = vrot.slane %v2588, 1
    %v2642 = vsel %vm49, %v2639, %v2641
    %v2643 = vrot.slane %v2589, 1
    %v2644 = vsel %vm49, %v2641, %v2643
    %v2645 = vrot.slane %v2590, 1
    %v2646 = vsel %vm49, %v2643, %v2645
    %v2647 = vrot.slane %v2591, 1
    %v2648 = vsel %vm49, %v2645, %v2647
    %v2649 = vrot.slane %v2592, 1
    %v2650 = vsel %vm49, %v2647, %v2649
    %v2651 = vrot.slane %v2593, 1
    %v2652 = vsel %vm49, %v2649, %v2651
    %v2653 = vrot.slane %v2594, 1
    %v2654 = vsel %vm49, %v2651, %v2653
    %v2655 = vrot.slane %v2595, 1
    %v2656 = vsel %vm49, %v2653, %v2655
    %v2657 = vrot.slane %v2596, 1
    %v2658 = vsel %vm49, %v2655, %v2657
    %v2659 = vrot.slane %v2597, 1
    %v2660 = vsel %vm49, %v2657, %v2659
    %v2661 = vrot.slane %v2598, 1
    %v2662 = vsel %vm49, %v2659, %v2661
    %v2663 = vrot.slane %v2599, 1
    %v2664 = vsel %vm49, %v2661, %v2663
    %v2665 = vrot.slane %v2600, 1
    %v2666 = vsel %vm49, %v2663, %v2665
    %v2667 = vrot.slane %v2601, 1
    %v2668 = vsel %vm49, %v2665, %v2667
    %v2669 = vrot.slane %v2602, 1
    %v2670 = vsel %vm49, %v2667, %v2669
    %v2671 = vrot.slane %v2603, 1
    %v2672 = vsel %vm49, %v2669, %v2671
    %v2673 = vrot.slane %v2604, 1
    %v2674 = vsel %vm49, %v2671, %v2673
    %v2675 = vrot.slane %v2605, 1
    %v2676 = vsel %vm49, %v2673, %v2675
    %vm2679 = vcmask 1043456
    %v2680 = vrot.slane %v1923, 4
    %v2681 = vrot.slane %v1924, 4
    %v2682 = vsel %vm2679, %v2680, %v2681
    %v2684 = vsel %vm297, %v2632, 0
    %v2686 = vsel %vm297, %v2634, 0
    %v2688 = vsel %vm297, %v2636, 0
    %v2690 = vsel %vm297, %v2638, 0
    %v2692 = vsel %vm297, %v2640, 0
    %v2694 = vsel %vm297, %v2642, 0
    %v2696 = vsel %vm297, %v2644, 0
    %v2698 = vsel %vm297, %v2646, 0
    %v2700 = vsel %vm297, %v2648, 0
    %v2702 = vsel %vm297, %v2650, 0
    %v2704 = vsel %vm297, %v2652, 0
    %v2706 = vsel %vm297, %v2654, 0
    %v2708 = vsel %vm297, %v2656, 0
    %v2710 = vsel %vm297, %v2658, 0
    %v2712 = vsel %vm297, %v2660, 0
    %v2714 = vsel %vm297, %v2662, 0
    %v2716 = vsel %vm297, %v2664, 0
    %v2718 = vsel %vm297, %v2666, 0
    %v2720 = vsel %vm297, %v2668, 0
    %v2722 = vsel %vm297, %v2670, 0
    %v2724 = vsel %vm297, %v2672, 0
    %v2726 = vsel %vm297, %v2674, 0
    %v2728 = vsel %vm297, %v2676, 0
    %v2730 = vsel %vm297, %v2675, 0
    %2732 = vmatprep.subr.mxu0 0.0
    %2733 = vmatpush1.msra.mxu0 %v2682
    %2734 = vmatprep.subr.mxu0 0.0
    %2735 = vmatpush1.msra.mxu0 0.0
    %2736 = vmatprep.subr.mxu0 0.0
    %2737 = vmatpush1.msra.mxu0 0.0
    %2738 = vmatprep.subr.mxu0 0.0
    %2739 = vmatpush1.msra.mxu0 0.0
    %2740 = vmatprep.subr.mxu0 0.0
    %2741 = vmatpush1.msra.mxu0 0.0
    %2742 = vmatprep.subr.mxu0 0.0
    %2743 = vmatpush1.msra.mxu0 0.0
    %2744 = vmatprep.subr.mxu0 0.0
    %2745 = vmatpush1.msra.mxu0 0.0
    %2746 = vmatprep.subr.mxu0 0.0
    %2747 = vmatpush1.msra.mxu0 0.0
    %2748 = vmatprep.subr.mxu0 0.0
    %2749 = vmatpush1.msra.mxu0 0.0
    %2750 = vmatprep.subr.mxu0 0.0
    %2751 = vmatpush1.msra.mxu0 0.0
    %2752 = vmatprep.subr.mxu0 0.0
    %2753 = vmatpush1.msra.mxu0 0.0
    %2754 = vmatprep.subr.mxu0 0.0
    %2755 = vmatpush1.msra.mxu0 0.0
    %2756 = vmatprep.subr.mxu0 0.0
    %2757 = vmatpush1.msra.mxu0 0.0
    %2758 = vmatprep.subr.mxu0 0.0
    %2759 = vmatpush1.msra.mxu0 0.0
    %2760 = vmatprep.subr.mxu0 0.0
    %2761 = vmatpush1.msra.mxu0 0.0
    %2762 = vmatprep.subr.mxu0 0.0
    %2763 = vmatpush1.msra.mxu0 0.0
    %2764 = vmatprep.subr.mxu0 0.0
    %2765 = vmatpush1.msra.mxu0 0.0
    %2766 = vmatprep.subr.mxu0 0.0
    %2767 = vmatpush1.msra.mxu0 0.0
    %2768 = vmatprep.subr.mxu0 0.0
    %2769 = vmatpush1.msra.mxu0 0.0
    %2770 = vmatprep.subr.mxu0 0.0
    %2771 = vmatpush1.msra.mxu0 0.0
    %2772 = vmatprep.subr.mxu0 0.0
    %2773 = vmatpush1.msra.mxu0 0.0
    %2774 = vmatprep.subr.mxu0 0.0
    %2775 = vmatpush1.msra.mxu0 0.0
    %2776 = vmatprep.subr.mxu0 0.0
    %2777 = vmatpush1.msra.mxu0 0.0
    %2778 = vmatprep.subr.mxu0 0.0
    %2779 = vmatpush1.msra.mxu0 0.0
    %2780 = vmatprep.subr.mxu0 0.0
    %2781 = vmatpush1.msra.mxu0 0.0
    %2782 = vmatprep.subr.mxu0 0.0
    %2783 = vmatpush1.msra.mxu0 0.0
    %2784 = vmatprep.subr.mxu0 0.0
    %2785 = vmatpush1.msra.mxu0 0.0
    %2786 = vmatprep.subr.mxu0 0.0
    %2787 = vmatpush1.msra.mxu0 0.0
    %2788 = vmatprep.subr.mxu0 0.0
    %2789 = vmatpush1.msra.mxu0 0.0
    %2790 = vmatprep.subr.mxu0 0.0
    %2791 = vmatpush1.msra.mxu0 0.0
    %2792 = vmatprep.subr.mxu0 0.0
    %2793 = vmatpush1.msra.mxu0 0.0
    %2794 = vmatprep.subr.mxu0 0.0
    %2795 = vmatpush1.msra.mxu0 0.0
    %2796 = vmatprep.mubr.f32.mxu0 0.0
    %2797 = vmatmul.mubr.f32.gmra.mrb[0].mxu0 %v2684
    %v2798 = vpop.f32.mrb[0].mxu0
    %v2799 = vadd.f32 0.0, %v2798
    %v2800 = vpop.f32.mrb[0].mxu0
    %2801 = vmatprep.mubr.f32.mxu0 0.0
    %2802 = vmatmul.mubr.f32.gmra.mrb[0].mxu0 %v2686
    %v2803 = vpop.f32.mrb[0].mxu0
    %v2804 = vadd.f32 0.0, %v2803
    %v2805 = vpop.f32.mrb[0].mxu0
    %2806 = vmatprep.mubr.f32.mxu0 0.0
    %2807 = vmatmul.mubr.f32.gmra.mrb[0].mxu0 %v2688
    %v2808 = vpop.f32.mrb[0].mxu0
    %v2809 = vadd.f32 0.0, %v2808
    %v2810 = vpop.f32.mrb[0].mxu0
    %2811 = vmatprep.mubr.f32.mxu0 0.0
    %2812 = vmatmul.mubr.f32.gmra.mrb[0].mxu0 %v2690
    %v2813 = vpop.f32.mrb[0].mxu0
    %v2814 = vadd.f32 0.0, %v2813
    %v2815 = vpop.f32.mrb[0].mxu0
    %2816 = vmatprep.mubr.f32.mxu0 0.0
    %2817 = vmatmul.mubr.f32.gmra.mrb[0].mxu0 %v2692
    %v2818 = vpop.f32.mrb[0].mxu0
    %v2819 = vadd.f32 0.0, %v2818
    %v2820 = vpop.f32.mrb[0].mxu0
    %2821 = vmatprep.mubr.f32.mxu0 0.0
    %2822 = vmatmul.mubr.f32.gmra.mrb[0].mxu0 %v2694
    %v2823 = vpop.f32.mrb[0].mxu0
    %v2824 = vadd.f32 0.0, %v2823
    %v2825 = vpop.f32.mrb[0].mxu0
    %2826 = vmatprep.mubr.f32.mxu0 0.0
    %2827 = vmatmul.mubr.f32.gmra.mrb[0].mxu0 %v2696
    %v2828 = vpop.f32.mrb[0].mxu0
    %v2829 = vadd.f32 0.0, %v2828
    %v2830 = vpop.f32.mrb[0].mxu0
    %2831 = vmatprep.mubr.f32.mxu0 0.0
    %2832 = vmatmul.mubr.f32.gmra.mrb[0].mxu0 %v2698
    %v2833 = vpop.f32.mrb[0].mxu0
    %v2834 = vadd.f32 0.0, %v2833
    %v2835 = vpop.f32.mrb[0].mxu0
    %2836 = vmatprep.mubr.f32.mxu0 0.0
    %2837 = vmatmul.mubr.f32.gmra.mrb[0].mxu0 %v2700
    %v2838 = vpop.f32.mrb[0].mxu0
    %v2839 = vadd.f32 0.0, %v2838
    %v2840 = vpop.f32.mrb[0].mxu0
    %2841 = vmatprep.mubr.f32.mxu0 0.0
    %2842 = vmatmul.mubr.f32.gmra.mrb[0].mxu0 %v2702
    %v2843 = vpop.f32.mrb[0].mxu0
    %v2844 = vadd.f32 0.0, %v2843
    %v2845 = vpop.f32.mrb[0].mxu0
    %2846 = vmatprep.mubr.f32.mxu0 0.0
    %2847 = vmatmul.mubr.f32.gmra.mrb[0].mxu0 %v2704
    %v2848 = vpop.f32.mrb[0].mxu0
    %v2849 = vadd.f32 0.0, %v2848
    %v2850 = vpop.f32.mrb[0].mxu0
    %2851 = vmatprep.mubr.f32.mxu0 0.0
    %2852 = vmatmul.mubr.f32.gmra.mrb[0].mxu0 %v2706
    %v2853 = vpop.f32.mrb[0].mxu0
    %v2854 = vadd.f32 0.0, %v2853
    %v2855 = vpop.f32.mrb[0].mxu0
    %2856 = vmatprep.mubr.f32.mxu0 0.0
    %2857 = vmatmul.mubr.f32.gmra.mrb[0].mxu0 %v2708
    %v2858 = vpop.f32.mrb[0].mxu0
    %v2859 = vadd.f32 0.0, %v2858
    %v2860 = vpop.f32.mrb[0].mxu0
    %2861 = vmatprep.mubr.f32.mxu0 0.0
    %2862 = vmatmul.mubr.f32.gmra.mrb[0].mxu0 %v2710
    %v2863 = vpop.f32.mrb[0].mxu0
    %v2864 = vadd.f32 0.0, %v2863
    %v2865 = vpop.f32.mrb[0].mxu0
    %2866 = vmatprep.mubr.f32.mxu0 0.0
    %2867 = vmatmul.mubr.f32.gmra.mrb[0].mxu0 %v2712
    %v2868 = vpop.f32.mrb[0].mxu0
    %v2869 = vadd.f32 0.0, %v2868
    %v2870 = vpop.f32.mrb[0].mxu0
    %2871 = vmatprep.mubr.f32.mxu0 0.0
    %2872 = vmatmul.mubr.f32.gmra.mrb[0].mxu0 %v2714
    %v2873 = vpop.f32.mrb[0].mxu0
    %v2874 = vadd.f32 0.0, %v2873
    %v2875 = vpop.f32.mrb[0].mxu0
    %2876 = vmatprep.mubr.f32.mxu0 0.0
    %2877 = vmatmul.mubr.f32.gmra.mrb[0].mxu0 %v2716
    %v2878 = vpop.f32.mrb[0].mxu0
    %v2879 = vadd.f32 0.0, %v2878
    %v2880 = vpop.f32.mrb[0].mxu0
    %2881 = vmatprep.mubr.f32.mxu0 0.0
    %2882 = vmatmul.mubr.f32.gmra.mrb[0].mxu0 %v2718
    %v2883 = vpop.f32.mrb[0].mxu0
    %v2884 = vadd.f32 0.0, %v2883
    %v2885 = vpop.f32.mrb[0].mxu0
    %2886 = vmatprep.mubr.f32.mxu0 0.0
    %2887 = vmatmul.mubr.f32.gmra.mrb[0].mxu0 %v2720
    %v2888 = vpop.f32.mrb[0].mxu0
    %v2889 = vadd.f32 0.0, %v2888
    %v2890 = vpop.f32.mrb[0].mxu0
    %2891 = vmatprep.mubr.f32.mxu0 0.0
    %2892 = vmatmul.mubr.f32.gmra.mrb[0].mxu0 %v2722
    %v2893 = vpop.f32.mrb[0].mxu0
    %v2894 = vadd.f32 0.0, %v2893
    %v2895 = vpop.f32.mrb[0].mxu0
    %2896 = vmatprep.mubr.f32.mxu0 0.0
    %2897 = vmatmul.mubr.f32.gmra.mrb[0].mxu0 %v2724
    %v2898 = vpop.f32.mrb[0].mxu0
    %v2899 = vadd.f32 0.0, %v2898
    %v2900 = vpop.f32.mrb[0].mxu0
    %2901 = vmatprep.mubr.f32.mxu0 0.0
    %2902 = vmatmul.mubr.f32.gmra.mrb[0].mxu0 %v2726
    %v2903 = vpop.f32.mrb[0].mxu0
    %v2904 = vadd.f32 0.0, %v2903
    %v2905 = vpop.f32.mrb[0].mxu0
    %2906 = vmatprep.mubr.f32.mxu0 0.0
    %2907 = vmatmul.mubr.f32.gmra.mrb[0].mxu0 %v2728
    %v2908 = vpop.f32.mrb[0].mxu0
    %v2909 = vadd.f32 0.0, %v2908
    %v2910 = vpop.f32.mrb[0].mxu0
    %2911 = vmatprep.mubr.f32.mxu0 0.0
    %2912 = vmatmul.mubr.f32.gmra.mrb[0].mxu0 %v2730
    %v2913 = vpop.f32.mrb[0].mxu0
    %v2914 = vadd.f32 0.0, %v2913
    %v2915 = vpop.f32.mrb[0].mxu0
    %2916 = vdwg.mxu0
    %v2917 = vrot.slane %v1922, 4
    %v2918 = vsel %vm2679, %v2917, %v2680
    %v2920 = vsel %vm297, %v2582, 0
    %v2922 = vsel %vm297, %v2583, 0
    %v2924 = vsel %vm297, %v2584, 0
    %v2926 = vsel %vm297, %v2585, 0
    %v2928 = vsel %vm297, %v2586, 0
    %v2930 = vsel %vm297, %v2587, 0
    %v2932 = vsel %vm297, %v2588, 0
    %v2934 = vsel %vm297, %v2589, 0
    %v2936 = vsel %vm297, %v2590, 0
    %v2938 = vsel %vm297, %v2591, 0
    %v2940 = vsel %vm297, %v2592, 0
    %v2942 = vsel %vm297, %v2593, 0
    %v2944 = vsel %vm297, %v2594, 0
    %v2946 = vsel %vm297, %v2595, 0
    %v2948 = vsel %vm297, %v2596, 0
    %v2950 = vsel %vm297, %v2597, 0
    %v2952 = vsel %vm297, %v2598, 0
    %v2954 = vsel %vm297, %v2599, 0
    %v2956 = vsel %vm297, %v2600, 0
    %v2958 = vsel %vm297, %v2601, 0
    %v2960 = vsel %vm297, %v2602, 0
    %v2962 = vsel %vm297, %v2603, 0
    %v2964 = vsel %vm297, %v2604, 0
    %v2966 = vsel %vm297, %v2605, 0
    %2968 = vmatprep.subr.mxu0 0.0
    %2969 = vmatpush1.msra.mxu0 %v2918
    %2970 = vmatprep.subr.mxu0 0.0
    %2971 = vmatpush1.msra.mxu0 0.0
    %2972 = vmatprep.subr.mxu0 0.0
    %2973 = vmatpush1.msra.mxu0 0.0
    %2974 = vmatprep.subr.mxu0 0.0
    %2975 = vmatpush1.msra.mxu0 0.0
    %2976 = vmatprep.subr.mxu0 0.0
    %2977 = vmatpush1.msra.mxu0 0.0
    %2978 = vmatprep.subr.mxu0 0.0
    %2979 = vmatpush1.msra.mxu0 0.0
    %2980 = vmatprep.subr.mxu0 0.0
    %2981 = vmatpush1.msra.mxu0 0.0
    %2982 = vmatprep.subr.mxu0 0.0
    %2983 = vmatpush1.msra.mxu0 0.0
    %2984 = vmatprep.subr.mxu0 0.0
    %2985 = vmatpush1.msra.mxu0 0.0
    %2986 = vmatprep.subr.mxu0 0.0
    %2987 = vmatpush1.msra.mxu0 0.0
    %2988 = vmatprep.subr.mxu0 0.0
    %2989 = vmatpush1.msra.mxu0 0.0
    %2990 = vmatprep.subr.mxu0 0.0
    %2991 = vmatpush1.msra.mxu0 0.0
    %2992 = vmatprep.subr.mxu0 0.0
    %2993 = vmatpush1.msra.mxu0 0.0
    %2994 = vmatprep.subr.mxu0 0.0
    %2995 = vmatpush1.msra.mxu0 0.0
    %2996 = vmatprep.subr.mxu0 0.0
    %2997 = vmatpush1.msra.mxu0 0.0
    %2998 = vmatprep.subr.mxu0 0.0
    %2999 = vmatpush1.msra.mxu0 0.0
    %3000 = vmatprep.subr.mxu0 0.0
    %3001 = vmatpush1.msra.mxu0 0.0
    %3002 = vmatprep.subr.mxu0 0.0
    %3003 = vmatpush1.msra.mxu0 0.0
    %3004 = vmatprep.subr.mxu0 0.0
    %3005 = vmatpush1.msra.mxu0 0.0
    %3006 = vmatprep.subr.mxu0 0.0
    %3007 = vmatpush1.msra.mxu0 0.0
    %3008 = vmatprep.subr.mxu0 0.0
    %3009 = vmatpush1.msra.mxu0 0.0
    %3010 = vmatprep.subr.mxu0 0.0
    %3011 = vmatpush1.msra.mxu0 0.0
    %3012 = vmatprep.subr.mxu0 0.0
    %3013 = vmatpush1.msra.mxu0 0.0
    %3014 = vmatprep.subr.mxu0 0.0
    %3015 = vmatpush1.msra.mxu0 0.0
    %3016 = vmatprep.subr.mxu0 0.0
    %3017 = vmatpush1.msra.mxu0 0.0
    %3018 = vmatprep.subr.mxu0 0.0
    %3019 = vmatpush1.msra.mxu0 0.0
    %3020 = vmatprep.subr.mxu0 0.0
    %3021 = vmatpush1.msra.mxu0 0.0
    %3022 = vmatprep.subr.mxu0 0.0
    %3023 = vmatpush1.msra.mxu0 0.0
    %3024 = vmatprep.subr.mxu0 0.0
    %3025 = vmatpush1.msra.mxu0 0.0
    %3026 = vmatprep.subr.mxu0 0.0
    %3027 = vmatpush1.msra.mxu0 0.0
    %3028 = vmatprep.subr.mxu0 0.0
    %3029 = vmatpush1.msra.mxu0 0.0
    %3030 = vmatprep.subr.mxu0 0.0
    %3031 = vmatpush1.msra.mxu0 0.0
    %3032 = vmatprep.mubr.f32.mxu0 0.0
    %3033 = vmatmul.mubr.f32.gmra.mrb[0].mxu0 %v2920
    %v3034 = vpop.f32.mrb[0].mxu0
    %v3035 = vadd.f32 %v2799, %v3034
    %v3036 = vpop.f32.mrb[0].mxu0
    %3037 = vmatprep.mubr.f32.mxu0 0.0
    %3038 = vmatmul.mubr.f32.gmra.mrb[0].mxu0 %v2922
    %v3039 = vpop.f32.mrb[0].mxu0
    %v3040 = vadd.f32 %v2804, %v3039
    %v3041 = vpop.f32.mrb[0].mxu0
    %3042 = vmatprep.mubr.f32.mxu0 0.0
    %3043 = vmatmul.mubr.f32.gmra.mrb[0].mxu0 %v2924
    %v3044 = vpop.f32.mrb[0].mxu0
    %v3045 = vadd.f32 %v2809, %v3044
    %v3046 = vpop.f32.mrb[0].mxu0
    %3047 = vmatprep.mubr.f32.mxu0 0.0
    %3048 = vmatmul.mubr.f32.gmra.mrb[0].mxu0 %v2926
    %v3049 = vpop.f32.mrb[0].mxu0
    %v3050 = vadd.f32 %v2814, %v3049
    %v3051 = vpop.f32.mrb[0].mxu0
    %3052 = vmatprep.mubr.f32.mxu0 0.0
    %3053 = vmatmul.mubr.f32.gmra.mrb[0].mxu0 %v2928
    %v3054 = vpop.f32.mrb[0].mxu0
    %v3055 = vadd.f32 %v2819, %v3054
    %v3056 = vpop.f32.mrb[0].mxu0
    %3057 = vmatprep.mubr.f32.mxu0 0.0
    %3058 = vmatmul.mubr.f32.gmra.mrb[0].mxu0 %v2930
    %v3059 = vpop.f32.mrb[0].mxu0
    %v3060 = vadd.f32 %v2824, %v3059
    %v3061 = vpop.f32.mrb[0].mxu0
    %3062 = vmatprep.mubr.f32.mxu0 0.0
    %3063 = vmatmul.mubr.f32.gmra.mrb[0].mxu0 %v2932
    %v3064 = vpop.f32.mrb[0].mxu0
    %v3065 = vadd.f32 %v2829, %v3064
    %v3066 = vpop.f32.mrb[0].mxu0
    %3067 = vmatprep.mubr.f32.mxu0 0.0
    %3068 = vmatmul.mubr.f32.gmra.mrb[0].mxu0 %v2934
    %v3069 = vpop.f32.mrb[0].mxu0
    %v3070 = vadd.f32 %v2834, %v3069
    %v3071 = vpop.f32.mrb[0].mxu0
    %3072 = vmatprep.mubr.f32.mxu0 0.0
    %3073 = vmatmul.mubr.f32.gmra.mrb[0].mxu0 %v2936
    %v3074 = vpop.f32.mrb[0].mxu0
    %v3075 = vadd.f32 %v2839, %v3074
    %v3076 = vpop.f32.mrb[0].mxu0
    %3077 = vmatprep.mubr.f32.mxu0 0.0
    %3078 = vmatmul.mubr.f32.gmra.mrb[0].mxu0 %v2938
    %v3079 = vpop.f32.mrb[0].mxu0
    %v3080 = vadd.f32 %v2844, %v3079
    %v3081 = vpop.f32.mrb[0].mxu0
    %3082 = vmatprep.mubr.f32.mxu0 0.0
    %3083 = vmatmul.mubr.f32.gmra.mrb[0].mxu0 %v2940
    %v3084 = vpop.f32.mrb[0].mxu0
    %v3085 = vadd.f32 %v2849, %v3084
    %v3086 = vpop.f32.mrb[0].mxu0
    %3087 = vmatprep.mubr.f32.mxu0 0.0
    %3088 = vmatmul.mubr.f32.gmra.mrb[0].mxu0 %v2942
    %v3089 = vpop.f32.mrb[0].mxu0
    %v3090 = vadd.f32 %v2854, %v3089
    %v3091 = vpop.f32.mrb[0].mxu0
    %3092 = vmatprep.mubr.f32.mxu0 0.0
    %3093 = vmatmul.mubr.f32.gmra.mrb[0].mxu0 %v2944
    %v3094 = vpop.f32.mrb[0].mxu0
    %v3095 = vadd.f32 %v2859, %v3094
    %v3096 = vpop.f32.mrb[0].mxu0
    %3097 = vmatprep.mubr.f32.mxu0 0.0
    %3098 = vmatmul.mubr.f32.gmra.mrb[0].mxu0 %v2946
    %v3099 = vpop.f32.mrb[0].mxu0
    %v3100 = vadd.f32 %v2864, %v3099
    %v3101 = vpop.f32.mrb[0].mxu0
    %3102 = vmatprep.mubr.f32.mxu0 0.0
    %3103 = vmatmul.mubr.f32.gmra.mrb[0].mxu0 %v2948
    %v3104 = vpop.f32.mrb[0].mxu0
    %v3105 = vadd.f32 %v2869, %v3104
    %v3106 = vpop.f32.mrb[0].mxu0
    %3107 = vmatprep.mubr.f32.mxu0 0.0
    %3108 = vmatmul.mubr.f32.gmra.mrb[0].mxu0 %v2950
    %v3109 = vpop.f32.mrb[0].mxu0
    %v3110 = vadd.f32 %v2874, %v3109
    %v3111 = vpop.f32.mrb[0].mxu0
    %3112 = vmatprep.mubr.f32.mxu0 0.0
    %3113 = vmatmul.mubr.f32.gmra.mrb[0].mxu0 %v2952
    %v3114 = vpop.f32.mrb[0].mxu0
    %v3115 = vadd.f32 %v2879, %v3114
    %v3116 = vpop.f32.mrb[0].mxu0
    %3117 = vmatprep.mubr.f32.mxu0 0.0
    %3118 = vmatmul.mubr.f32.gmra.mrb[0].mxu0 %v2954
    %v3119 = vpop.f32.mrb[0].mxu0
    %v3120 = vadd.f32 %v2884, %v3119
    %v3121 = vpop.f32.mrb[0].mxu0
    %3122 = vmatprep.mubr.f32.mxu0 0.0
    %3123 = vmatmul.mubr.f32.gmra.mrb[0].mxu0 %v2956
    %v3124 = vpop.f32.mrb[0].mxu0
    %v3125 = vadd.f32 %v2889, %v3124
    %v3126 = vpop.f32.mrb[0].mxu0
    %3127 = vmatprep.mubr.f32.mxu0 0.0
    %3128 = vmatmul.mubr.f32.gmra.mrb[0].mxu0 %v2958
    %v3129 = vpop.f32.mrb[0].mxu0
    %v3130 = vadd.f32 %v2894, %v3129
    %v3131 = vpop.f32.mrb[0].mxu0
    %3132 = vmatprep.mubr.f32.mxu0 0.0
    %3133 = vmatmul.mubr.f32.gmra.mrb[0].mxu0 %v2960
    %v3134 = vpop.f32.mrb[0].mxu0
    %v3135 = vadd.f32 %v2899, %v3134
    %v3136 = vpop.f32.mrb[0].mxu0
    %3137 = vmatprep.mubr.f32.mxu0 0.0
    %3138 = vmatmul.mubr.f32.gmra.mrb[0].mxu0 %v2962
    %v3139 = vpop.f32.mrb[0].mxu0
    %v3140 = vadd.f32 %v2904, %v3139
    %v3141 = vpop.f32.mrb[0].mxu0
    %3142 = vmatprep.mubr.f32.mxu0 0.0
    %3143 = vmatmul.mubr.f32.gmra.mrb[0].mxu0 %v2964
    %v3144 = vpop.f32.mrb[0].mxu0
    %v3145 = vadd.f32 %v2909, %v3144
    %v3146 = vpop.f32.mrb[0].mxu0
    %3147 = vmatprep.mubr.f32.mxu0 0.0
    %3148 = vmatmul.mubr.f32.gmra.mrb[0].mxu0 %v2966
    %v3149 = vpop.f32.mrb[0].mxu0
    %v3150 = vadd.f32 %v2914, %v3149
    %v3151 = vpop.f32.mrb[0].mxu0
    %3152 = vdwg.mxu0
    %v3153 = vrot.slane %v2582, 2
    %v3154 = vrot.slane %v2583, 2
    %v3155 = vsel %vm487, %v3153, %v3154
    %v3156 = vrot.slane %v2584, 2
    %v3157 = vsel %vm487, %v3154, %v3156
    %v3158 = vrot.slane %v2585, 2
    %v3159 = vsel %vm487, %v3156, %v3158
    %v3160 = vrot.slane %v2586, 2
    %v3161 = vsel %vm487, %v3158, %v3160
    %v3162 = vrot.slane %v2587, 2
    %v3163 = vsel %vm487, %v3160, %v3162
    %v3164 = vrot.slane %v2588, 2
    %v3165 = vsel %vm487, %v3162, %v3164
    %v3166 = vrot.slane %v2589, 2
    %v3167 = vsel %vm487, %v3164, %v3166
    %v3168 = vrot.slane %v2590, 2
    %v3169 = vsel %vm487, %v3166, %v3168
    %v3170 = vrot.slane %v2591, 2
    %v3171 = vsel %vm487, %v3168, %v3170
    %v3172 = vrot.slane %v2592, 2
    %v3173 = vsel %vm487, %v3170, %v3172
    %v3174 = vrot.slane %v2593, 2
    %v3175 = vsel %vm487, %v3172, %v3174
    %v3176 = vrot.slane %v2594, 2
    %v3177 = vsel %vm487, %v3174, %v3176
    %v3178 = vrot.slane %v2595, 2
    %v3179 = vsel %vm487, %v3176, %v3178
    %v3180 = vrot.slane %v2596, 2
    %v3181 = vsel %vm487, %v3178, %v3180
    %v3182 = vrot.slane %v2597, 2
    %v3183 = vsel %vm487, %v3180, %v3182
    %v3184 = vrot.slane %v2598, 2
    %v3185 = vsel %vm487, %v3182, %v3184
    %v3186 = vrot.slane %v2599, 2
    %v3187 = vsel %vm487, %v3184, %v3186
    %v3188 = vrot.slane %v2600, 2
    %v3189 = vsel %vm487, %v3186, %v3188
    %v3190 = vrot.slane %v2601, 2
    %v3191 = vsel %vm487, %v3188, %v3190
    %v3192 = vrot.slane %v2602, 2
    %v3193 = vsel %vm487, %v3190, %v3192
    %v3194 = vrot.slane %v2603, 2
    %v3195 = vsel %vm487, %v3192, %v3194
    %v3196 = vrot.slane %v2604, 2
    %v3197 = vsel %vm487, %v3194, %v3196
    %v3198 = vrot.slane %v2605, 2
    %v3199 = vsel %vm487, %v3196, %v3198
    %v3201 = vrot.slane %v1925, 4
    %v3202 = vsel %vm2679, %v2681, %v3201
    %v3204 = vsel %vm297, %v3155, 0
    %v3206 = vsel %vm297, %v3157, 0
    %v3208 = vsel %vm297, %v3159, 0
    %v3210 = vsel %vm297, %v3161, 0
    %v3212 = vsel %vm297, %v3163, 0
    %v3214 = vsel %vm297, %v3165, 0
    %v3216 = vsel %vm297, %v3167, 0
    %v3218 = vsel %vm297, %v3169, 0
    %v3220 = vsel %vm297, %v3171, 0
    %v3222 = vsel %vm297, %v3173, 0
    %v3224 = vsel %vm297, %v3175, 0
    %v3226 = vsel %vm297, %v3177, 0
    %v3228 = vsel %vm297, %v3179, 0
    %v3230 = vsel %vm297, %v3181, 0
    %v3232 = vsel %vm297, %v3183, 0
    %v3234 = vsel %vm297, %v3185, 0
    %v3236 = vsel %vm297, %v3187, 0
    %v3238 = vsel %vm297, %v3189, 0
    %v3240 = vsel %vm297, %v3191, 0
    %v3242 = vsel %vm297, %v3193, 0
    %v3244 = vsel %vm297, %v3195, 0
    %v3246 = vsel %vm297, %v3197, 0
    %v3248 = vsel %vm297, %v3199, 0
    %v3250 = vsel %vm297, %v3198, 0
    %3252 = vmatprep.subr.mxu0 0.0
    %3253 = vmatpush1.msra.mxu0 %v3202
    %3254 = vmatprep.subr.mxu0 0.0
    %3255 = vmatpush1.msra.mxu0 0.0
    %3256 = vmatprep.subr.mxu0 0.0
    %3257 = vmatpush1.msra.mxu0 0.0
    %3258 = vmatprep.subr.mxu0 0.0
    %3259 = vmatpush1.msra.mxu0 0.0
    %3260 = vmatprep.subr.mxu0 0.0
    %3261 = vmatpush1.msra.mxu0 0.0
    %3262 = vmatprep.subr.mxu0 0.0
    %3263 = vmatpush1.msra.mxu0 0.0
    %3264 = vmatprep.subr.mxu0 0.0
    %3265 = vmatpush1.msra.mxu0 0.0
    %3266 = vmatprep.subr.mxu0 0.0
    %3267 = vmatpush1.msra.mxu0 0.0
    %3268 = vmatprep.subr.mxu0 0.0
    %3269 = vmatpush1.msra.mxu0 0.0
    %3270 = vmatprep.subr.mxu0 0.0
    %3271 = vmatpush1.msra.mxu0 0.0
    %3272 = vmatprep.subr.mxu0 0.0
    %3273 = vmatpush1.msra.mxu0 0.0
    %3274 = vmatprep.subr.mxu0 0.0
    %3275 = vmatpush1.msra.mxu0 0.0
    %3276 = vmatprep.subr.mxu0 0.0
    %3277 = vmatpush1.msra.mxu0 0.0
    %3278 = vmatprep.subr.mxu0 0.0
    %3279 = vmatpush1.msra.mxu0 0.0
    %3280 = vmatprep.subr.mxu0 0.0
    %3281 = vmatpush1.msra.mxu0 0.0
    %3282 = vmatprep.subr.mxu0 0.0
    %3283 = vmatpush1.msra.mxu0 0.0
    %3284 = vmatprep.subr.mxu0 0.0
    %3285 = vmatpush1.msra.mxu0 0.0
    %3286 = vmatprep.subr.mxu0 0.0
    %3287 = vmatpush1.msra.mxu0 0.0
    %3288 = vmatprep.subr.mxu0 0.0
    %3289 = vmatpush1.msra.mxu0 0.0
    %3290 = vmatprep.subr.mxu0 0.0
    %3291 = vmatpush1.msra.mxu0 0.0
    %3292 = vmatprep.subr.mxu0 0.0
    %3293 = vmatpush1.msra.mxu0 0.0
    %3294 = vmatprep.subr.mxu0 0.0
    %3295 = vmatpush1.msra.mxu0 0.0
    %3296 = vmatprep.subr.mxu0 0.0
    %3297 = vmatpush1.msra.mxu0 0.0
    %3298 = vmatprep.subr.mxu0 0.0
    %3299 = vmatpush1.msra.mxu0 0.0
    %3300 = vmatprep.subr.mxu0 0.0
    %3301 = vmatpush1.msra.mxu0 0.0
    %3302 = vmatprep.subr.mxu0 0.0
    %3303 = vmatpush1.msra.mxu0 0.0
    %3304 = vmatprep.subr.mxu0 0.0
    %3305 = vmatpush1.msra.mxu0 0.0
    %3306 = vmatprep.subr.mxu0 0.0
    %3307 = vmatpush1.msra.mxu0 0.0
    %3308 = vmatprep.subr.mxu0 0.0
    %3309 = vmatpush1.msra.mxu0 0.0
    %3310 = vmatprep.subr.mxu0 0.0
    %3311 = vmatpush1.msra.mxu0 0.0
    %3312 = vmatprep.subr.mxu0 0.0
    %3313 = vmatpush1.msra.mxu0 0.0
    %3314 = vmatprep.subr.mxu0 0.0
    %3315 = vmatpush1.msra.mxu0 0.0
    %3316 = vmatprep.mubr.f32.mxu0 0.0
    %3317 = vmatmul.mubr.f32.gmra.mrb[0].mxu0 %v3204
    %v3318 = vpop.f32.mrb[0].mxu0
    %v3319 = vadd.f32 0.0, %v3318
    %v3320 = vpop.f32.mrb[0].mxu0
    %3321 = vmatprep.mubr.f32.mxu0 0.0
    %3322 = vmatmul.mubr.f32.gmra.mrb[0].mxu0 %v3206
    %v3323 = vpop.f32.mrb[0].mxu0
    %v3324 = vadd.f32 0.0, %v3323
    %v3325 = vpop.f32.mrb[0].mxu0
    %3326 = vmatprep.mubr.f32.mxu0 0.0
    %3327 = vmatmul.mubr.f32.gmra.mrb[0].mxu0 %v3208
    %v3328 = vpop.f32.mrb[0].mxu0
    %v3329 = vadd.f32 0.0, %v3328
    %v3330 = vpop.f32.mrb[0].mxu0
    %3331 = vmatprep.mubr.f32.mxu0 0.0
    %3332 = vmatmul.mubr.f32.gmra.mrb[0].mxu0 %v3210
    %v3333 = vpop.f32.mrb[0].mxu0
    %v3334 = vadd.f32 0.0, %v3333
    %v3335 = vpop.f32.mrb[0].mxu0
    %3336 = vmatprep.mubr.f32.mxu0 0.0
    %3337 = vmatmul.mubr.f32.gmra.mrb[0].mxu0 %v3212
    %v3338 = vpop.f32.mrb[0].mxu0
    %v3339 = vadd.f32 0.0, %v3338
    %v3340 = vpop.f32.mrb[0].mxu0
    %3341 = vmatprep.mubr.f32.mxu0 0.0
    %3342 = vmatmul.mubr.f32.gmra.mrb[0].mxu0 %v3214
    %v3343 = vpop.f32.mrb[0].mxu0
    %v3344 = vadd.f32 0.0, %v3343
    %v3345 = vpop.f32.mrb[0].mxu0
    %3346 = vmatprep.mubr.f32.mxu0 0.0
    %3347 = vmatmul.mubr.f32.gmra.mrb[0].mxu0 %v3216
    %v3348 = vpop.f32.mrb[0].mxu0
    %v3349 = vadd.f32 0.0, %v3348
    %v3350 = vpop.f32.mrb[0].mxu0
    %3351 = vmatprep.mubr.f32.mxu0 0.0
    %3352 = vmatmul.mubr.f32.gmra.mrb[0].mxu0 %v3218
    %v3353 = vpop.f32.mrb[0].mxu0
    %v3354 = vadd.f32 0.0, %v3353
    %v3355 = vpop.f32.mrb[0].mxu0
    %3356 = vmatprep.mubr.f32.mxu0 0.0
    %3357 = vmatmul.mubr.f32.gmra.mrb[0].mxu0 %v3220
    %v3358 = vpop.f32.mrb[0].mxu0
    %v3359 = vadd.f32 0.0, %v3358
    %v3360 = vpop.f32.mrb[0].mxu0
    %3361 = vmatprep.mubr.f32.mxu0 0.0
    %3362 = vmatmul.mubr.f32.gmra.mrb[0].mxu0 %v3222
    %v3363 = vpop.f32.mrb[0].mxu0
    %v3364 = vadd.f32 0.0, %v3363
    %v3365 = vpop.f32.mrb[0].mxu0
    %3366 = vmatprep.mubr.f32.mxu0 0.0
    %3367 = vmatmul.mubr.f32.gmra.mrb[0].mxu0 %v3224
    %v3368 = vpop.f32.mrb[0].mxu0
    %v3369 = vadd.f32 0.0, %v3368
    %v3370 = vpop.f32.mrb[0].mxu0
    %3371 = vmatprep.mubr.f32.mxu0 0.0
    %3372 = vmatmul.mubr.f32.gmra.mrb[0].mxu0 %v3226
    %v3373 = vpop.f32.mrb[0].mxu0
    %v3374 = vadd.f32 0.0, %v3373
    %v3375 = vpop.f32.mrb[0].mxu0
    %3376 = vmatprep.mubr.f32.mxu0 0.0
    %3377 = vmatmul.mubr.f32.gmra.mrb[0].mxu0 %v3228
    %v3378 = vpop.f32.mrb[0].mxu0
    %v3379 = vadd.f32 0.0, %v3378
    %v3380 = vpop.f32.mrb[0].mxu0
    %3381 = vmatprep.mubr.f32.mxu0 0.0
    %3382 = vmatmul.mubr.f32.gmra.mrb[0].mxu0 %v3230
    %v3383 = vpop.f32.mrb[0].mxu0
    %v3384 = vadd.f32 0.0, %v3383
    %v3385 = vpop.f32.mrb[0].mxu0
    %3386 = vmatprep.mubr.f32.mxu0 0.0
    %3387 = vmatmul.mubr.f32.gmra.mrb[0].mxu0 %v3232
    %v3388 = vpop.f32.mrb[0].mxu0
    %v3389 = vadd.f32 0.0, %v3388
    %v3390 = vpop.f32.mrb[0].mxu0
    %3391 = vmatprep.mubr.f32.mxu0 0.0
    %3392 = vmatmul.mubr.f32.gmra.mrb[0].mxu0 %v3234
    %v3393 = vpop.f32.mrb[0].mxu0
    %v3394 = vadd.f32 0.0, %v3393
    %v3395 = vpop.f32.mrb[0].mxu0
    %3396 = vmatprep.mubr.f32.mxu0 0.0
    %3397 = vmatmul.mubr.f32.gmra.mrb[0].mxu0 %v3236
    %v3398 = vpop.f32.mrb[0].mxu0
    %v3399 = vadd.f32 0.0, %v3398
    %v3400 = vpop.f32.mrb[0].mxu0
    %3401 = vmatprep.mubr.f32.mxu0 0.0
    %3402 = vmatmul.mubr.f32.gmra.mrb[0].mxu0 %v3238
    %v3403 = vpop.f32.mrb[0].mxu0
    %v3404 = vadd.f32 0.0, %v3403
    %v3405 = vpop.f32.mrb[0].mxu0
    %3406 = vmatprep.mubr.f32.mxu0 0.0
    %3407 = vmatmul.mubr.f32.gmra.mrb[0].mxu0 %v3240
    %v3408 = vpop.f32.mrb[0].mxu0
    %v3409 = vadd.f32 0.0, %v3408
    %v3410 = vpop.f32.mrb[0].mxu0
    %3411 = vmatprep.mubr.f32.mxu0 0.0
    %3412 = vmatmul.mubr.f32.gmra.mrb[0].mxu0 %v3242
    %v3413 = vpop.f32.mrb[0].mxu0
    %v3414 = vadd.f32 0.0, %v3413
    %v3415 = vpop.f32.mrb[0].mxu0
    %3416 = vmatprep.mubr.f32.mxu0 0.0
    %3417 = vmatmul.mubr.f32.gmra.mrb[0].mxu0 %v3244
    %v3418 = vpop.f32.mrb[0].mxu0
    %v3419 = vadd.f32 0.0, %v3418
    %v3420 = vpop.f32.mrb[0].mxu0
    %3421 = vmatprep.mubr.f32.mxu0 0.0
    %3422 = vmatmul.mubr.f32.gmra.mrb[0].mxu0 %v3246
    %v3423 = vpop.f32.mrb[0].mxu0
    %v3424 = vadd.f32 0.0, %v3423
    %v3425 = vpop.f32.mrb[0].mxu0
    %3426 = vmatprep.mubr.f32.mxu0 0.0
    %3427 = vmatmul.mubr.f32.gmra.mrb[0].mxu0 %v3248
    %v3428 = vpop.f32.mrb[0].mxu0
    %v3429 = vadd.f32 0.0, %v3428
    %v3430 = vpop.f32.mrb[0].mxu0
    %3431 = vmatprep.mubr.f32.mxu0 0.0
    %3432 = vmatmul.mubr.f32.gmra.mrb[0].mxu0 %v3250
    %v3433 = vpop.f32.mrb[0].mxu0
    %v3434 = vadd.f32 0.0, %v3433
    %v3435 = vpop.f32.mrb[0].mxu0
    %3436 = vdwg.mxu0
    %v3437 = vadd.f32 %v3035, %v3319
    %v3438 = vadd.f32 %v3040, %v3324
    %v3439 = vadd.f32 %v3045, %v3329
    %v3440 = vadd.f32 %v3050, %v3334
    %v3441 = vadd.f32 %v3055, %v3339
    %v3442 = vadd.f32 %v3060, %v3344
    %v3443 = vadd.f32 %v3065, %v3349
    %v3444 = vadd.f32 %v3070, %v3354
    %v3445 = vadd.f32 %v3075, %v3359
    %v3446 = vadd.f32 %v3080, %v3364
    %v3447 = vadd.f32 %v3085, %v3369
    %v3448 = vadd.f32 %v3090, %v3374
    %v3449 = vadd.f32 %v3095, %v3379
    %v3450 = vadd.f32 %v3100, %v3384
    %v3451 = vadd.f32 %v3105, %v3389
    %v3452 = vadd.f32 %v3110, %v3394
    %v3453 = vadd.f32 %v3115, %v3399
    %v3454 = vadd.f32 %v3120, %v3404
    %v3455 = vadd.f32 %v3125, %v3409
    %v3456 = vadd.f32 %v3130, %v3414
    %v3457 = vadd.f32 %v3135, %v3419
    %v3458 = vadd.f32 %v3140, %v3424
    %v3459 = vadd.f32 %v3145, %v3429
    %v3460 = vadd.f32 %v3150, %v3434
    %v3461 = vlaneseq
    %v3462 = vshrl.u32 %v3461, 7
    %v3463 = vsub.s32 3, %v3462
    %v3464 = vrot.slane %v1928, %v3463
    %v3465 = vadd.f32 %v3437, %v3464
    %v3466 = vadd.f32 %v3438, %v3464
    %v3467 = vadd.f32 %v3439, %v3464
    %v3468 = vadd.f32 %v3440, %v3464
    %v3469 = vadd.f32 %v3441, %v3464
    %v3470 = vadd.f32 %v3442, %v3464
    %v3471 = vadd.f32 %v3443, %v3464
    %v3472 = vadd.f32 %v3444, %v3464
    %v3473 = vadd.f32 %v3445, %v3464
    %v3474 = vadd.f32 %v3446, %v3464
    %v3475 = vadd.f32 %v3447, %v3464
    %v3476 = vadd.f32 %v3448, %v3464
    %v3477 = vadd.f32 %v3449, %v3464
    %v3478 = vadd.f32 %v3450, %v3464
    %v3479 = vadd.f32 %v3451, %v3464
    %v3480 = vadd.f32 %v3452, %v3464
    %v3481 = vadd.f32 %v3453, %v3464
    %v3482 = vadd.f32 %v3454, %v3464
    %v3483 = vadd.f32 %v3455, %v3464
    %v3484 = vadd.f32 %v3456, %v3464
    %v3485 = vadd.f32 %v3457, %v3464
    %v3486 = vadd.f32 %v3458, %v3464
    %v3487 = vadd.f32 %v3459, %v3464
    %v3488 = vadd.f32 %v3460, %v3464
    %v3489 = vmax.f32 %v3465, 0.0
    %v3490 = vmax.f32 %v3466, 0.0
    %v3491 = vmax.f32 %v3467, 0.0
    %v3492 = vmax.f32 %v3468, 0.0
    %v3493 = vmax.f32 %v3469, 0.0
    %v3494 = vmax.f32 %v3470, 0.0
    %v3495 = vmax.f32 %v3471, 0.0
    %v3496 = vmax.f32 %v3472, 0.0
    %v3497 = vmax.f32 %v3473, 0.0
    %v3498 = vmax.f32 %v3474, 0.0
    %v3499 = vmax.f32 %v3475, 0.0
    %v3500 = vmax.f32 %v3476, 0.0
    %v3501 = vmax.f32 %v3477, 0.0
    %v3502 = vmax.f32 %v3478, 0.0
    %v3503 = vmax.f32 %v3479, 0.0
    %v3504 = vmax.f32 %v3480, 0.0
    %v3505 = vmax.f32 %v3481, 0.0
    %v3506 = vmax.f32 %v3482, 0.0
    %v3507 = vmax.f32 %v3483, 0.0
    %v3508 = vmax.f32 %v3484, 0.0
    %v3509 = vmax.f32 %v3485, 0.0
    %v3510 = vmax.f32 %v3486, 0.0
    %v3511 = vmax.f32 %v3487, 0.0
    %v3512 = vmax.f32 %v3488, 0.0
    %v3513 = vlaneseq
    %v3514 = vshrl.u32 %v3513, 7
    %v3515 = vsub.s32 4, %v3514
    %v3516 = vrot.slane %v1928, %v3515
    %v3517 = vmul.f32 %v3489, %v3516
    %v3518 = vmul.f32 %v3490, %v3516
    %v3519 = vmul.f32 %v3491, %v3516
    %v3520 = vmul.f32 %v3492, %v3516
    %v3521 = vmul.f32 %v3493, %v3516
    %v3522 = vmul.f32 %v3494, %v3516
    %v3523 = vmul.f32 %v3495, %v3516
    %v3524 = vmul.f32 %v3496, %v3516
    %v3525 = vmul.f32 %v3497, %v3516
    %v3526 = vmul.f32 %v3498, %v3516
    %v3527 = vmul.f32 %v3499, %v3516
    %v3528 = vmul.f32 %v3500, %v3516
    %v3529 = vmul.f32 %v3501, %v3516
    %v3530 = vmul.f32 %v3502, %v3516
    %v3531 = vmul.f32 %v3503, %v3516
    %v3532 = vmul.f32 %v3504, %v3516
    %v3533 = vmul.f32 %v3505, %v3516
    %v3534 = vmul.f32 %v3506, %v3516
    %v3535 = vmul.f32 %v3507, %v3516
    %v3536 = vmul.f32 %v3508, %v3516
    %v3537 = vmul.f32 %v3509, %v3516
    %v3538 = vmul.f32 %v3510, %v3516
    %v3539 = vmul.f32 %v3511, %v3516
    %v3540 = vmul.f32 %v3512, %v3516
    %v3541 = vlaneseq
    %v3542 = vshrl.u32 %v3541, 7
    %v3543 = vsub.s32 5, %v3542
    %v3544 = vrot.slane %v1928, %v3543
    %v3545 = vadd.f32 %v3517, %v3544
    %v3546 = vadd.f32 %v3518, %v3544
    %v3547 = vadd.f32 %v3519, %v3544
    %v3548 = vadd.f32 %v3520, %v3544
    %v3549 = vadd.f32 %v3521, %v3544
    %v3550 = vadd.f32 %v3522, %v3544
    %v3551 = vadd.f32 %v3523, %v3544
    %v3552 = vadd.f32 %v3524, %v3544
    %v3553 = vadd.f32 %v3525, %v3544
    %v3554 = vadd.f32 %v3526, %v3544
    %v3555 = vadd.f32 %v3527, %v3544
    %v3556 = vadd.f32 %v3528, %v3544
    %v3557 = vadd.f32 %v3529, %v3544
    %v3558 = vadd.f32 %v3530, %v3544
    %v3559 = vadd.f32 %v3531, %v3544
    %v3560 = vadd.f32 %v3532, %v3544
    %v3561 = vadd.f32 %v3533, %v3544
    %v3562 = vadd.f32 %v3534, %v3544
    %v3563 = vadd.f32 %v3535, %v3544
    %v3564 = vadd.f32 %v3536, %v3544
    %v3565 = vadd.f32 %v3537, %v3544
    %v3566 = vadd.f32 %v3538, %v3544
    %v3567 = vadd.f32 %v3539, %v3544
    %v3568 = vadd.f32 %v3540, %v3544
    %v3593 = vrot.slane %v3545, 1
    %v3594 = vrot.slane %v3546, 1
    %v3595 = vsel %vm49, %v3593, %v3594
    %v3596 = vrot.slane %v3547, 1
    %v3597 = vsel %vm49, %v3594, %v3596
    %v3598 = vrot.slane %v3548, 1
    %v3599 = vsel %vm49, %v3596, %v3598
    %v3600 = vrot.slane %v3549, 1
    %v3601 = vsel %vm49, %v3598, %v3600
    %v3602 = vrot.slane %v3550, 1
    %v3603 = vsel %vm49, %v3600, %v3602
    %v3604 = vrot.slane %v3551, 1
    %v3605 = vsel %vm49, %v3602, %v3604
    %v3606 = vrot.slane %v3552, 1
    %v3607 = vsel %vm49, %v3604, %v3606
    %v3608 = vrot.slane %v3553, 1
    %v3609 = vsel %vm49, %v3606, %v3608
    %v3610 = vrot.slane %v3554, 1
    %v3611 = vsel %vm49, %v3608, %v3610
    %v3612 = vrot.slane %v3555, 1
    %v3613 = vsel %vm49, %v3610, %v3612
    %v3614 = vrot.slane %v3556, 1
    %v3615 = vsel %vm49, %v3612, %v3614
    %v3616 = vrot.slane %v3557, 1
    %v3617 = vsel %vm49, %v3614, %v3616
    %v3618 = vrot.slane %v3558, 1
    %v3619 = vsel %vm49, %v3616, %v3618
    %v3620 = vrot.slane %v3559, 1
    %v3621 = vsel %vm49, %v3618, %v3620
    %v3622 = vrot.slane %v3560, 1
    %v3623 = vsel %vm49, %v3620, %v3622
    %v3624 = vrot.slane %v3561, 1
    %v3625 = vsel %vm49, %v3622, %v3624
    %v3626 = vrot.slane %v3562, 1
    %v3627 = vsel %vm49, %v3624, %v3626
    %v3628 = vrot.slane %v3563, 1
    %v3629 = vsel %vm49, %v3626, %v3628
    %v3630 = vrot.slane %v3564, 1
    %v3631 = vsel %vm49, %v3628, %v3630
    %v3632 = vrot.slane %v3565, 1
    %v3633 = vsel %vm49, %v3630, %v3632
    %v3634 = vrot.slane %v3566, 1
    %v3635 = vsel %vm49, %v3632, %v3634
    %v3636 = vrot.slane %v3567, 1
    %v3637 = vsel %vm49, %v3634, %v3636
    %v3638 = vrot.slane %v3568, 1
    %v3639 = vsel %vm49, %v3636, %v3638
    %v3642 = vrot.slane %v1926, 4
    %v3643 = vrot.slane %v1927, 4
    %v3644 = vsel %vm2679, %v3642, %v3643
    %v3646 = vsel %vm297, %v3595, 0
    %v3648 = vsel %vm297, %v3597, 0
    %v3650 = vsel %vm297, %v3599, 0
    %v3652 = vsel %vm297, %v3601, 0
    %v3654 = vsel %vm297, %v3603, 0
    %v3656 = vsel %vm297, %v3605, 0
    %v3658 = vsel %vm297, %v3607, 0
    %v3660 = vsel %vm297, %v3609, 0
    %v3662 = vsel %vm297, %v3611, 0
    %v3664 = vsel %vm297, %v3613, 0
    %v3666 = vsel %vm297, %v3615, 0
    %v3668 = vsel %vm297, %v3617, 0
    %v3670 = vsel %vm297, %v3619, 0
    %v3672 = vsel %vm297, %v3621, 0
    %v3674 = vsel %vm297, %v3623, 0
    %v3676 = vsel %vm297, %v3625, 0
    %v3678 = vsel %vm297, %v3627, 0
    %v3680 = vsel %vm297, %v3629, 0
    %v3682 = vsel %vm297, %v3631, 0
    %v3684 = vsel %vm297, %v3633, 0
    %v3686 = vsel %vm297, %v3635, 0
    %v3688 = vsel %vm297, %v3637, 0
    %v3690 = vsel %vm297, %v3639, 0
    %v3692 = vsel %vm297, %v3638, 0
    %3694 = vmatprep.subr.mxu0 0.0
    %3695 = vmatpush1.msra.mxu0 %v3644
    %3696 = vmatprep.subr.mxu0 0.0
    %3697 = vmatpush1.msra.mxu0 0.0
    %3698 = vmatprep.subr.mxu0 0.0
    %3699 = vmatpush1.msra.mxu0 0.0
    %3700 = vmatprep.subr.mxu0 0.0
    %3701 = vmatpush1.msra.mxu0 0.0
    %3702 = vmatprep.subr.mxu0 0.0
    %3703 = vmatpush1.msra.mxu0 0.0
    %3704 = vmatprep.subr.mxu0 0.0
    %3705 = vmatpush1.msra.mxu0 0.0
    %3706 = vmatprep.subr.mxu0 0.0
    %3707 = vmatpush1.msra.mxu0 0.0
    %3708 = vmatprep.subr.mxu0 0.0
    %3709 = vmatpush1.msra.mxu0 0.0
    %3710 = vmatprep.subr.mxu0 0.0
    %3711 = vmatpush1.msra.mxu0 0.0
    %3712 = vmatprep.subr.mxu0 0.0
    %3713 = vmatpush1.msra.mxu0 0.0
    %3714 = vmatprep.subr.mxu0 0.0
    %3715 = vmatpush1.msra.mxu0 0.0
    %3716 = vmatprep.subr.mxu0 0.0
    %3717 = vmatpush1.msra.mxu0 0.0
    %3718 = vmatprep.subr.mxu0 0.0
    %3719 = vmatpush1.msra.mxu0 0.0
    %3720 = vmatprep.subr.mxu0 0.0
    %3721 = vmatpush1.msra.mxu0 0.0
    %3722 = vmatprep.subr.mxu0 0.0
    %3723 = vmatpush1.msra.mxu0 0.0
    %3724 = vmatprep.subr.mxu0 0.0
    %3725 = vmatpush1.msra.mxu0 0.0
    %3726 = vmatprep.subr.mxu0 0.0
    %3727 = vmatpush1.msra.mxu0 0.0
    %3728 = vmatprep.subr.mxu0 0.0
    %3729 = vmatpush1.msra.mxu0 0.0
    %3730 = vmatprep.subr.mxu0 0.0
    %3731 = vmatpush1.msra.mxu0 0.0
    %3732 = vmatprep.subr.mxu0 0.0
    %3733 = vmatpush1.msra.mxu0 0.0
    %3734 = vmatprep.subr.mxu0 0.0
    %3735 = vmatpush1.msra.mxu0 0.0
    %3736 = vmatprep.subr.mxu0 0.0
    %3737 = vmatpush1.msra.mxu0 0.0
    %3738 = vmatprep.subr.mxu0 0.0
    %3739 = vmatpush1.msra.mxu0 0.0
    %3740 = vmatprep.subr.mxu0 0.0
    %3741 = vmatpush1.msra.mxu0 0.0
    %3742 = vmatprep.subr.mxu0 0.0
    %3743 = vmatpush1.msra.mxu0 0.0
    %3744 = vmatprep.subr.mxu0 0.0
    %3745 = vmatpush1.msra.mxu0 0.0
    %3746 = vmatprep.subr.mxu0 0.0
    %3747 = vmatpush1.msra.mxu0 0.0
    %3748 = vmatprep.subr.mxu0 0.0
    %3749 = vmatpush1.msra.mxu0 0.0
    %3750 = vmatprep.subr.mxu0 0.0
    %3751 = vmatpush1.msra.mxu0 0.0
    %3752 = vmatprep.subr.mxu0 0.0
    %3753 = vmatpush1.msra.mxu0 0.0
    %3754 = vmatprep.subr.mxu0 0.0
    %3755 = vmatpush1.msra.mxu0 0.0
    %3756 = vmatprep.subr.mxu0 0.0
    %3757 = vmatpush1.msra.mxu0 0.0
    %3758 = vmatprep.mubr.f32.mxu0 0.0
    %3759 = vmatmul.mubr.f32.gmra.mrb[0].mxu0 %v3646
    %v3760 = vpop.f32.mrb[0].mxu0
    %v3761 = vadd.f32 0.0, %v3760
    %v3762 = vpop.f32.mrb[0].mxu0
    %3763 = vmatprep.mubr.f32.mxu0 0.0
    %3764 = vmatmul.mubr.f32.gmra.mrb[0].mxu0 %v3648
    %v3765 = vpop.f32.mrb[0].mxu0
    %v3766 = vadd.f32 0.0, %v3765
    %v3767 = vpop.f32.mrb[0].mxu0
    %3768 = vmatprep.mubr.f32.mxu0 0.0
    %3769 = vmatmul.mubr.f32.gmra.mrb[0].mxu0 %v3650
    %v3770 = vpop.f32.mrb[0].mxu0
    %v3771 = vadd.f32 0.0, %v3770
    %v3772 = vpop.f32.mrb[0].mxu0
    %3773 = vmatprep.mubr.f32.mxu0 0.0
    %3774 = vmatmul.mubr.f32.gmra.mrb[0].mxu0 %v3652
    %v3775 = vpop.f32.mrb[0].mxu0
    %v3776 = vadd.f32 0.0, %v3775
    %v3777 = vpop.f32.mrb[0].mxu0
    %3778 = vmatprep.mubr.f32.mxu0 0.0
    %3779 = vmatmul.mubr.f32.gmra.mrb[0].mxu0 %v3654
    %v3780 = vpop.f32.mrb[0].mxu0
    %v3781 = vadd.f32 0.0, %v3780
    %v3782 = vpop.f32.mrb[0].mxu0
    %3783 = vmatprep.mubr.f32.mxu0 0.0
    %3784 = vmatmul.mubr.f32.gmra.mrb[0].mxu0 %v3656
    %v3785 = vpop.f32.mrb[0].mxu0
    %v3786 = vadd.f32 0.0, %v3785
    %v3787 = vpop.f32.mrb[0].mxu0
    %3788 = vmatprep.mubr.f32.mxu0 0.0
    %3789 = vmatmul.mubr.f32.gmra.mrb[0].mxu0 %v3658
    %v3790 = vpop.f32.mrb[0].mxu0
    %v3791 = vadd.f32 0.0, %v3790
    %v3792 = vpop.f32.mrb[0].mxu0
    %3793 = vmatprep.mubr.f32.mxu0 0.0
    %3794 = vmatmul.mubr.f32.gmra.mrb[0].mxu0 %v3660
    %v3795 = vpop.f32.mrb[0].mxu0
    %v3796 = vadd.f32 0.0, %v3795
    %v3797 = vpop.f32.mrb[0].mxu0
    %3798 = vmatprep.mubr.f32.mxu0 0.0
    %3799 = vmatmul.mubr.f32.gmra.mrb[0].mxu0 %v3662
    %v3800 = vpop.f32.mrb[0].mxu0
    %v3801 = vadd.f32 0.0, %v3800
    %v3802 = vpop.f32.mrb[0].mxu0
    %3803 = vmatprep.mubr.f32.mxu0 0.0
    %3804 = vmatmul.mubr.f32.gmra.mrb[0].mxu0 %v3664
    %v3805 = vpop.f32.mrb[0].mxu0
    %v3806 = vadd.f32 0.0, %v3805
    %v3807 = vpop.f32.mrb[0].mxu0
    %3808 = vmatprep.mubr.f32.mxu0 0.0
    %3809 = vmatmul.mubr.f32.gmra.mrb[0].mxu0 %v3666
    %v3810 = vpop.f32.mrb[0].mxu0
    %v3811 = vadd.f32 0.0, %v3810
    %v3812 = vpop.f32.mrb[0].mxu0
    %3813 = vmatprep.mubr.f32.mxu0 0.0
    %3814 = vmatmul.mubr.f32.gmra.mrb[0].mxu0 %v3668
    %v3815 = vpop.f32.mrb[0].mxu0
    %v3816 = vadd.f32 0.0, %v3815
    %v3817 = vpop.f32.mrb[0].mxu0
    %3818 = vmatprep.mubr.f32.mxu0 0.0
    %3819 = vmatmul.mubr.f32.gmra.mrb[0].mxu0 %v3670
    %v3820 = vpop.f32.mrb[0].mxu0
    %v3821 = vadd.f32 0.0, %v3820
    %v3822 = vpop.f32.mrb[0].mxu0
    %3823 = vmatprep.mubr.f32.mxu0 0.0
    %3824 = vmatmul.mubr.f32.gmra.mrb[0].mxu0 %v3672
    %v3825 = vpop.f32.mrb[0].mxu0
    %v3826 = vadd.f32 0.0, %v3825
    %v3827 = vpop.f32.mrb[0].mxu0
    %3828 = vmatprep.mubr.f32.mxu0 0.0
    %3829 = vmatmul.mubr.f32.gmra.mrb[0].mxu0 %v3674
    %v3830 = vpop.f32.mrb[0].mxu0
    %v3831 = vadd.f32 0.0, %v3830
    %v3832 = vpop.f32.mrb[0].mxu0
    %3833 = vmatprep.mubr.f32.mxu0 0.0
    %3834 = vmatmul.mubr.f32.gmra.mrb[0].mxu0 %v3676
    %v3835 = vpop.f32.mrb[0].mxu0
    %v3836 = vadd.f32 0.0, %v3835
    %v3837 = vpop.f32.mrb[0].mxu0
    %3838 = vmatprep.mubr.f32.mxu0 0.0
    %3839 = vmatmul.mubr.f32.gmra.mrb[0].mxu0 %v3678
    %v3840 = vpop.f32.mrb[0].mxu0
    %v3841 = vadd.f32 0.0, %v3840
    %v3842 = vpop.f32.mrb[0].mxu0
    %3843 = vmatprep.mubr.f32.mxu0 0.0
    %3844 = vmatmul.mubr.f32.gmra.mrb[0].mxu0 %v3680
    %v3845 = vpop.f32.mrb[0].mxu0
    %v3846 = vadd.f32 0.0, %v3845
    %v3847 = vpop.f32.mrb[0].mxu0
    %3848 = vmatprep.mubr.f32.mxu0 0.0
    %3849 = vmatmul.mubr.f32.gmra.mrb[0].mxu0 %v3682
    %v3850 = vpop.f32.mrb[0].mxu0
    %v3851 = vadd.f32 0.0, %v3850
    %v3852 = vpop.f32.mrb[0].mxu0
    %3853 = vmatprep.mubr.f32.mxu0 0.0
    %3854 = vmatmul.mubr.f32.gmra.mrb[0].mxu0 %v3684
    %v3855 = vpop.f32.mrb[0].mxu0
    %v3856 = vadd.f32 0.0, %v3855
    %v3857 = vpop.f32.mrb[0].mxu0
    %3858 = vmatprep.mubr.f32.mxu0 0.0
    %3859 = vmatmul.mubr.f32.gmra.mrb[0].mxu0 %v3686
    %v3860 = vpop.f32.mrb[0].mxu0
    %v3861 = vadd.f32 0.0, %v3860
    %v3862 = vpop.f32.mrb[0].mxu0
    %3863 = vmatprep.mubr.f32.mxu0 0.0
    %3864 = vmatmul.mubr.f32.gmra.mrb[0].mxu0 %v3688
    %v3865 = vpop.f32.mrb[0].mxu0
    %v3866 = vadd.f32 0.0, %v3865
    %v3867 = vpop.f32.mrb[0].mxu0
    %3868 = vmatprep.mubr.f32.mxu0 0.0
    %3869 = vmatmul.mubr.f32.gmra.mrb[0].mxu0 %v3690
    %v3870 = vpop.f32.mrb[0].mxu0
    %v3871 = vadd.f32 0.0, %v3870
    %v3872 = vpop.f32.mrb[0].mxu0
    %3873 = vmatprep.mubr.f32.mxu0 0.0
    %3874 = vmatmul.mubr.f32.gmra.mrb[0].mxu0 %v3692
    %v3875 = vpop.f32.mrb[0].mxu0
    %v3876 = vadd.f32 0.0, %v3875
    %v3877 = vpop.f32.mrb[0].mxu0
    %3878 = vdwg.mxu0
    %v3879 = vsel %vm2679, %v3201, %v3642
    %v3881 = vsel %vm297, %v3545, 0
    %v3883 = vsel %vm297, %v3546, 0
    %v3885 = vsel %vm297, %v3547, 0
    %v3887 = vsel %vm297, %v3548, 0
    %v3889 = vsel %vm297, %v3549, 0
    %v3891 = vsel %vm297, %v3550, 0
    %v3893 = vsel %vm297, %v3551, 0
    %v3895 = vsel %vm297, %v3552, 0
    %v3897 = vsel %vm297, %v3553, 0
    %v3899 = vsel %vm297, %v3554, 0
    %v3901 = vsel %vm297, %v3555, 0
    %v3903 = vsel %vm297, %v3556, 0
    %v3905 = vsel %vm297, %v3557, 0
    %v3907 = vsel %vm297, %v3558, 0
    %v3909 = vsel %vm297, %v3559, 0
    %v3911 = vsel %vm297, %v3560, 0
    %v3913 = vsel %vm297, %v3561, 0
    %v3915 = vsel %vm297, %v3562, 0
    %v3917 = vsel %vm297, %v3563, 0
    %v3919 = vsel %vm297, %v3564, 0
    %v3921 = vsel %vm297, %v3565, 0
    %v3923 = vsel %vm297, %v3566, 0
    %v3925 = vsel %vm297, %v3567, 0
    %v3927 = vsel %vm297, %v3568, 0
    %3929 = vmatprep.subr.mxu0 0.0
    %3930 = vmatpush1.msra.mxu0 %v3879
    %3931 = vmatprep.subr.mxu0 0.0
    %3932 = vmatpush1.msra.mxu0 0.0
    %3933 = vmatprep.subr.mxu0 0.0
    %3934 = vmatpush1.msra.mxu0 0.0
    %3935 = vmatprep.subr.mxu0 0.0
    %3936 = vmatpush1.msra.mxu0 0.0
    %3937 = vmatprep.subr.mxu0 0.0
    %3938 = vmatpush1.msra.mxu0 0.0
    %3939 = vmatprep.subr.mxu0 0.0
    %3940 = vmatpush1.msra.mxu0 0.0
    %3941 = vmatprep.subr.mxu0 0.0
    %3942 = vmatpush1.msra.mxu0 0.0
    %3943 = vmatprep.subr.mxu0 0.0
    %3944 = vmatpush1.msra.mxu0 0.0
    %3945 = vmatprep.subr.mxu0 0.0
    %3946 = vmatpush1.msra.mxu0 0.0
    %3947 = vmatprep.subr.mxu0 0.0
    %3948 = vmatpush1.msra.mxu0 0.0
    %3949 = vmatprep.subr.mxu0 0.0
    %3950 = vmatpush1.msra.mxu0 0.0
    %3951 = vmatprep.subr.mxu0 0.0
    %3952 = vmatpush1.msra.mxu0 0.0
    %3953 = vmatprep.subr.mxu0 0.0
    %3954 = vmatpush1.msra.mxu0 0.0
    %3955 = vmatprep.subr.mxu0 0.0
    %3956 = vmatpush1.msra.mxu0 0.0
    %3957 = vmatprep.subr.mxu0 0.0
    %3958 = vmatpush1.msra.mxu0 0.0
    %3959 = vmatprep.subr.mxu0 0.0
    %3960 = vmatpush1.msra.mxu0 0.0
    %3961 = vmatprep.subr.mxu0 0.0
    %3962 = vmatpush1.msra.mxu0 0.0
    %3963 = vmatprep.subr.mxu0 0.0
    %3964 = vmatpush1.msra.mxu0 0.0
    %3965 = vmatprep.subr.mxu0 0.0
    %3966 = vmatpush1.msra.mxu0 0.0
    %3967 = vmatprep.subr.mxu0 0.0
    %3968 = vmatpush1.msra.mxu0 0.0
    %3969 = vmatprep.subr.mxu0 0.0
    %3970 = vmatpush1.msra.mxu0 0.0
    %3971 = vmatprep.subr.mxu0 0.0
    %3972 = vmatpush1.msra.mxu0 0.0
    %3973 = vmatprep.subr.mxu0 0.0
    %3974 = vmatpush1.msra.mxu0 0.0
    %3975 = vmatprep.subr.mxu0 0.0
    %3976 = vmatpush1.msra.mxu0 0.0
    %3977 = vmatprep.subr.mxu0 0.0
    %3978 = vmatpush1.msra.mxu0 0.0
    %3979 = vmatprep.subr.mxu0 0.0
    %3980 = vmatpush1.msra.mxu0 0.0
    %3981 = vmatprep.subr.mxu0 0.0
    %3982 = vmatpush1.msra.mxu0 0.0
    %3983 = vmatprep.subr.mxu0 0.0
    %3984 = vmatpush1.msra.mxu0 0.0
    %3985 = vmatprep.subr.mxu0 0.0
    %3986 = vmatpush1.msra.mxu0 0.0
    %3987 = vmatprep.subr.mxu0 0.0
    %3988 = vmatpush1.msra.mxu0 0.0
    %3989 = vmatprep.subr.mxu0 0.0
    %3990 = vmatpush1.msra.mxu0 0.0
    %3991 = vmatprep.subr.mxu0 0.0
    %3992 = vmatpush1.msra.mxu0 0.0
    %3993 = vmatprep.mubr.f32.mxu0 0.0
    %3994 = vmatmul.mubr.f32.gmra.mrb[0].mxu0 %v3881
    %v3995 = vpop.f32.mrb[0].mxu0
    %v3996 = vadd.f32 %v3761, %v3995
    %v3997 = vpop.f32.mrb[0].mxu0
    %3998 = vmatprep.mubr.f32.mxu0 0.0
    %3999 = vmatmul.mubr.f32.gmra.mrb[0].mxu0 %v3883
    %v4000 = vpop.f32.mrb[0].mxu0
    %v4001 = vadd.f32 %v3766, %v4000
    %v4002 = vpop.f32.mrb[0].mxu0
    %4003 = vmatprep.mubr.f32.mxu0 0.0
    %4004 = vmatmul.mubr.f32.gmra.mrb[0].mxu0 %v3885
    %v4005 = vpop.f32.mrb[0].mxu0
    %v4006 = vadd.f32 %v3771, %v4005
    %v4007 = vpop.f32.mrb[0].mxu0
    %4008 = vmatprep.mubr.f32.mxu0 0.0
    %4009 = vmatmul.mubr.f32.gmra.mrb[0].mxu0 %v3887
    %v4010 = vpop.f32.mrb[0].mxu0
    %v4011 = vadd.f32 %v3776, %v4010
    %v4012 = vpop.f32.mrb[0].mxu0
    %4013 = vmatprep.mubr.f32.mxu0 0.0
    %4014 = vmatmul.mubr.f32.gmra.mrb[0].mxu0 %v3889
    %v4015 = vpop.f32.mrb[0].mxu0
    %v4016 = vadd.f32 %v3781, %v4015
    %v4017 = vpop.f32.mrb[0].mxu0
    %4018 = vmatprep.mubr.f32.mxu0 0.0
    %4019 = vmatmul.mubr.f32.gmra.mrb[0].mxu0 %v3891
    %v4020 = vpop.f32.mrb[0].mxu0
    %v4021 = vadd.f32 %v3786, %v4020
    %v4022 = vpop.f32.mrb[0].mxu0
    %4023 = vmatprep.mubr.f32.mxu0 0.0
    %4024 = vmatmul.mubr.f32.gmra.mrb[0].mxu0 %v3893
    %v4025 = vpop.f32.mrb[0].mxu0
    %v4026 = vadd.f32 %v3791, %v4025
    %v4027 = vpop.f32.mrb[0].mxu0
    %4028 = vmatprep.mubr.f32.mxu0 0.0
    %4029 = vmatmul.mubr.f32.gmra.mrb[0].mxu0 %v3895
    %v4030 = vpop.f32.mrb[0].mxu0
    %v4031 = vadd.f32 %v3796, %v4030
    %v4032 = vpop.f32.mrb[0].mxu0
    %4033 = vmatprep.mubr.f32.mxu0 0.0
    %4034 = vmatmul.mubr.f32.gmra.mrb[0].mxu0 %v3897
    %v4035 = vpop.f32.mrb[0].mxu0
    %v4036 = vadd.f32 %v3801, %v4035
    %v4037 = vpop.f32.mrb[0].mxu0
    %4038 = vmatprep.mubr.f32.mxu0 0.0
    %4039 = vmatmul.mubr.f32.gmra.mrb[0].mxu0 %v3899
    %v4040 = vpop.f32.mrb[0].mxu0
    %v4041 = vadd.f32 %v3806, %v4040
    %v4042 = vpop.f32.mrb[0].mxu0
    %4043 = vmatprep.mubr.f32.mxu0 0.0
    %4044 = vmatmul.mubr.f32.gmra.mrb[0].mxu0 %v3901
    %v4045 = vpop.f32.mrb[0].mxu0
    %v4046 = vadd.f32 %v3811, %v4045
    %v4047 = vpop.f32.mrb[0].mxu0
    %4048 = vmatprep.mubr.f32.mxu0 0.0
    %4049 = vmatmul.mubr.f32.gmra.mrb[0].mxu0 %v3903
    %v4050 = vpop.f32.mrb[0].mxu0
    %v4051 = vadd.f32 %v3816, %v4050
    %v4052 = vpop.f32.mrb[0].mxu0
    %4053 = vmatprep.mubr.f32.mxu0 0.0
    %4054 = vmatmul.mubr.f32.gmra.mrb[0].mxu0 %v3905
    %v4055 = vpop.f32.mrb[0].mxu0
    %v4056 = vadd.f32 %v3821, %v4055
    %v4057 = vpop.f32.mrb[0].mxu0
    %4058 = vmatprep.mubr.f32.mxu0 0.0
    %4059 = vmatmul.mubr.f32.gmra.mrb[0].mxu0 %v3907
    %v4060 = vpop.f32.mrb[0].mxu0
    %v4061 = vadd.f32 %v3826, %v4060
    %v4062 = vpop.f32.mrb[0].mxu0
    %4063 = vmatprep.mubr.f32.mxu0 0.0
    %4064 = vmatmul.mubr.f32.gmra.mrb[0].mxu0 %v3909
    %v4065 = vpop.f32.mrb[0].mxu0
    %v4066 = vadd.f32 %v3831, %v4065
    %v4067 = vpop.f32.mrb[0].mxu0
    %4068 = vmatprep.mubr.f32.mxu0 0.0
    %4069 = vmatmul.mubr.f32.gmra.mrb[0].mxu0 %v3911
    %v4070 = vpop.f32.mrb[0].mxu0
    %v4071 = vadd.f32 %v3836, %v4070
    %v4072 = vpop.f32.mrb[0].mxu0
    %4073 = vmatprep.mubr.f32.mxu0 0.0
    %4074 = vmatmul.mubr.f32.gmra.mrb[0].mxu0 %v3913
    %v4075 = vpop.f32.mrb[0].mxu0
    %v4076 = vadd.f32 %v3841, %v4075
    %v4077 = vpop.f32.mrb[0].mxu0
    %4078 = vmatprep.mubr.f32.mxu0 0.0
    %4079 = vmatmul.mubr.f32.gmra.mrb[0].mxu0 %v3915
    %v4080 = vpop.f32.mrb[0].mxu0
    %v4081 = vadd.f32 %v3846, %v4080
    %v4082 = vpop.f32.mrb[0].mxu0
    %4083 = vmatprep.mubr.f32.mxu0 0.0
    %4084 = vmatmul.mubr.f32.gmra.mrb[0].mxu0 %v3917
    %v4085 = vpop.f32.mrb[0].mxu0
    %v4086 = vadd.f32 %v3851, %v4085
    %v4087 = vpop.f32.mrb[0].mxu0
    %4088 = vmatprep.mubr.f32.mxu0 0.0
    %4089 = vmatmul.mubr.f32.gmra.mrb[0].mxu0 %v3919
    %v4090 = vpop.f32.mrb[0].mxu0
    %v4091 = vadd.f32 %v3856, %v4090
    %v4092 = vpop.f32.mrb[0].mxu0
    %4093 = vmatprep.mubr.f32.mxu0 0.0
    %4094 = vmatmul.mubr.f32.gmra.mrb[0].mxu0 %v3921
    %v4095 = vpop.f32.mrb[0].mxu0
    %v4096 = vadd.f32 %v3861, %v4095
    %v4097 = vpop.f32.mrb[0].mxu0
    %4098 = vmatprep.mubr.f32.mxu0 0.0
    %4099 = vmatmul.mubr.f32.gmra.mrb[0].mxu0 %v3923
    %v4100 = vpop.f32.mrb[0].mxu0
    %v4101 = vadd.f32 %v3866, %v4100
    %v4102 = vpop.f32.mrb[0].mxu0
    %4103 = vmatprep.mubr.f32.mxu0 0.0
    %4104 = vmatmul.mubr.f32.gmra.mrb[0].mxu0 %v3925
    %v4105 = vpop.f32.mrb[0].mxu0
    %v4106 = vadd.f32 %v3871, %v4105
    %v4107 = vpop.f32.mrb[0].mxu0
    %4108 = vmatprep.mubr.f32.mxu0 0.0
    %4109 = vmatmul.mubr.f32.gmra.mrb[0].mxu0 %v3927
    %v4110 = vpop.f32.mrb[0].mxu0
    %v4111 = vadd.f32 %v3876, %v4110
    %v4112 = vpop.f32.mrb[0].mxu0
    %4113 = vdwg.mxu0
    %v4114 = vlaneseq
    %v4115 = vshrl.u32 %v4114, 7
    %v4116 = vsub.s32 6, %v4115
    %v4117 = vrot.slane %v1928, %v4116
    %v4118 = vadd.f32 %v3996, %v4117
    %v4119 = vadd.f32 %v4001, %v4117
    %v4120 = vadd.f32 %v4006, %v4117
    %v4121 = vadd.f32 %v4011, %v4117
    %v4122 = vadd.f32 %v4016, %v4117
    %v4123 = vadd.f32 %v4021, %v4117
    %v4124 = vadd.f32 %v4026, %v4117
    %v4125 = vadd.f32 %v4031, %v4117
    %v4126 = vadd.f32 %v4036, %v4117
    %v4127 = vadd.f32 %v4041, %v4117
    %v4128 = vadd.f32 %v4046, %v4117
    %v4129 = vadd.f32 %v4051, %v4117
    %v4130 = vadd.f32 %v4056, %v4117
    %v4131 = vadd.f32 %v4061, %v4117
    %v4132 = vadd.f32 %v4066, %v4117
    %v4133 = vadd.f32 %v4071, %v4117
    %v4134 = vadd.f32 %v4076, %v4117
    %v4135 = vadd.f32 %v4081, %v4117
    %v4136 = vadd.f32 %v4086, %v4117
    %v4137 = vadd.f32 %v4091, %v4117
    %v4138 = vadd.f32 %v4096, %v4117
    %v4139 = vadd.f32 %v4101, %v4117
    %v4140 = vadd.f32 %v4106, %v4117
    %v4141 = vadd.f32 %v4111, %v4117
    %v4142 = vmax.f32 %v4118, 0.0
    %v4143 = vmax.f32 %v4119, 0.0
    %v4144 = vmax.f32 %v4120, 0.0
    %v4145 = vmax.f32 %v4121, 0.0
    %v4146 = vmax.f32 %v4122, 0.0
    %v4147 = vmax.f32 %v4123, 0.0
    %v4148 = vmax.f32 %v4124, 0.0
    %v4149 = vmax.f32 %v4125, 0.0
    %v4150 = vmax.f32 %v4126, 0.0
    %v4151 = vmax.f32 %v4127, 0.0
    %v4152 = vmax.f32 %v4128, 0.0
    %v4153 = vmax.f32 %v4129, 0.0
    %v4154 = vmax.f32 %v4130, 0.0
    %v4155 = vmax.f32 %v4131, 0.0
    %v4156 = vmax.f32 %v4132, 0.0
    %v4157 = vmax.f32 %v4133, 0.0
    %v4158 = vmax.f32 %v4134, 0.0
    %v4159 = vmax.f32 %v4135, 0.0
    %v4160 = vmax.f32 %v4136, 0.0
    %v4161 = vmax.f32 %v4137, 0.0
    %v4162 = vmax.f32 %v4138, 0.0
    %v4163 = vmax.f32 %v4139, 0.0
    %v4164 = vmax.f32 %v4140, 0.0
    %v4165 = vmax.f32 %v4141, 0.0
    %v4166 = vlaneseq
    %v4167 = vshrl.u32 %v4166, 7
    %v4168 = vsub.s32 7, %v4167
    %v4169 = vrot.slane %v1928, %v4168
    %v4170 = vmul.f32 %v4142, %v4169
    %v4171 = vmul.f32 %v4143, %v4169
    %v4172 = vmul.f32 %v4144, %v4169
    %v4173 = vmul.f32 %v4145, %v4169
    %v4174 = vmul.f32 %v4146, %v4169
    %v4175 = vmul.f32 %v4147, %v4169
    %v4176 = vmul.f32 %v4148, %v4169
    %v4177 = vmul.f32 %v4149, %v4169
    %v4178 = vmul.f32 %v4150, %v4169
    %v4179 = vmul.f32 %v4151, %v4169
    %v4180 = vmul.f32 %v4152, %v4169
    %v4181 = vmul.f32 %v4153, %v4169
    %v4182 = vmul.f32 %v4154, %v4169
    %v4183 = vmul.f32 %v4155, %v4169
    %v4184 = vmul.f32 %v4156, %v4169
    %v4185 = vmul.f32 %v4157, %v4169
    %v4186 = vmul.f32 %v4158, %v4169
    %v4187 = vmul.f32 %v4159, %v4169
    %v4188 = vmul.f32 %v4160, %v4169
    %v4189 = vmul.f32 %v4161, %v4169
    %v4190 = vmul.f32 %v4162, %v4169
    %v4191 = vmul.f32 %v4163, %v4169
    %v4192 = vmul.f32 %v4164, %v4169
    %v4193 = vmul.f32 %v4165, %v4169
    %v4194 = vlaneseq
    %v4195 = vshrl.u32 %v4194, 7
    %v4196 = vsub.s32 0, %v4195
    %v4197 = vrot.slane %v1929, %v4196
    %v4198 = vadd.f32 %v4170, %v4197
    %v4199 = vadd.f32 %v4171, %v4197
    %v4200 = vadd.f32 %v4172, %v4197
    %v4201 = vadd.f32 %v4173, %v4197
    %v4202 = vadd.f32 %v4174, %v4197
    %v4203 = vadd.f32 %v4175, %v4197
    %v4204 = vadd.f32 %v4176, %v4197
    %v4205 = vadd.f32 %v4177, %v4197
    %v4206 = vadd.f32 %v4178, %v4197
    %v4207 = vadd.f32 %v4179, %v4197
    %v4208 = vadd.f32 %v4180, %v4197
    %v4209 = vadd.f32 %v4181, %v4197
    %v4210 = vadd.f32 %v4182, %v4197
    %v4211 = vadd.f32 %v4183, %v4197
    %v4212 = vadd.f32 %v4184, %v4197
    %v4213 = vadd.f32 %v4185, %v4197
    %v4214 = vadd.f32 %v4186, %v4197
    %v4215 = vadd.f32 %v4187, %v4197
    %v4216 = vadd.f32 %v4188, %v4197
    %v4217 = vadd.f32 %v4189, %v4197
    %v4218 = vadd.f32 %v4190, %v4197
    %v4219 = vadd.f32 %v4191, %v4197
    %v4220 = vadd.f32 %v4192, %v4197
    %v4221 = vadd.f32 %v4193, %v4197
    %v4222 = vld [vmem:[%s5] sm:$0xff]
    %v4223 = vld [vmem:[%s5 + $0x8] sm:$0xff]
    %v4224 = vld [vmem:[%s5 + $0x10] sm:$0xff]
    %v4225 = vld [vmem:[%s5 + $0x18] sm:$0xff]
    %v4226 = vld [vmem:[%s5 + $0x20] sm:$0xff]
    %v4227 = vld [vmem:[%s5 + $0x28] sm:$0xff]
    %v4228 = vld [vmem:[%s5 + $0x30] sm:$0xff]
    %v4229 = vld [vmem:[%s5 + $0x38] sm:$0xff]
    %v4230 = vld [vmem:[%s5 + $0x40] sm:$0xff]
    %v4231 = vld [vmem:[%s5 + $0x48] sm:$0xff]
    %v4232 = vld [vmem:[%s5 + $0x50] sm:$0xff]
    %v4233 = vld [vmem:[%s5 + $0x58] sm:$0xff]
    %v4234 = vld [vmem:[%s5 + $0x60] sm:$0xff]
    %v4235 = vld [vmem:[%s5 + $0x68] sm:$0xff]
    %v4236 = vld [vmem:[%s5 + $0x70] sm:$0xff]
    %v4237 = vld [vmem:[%s5 + $0x78] sm:$0xff]
    %v4238 = vld [vmem:[%s5 + $0x80] sm:$0xff]
    %v4239 = vld [vmem:[%s5 + $0x88] sm:$0xff]
    %v4240 = vld [vmem:[%s5 + $0x90] sm:$0xff]
    %v4241 = vld [vmem:[%s5 + $0x98] sm:$0xff]
    %v4242 = vld [vmem:[%s5 + $0xa0] sm:$0xff]
    %v4243 = vld [vmem:[%s5 + $0xa8] sm:$0xff]
    %v4244 = vld [vmem:[%s5 + $0xb0] sm:$0xff]
    %v4245 = vld [vmem:[%s5 + $0xb8] sm:$0xf]
    %4247 = vset.pattern.permute.xlu0 0
    %4248 = vperm.xlu0 %4247, %v4198
    %v4249 = vpop.permute.xlu0 %4248
    %4252 = vset.pattern.permute.xlu0 0
    %4253 = vperm.xlu0 %4252, %v4199
    %v4254 = vpop.permute.xlu0 %4253
    %4257 = vset.pattern.permute.xlu0 0
    %4258 = vperm.xlu0 %4257, %v4200
    %v4259 = vpop.permute.xlu0 %4258
    %4262 = vset.pattern.permute.xlu0 0
    %4263 = vperm.xlu0 %4262, %v4201
    %v4264 = vpop.permute.xlu0 %4263
    %4267 = vset.pattern.permute.xlu0 0
    %4268 = vperm.xlu0 %4267, %v4202
    %v4269 = vpop.permute.xlu0 %4268
    %4272 = vset.pattern.permute.xlu0 0
    %4273 = vperm.xlu0 %4272, %v4203
    %v4274 = vpop.permute.xlu0 %4273
    %4277 = vset.pattern.permute.xlu0 0
    %4278 = vperm.xlu0 %4277, %v4204
    %v4279 = vpop.permute.xlu0 %4278
    %4282 = vset.pattern.permute.xlu0 0
    %4283 = vperm.xlu0 %4282, %v4205
    %v4284 = vpop.permute.xlu0 %4283
    %4287 = vset.pattern.permute.xlu0 0
    %4288 = vperm.xlu0 %4287, %v4206
    %v4289 = vpop.permute.xlu0 %4288
    %4292 = vset.pattern.permute.xlu0 0
    %4293 = vperm.xlu0 %4292, %v4207
    %v4294 = vpop.permute.xlu0 %4293
    %4297 = vset.pattern.permute.xlu0 0
    %4298 = vperm.xlu0 %4297, %v4208
    %v4299 = vpop.permute.xlu0 %4298
    %4302 = vset.pattern.permute.xlu0 0
    %4303 = vperm.xlu0 %4302, %v4209
    %v4304 = vpop.permute.xlu0 %4303
    %4307 = vset.pattern.permute.xlu0 0
    %4308 = vperm.xlu0 %4307, %v4210
    %v4309 = vpop.permute.xlu0 %4308
    %4312 = vset.pattern.permute.xlu0 0
    %4313 = vperm.xlu0 %4312, %v4211
    %v4314 = vpop.permute.xlu0 %4313
    %4317 = vset.pattern.permute.xlu0 0
    %4318 = vperm.xlu0 %4317, %v4212
    %v4319 = vpop.permute.xlu0 %4318
    %4322 = vset.pattern.permute.xlu0 0
    %4323 = vperm.xlu0 %4322, %v4213
    %v4324 = vpop.permute.xlu0 %4323
    %4327 = vset.pattern.permute.xlu0 0
    %4328 = vperm.xlu0 %4327, %v4214
    %v4329 = vpop.permute.xlu0 %4328
    %4332 = vset.pattern.permute.xlu0 0
    %4333 = vperm.xlu0 %4332, %v4215
    %v4334 = vpop.permute.xlu0 %4333
    %4337 = vset.pattern.permute.xlu0 0
    %4338 = vperm.xlu0 %4337, %v4216
    %v4339 = vpop.permute.xlu0 %4338
    %4342 = vset.pattern.permute.xlu0 0
    %4343 = vperm.xlu0 %4342, %v4217
    %v4344 = vpop.permute.xlu0 %4343
    %4347 = vset.pattern.permute.xlu0 0
    %4348 = vperm.xlu0 %4347, %v4218
    %v4349 = vpop.permute.xlu0 %4348
    %4352 = vset.pattern.permute.xlu0 0
    %4353 = vperm.xlu0 %4352, %v4219
    %v4354 = vpop.permute.xlu0 %4353
    %4357 = vset.pattern.permute.xlu0 0
    %4358 = vperm.xlu0 %4357, %v4220
    %v4359 = vpop.permute.xlu0 %4358
    %4362 = vset.pattern.permute.xlu0 0
    %4363 = vperm.xlu0 %4362, %v4221
    %v4364 = vpop.permute.xlu0 %4363
    %v4366 = vmul.f32 %v4249, %v4222
    %v4367 = vmul.f32 %v4254, %v4223
    %v4368 = vmul.f32 %v4259, %v4224
    %v4369 = vmul.f32 %v4264, %v4225
    %v4370 = vmul.f32 %v4269, %v4226
    %v4371 = vmul.f32 %v4274, %v4227
    %v4372 = vmul.f32 %v4279, %v4228
    %v4373 = vmul.f32 %v4284, %v4229
    %v4374 = vmul.f32 %v4289, %v4230
    %v4375 = vmul.f32 %v4294, %v4231
    %v4376 = vmul.f32 %v4299, %v4232
    %v4377 = vmul.f32 %v4304, %v4233
    %v4378 = vmul.f32 %v4309, %v4234
    %v4379 = vmul.f32 %v4314, %v4235
    %v4380 = vmul.f32 %v4319, %v4236
    %v4381 = vmul.f32 %v4324, %v4237
    %v4382 = vmul.f32 %v4329, %v4238
    %v4383 = vmul.f32 %v4334, %v4239
    %v4384 = vmul.f32 %v4339, %v4240
    %v4385 = vmul.f32 %v4344, %v4241
    %v4386 = vmul.f32 %v4349, %v4242
    %v4387 = vmul.f32 %v4354, %v4243
    %v4388 = vmul.f32 %v4359, %v4244
    %v4389 = vmul.f32 %v4364, %v4245
    %s4390 = scalar_lea.vmem %s5, 192
    %v4391 = vld [vmem:[%s4390] sm:$0xff]
    %v4392 = vld [vmem:[%s4390 + $0x8] sm:$0xff]
    %v4393 = vld [vmem:[%s4390 + $0x10] sm:$0xff]
    %v4394 = vld [vmem:[%s4390 + $0x18] sm:$0xff]
    %v4395 = vld [vmem:[%s4390 + $0x20] sm:$0xff]
    %v4396 = vld [vmem:[%s4390 + $0x28] sm:$0xff]
    %v4397 = vld [vmem:[%s4390 + $0x30] sm:$0xff]
    %v4398 = vld [vmem:[%s4390 + $0x38] sm:$0xff]
    %v4399 = vld [vmem:[%s4390 + $0x40] sm:$0xff]
    %v4400 = vld [vmem:[%s4390 + $0x48] sm:$0xff]
    %v4401 = vld [vmem:[%s4390 + $0x50] sm:$0xff]
    %v4402 = vld [vmem:[%s4390 + $0x58] sm:$0xff]
    %v4403 = vld [vmem:[%s4390 + $0x60] sm:$0xff]
    %v4404 = vld [vmem:[%s4390 + $0x68] sm:$0xff]
    %v4405 = vld [vmem:[%s4390 + $0x70] sm:$0xff]
    %v4406 = vld [vmem:[%s4390 + $0x78] sm:$0xff]
    %v4407 = vld [vmem:[%s4390 + $0x80] sm:$0xff]
    %v4408 = vld [vmem:[%s4390 + $0x88] sm:$0xff]
    %v4409 = vld [vmem:[%s4390 + $0x90] sm:$0xff]
    %v4410 = vld [vmem:[%s4390 + $0x98] sm:$0xff]
    %v4411 = vld [vmem:[%s4390 + $0xa0] sm:$0xff]
    %v4412 = vld [vmem:[%s4390 + $0xa8] sm:$0xff]
    %v4413 = vld [vmem:[%s4390 + $0xb0] sm:$0xff]
    %v4414 = vld [vmem:[%s4390 + $0xb8] sm:$0xf]
    %4415 = vset.pattern.permute.xlu0 1
    %4416 = vperm.xlu0 %4415, %v4198
    %v4417 = vpop.permute.xlu0 %4416
    %4419 = vset.pattern.permute.xlu0 1
    %4420 = vperm.xlu0 %4419, %v4199
    %v4421 = vpop.permute.xlu0 %4420
    %4423 = vset.pattern.permute.xlu0 1
    %4424 = vperm.xlu0 %4423, %v4200
    %v4425 = vpop.permute.xlu0 %4424
    %4427 = vset.pattern.permute.xlu0 1
    %4428 = vperm.xlu0 %4427, %v4201
    %v4429 = vpop.permute.xlu0 %4428
    %4431 = vset.pattern.permute.xlu0 1
    %4432 = vperm.xlu0 %4431, %v4202
    %v4433 = vpop.permute.xlu0 %4432
    %4435 = vset.pattern.permute.xlu0 1
    %4436 = vperm.xlu0 %4435, %v4203
    %v4437 = vpop.permute.xlu0 %4436
    %4439 = vset.pattern.permute.xlu0 1
    %4440 = vperm.xlu0 %4439, %v4204
    %v4441 = vpop.permute.xlu0 %4440
    %4443 = vset.pattern.permute.xlu0 1
    %4444 = vperm.xlu0 %4443, %v4205
    %v4445 = vpop.permute.xlu0 %4444
    %4447 = vset.pattern.permute.xlu0 1
    %4448 = vperm.xlu0 %4447, %v4206
    %v4449 = vpop.permute.xlu0 %4448
    %4451 = vset.pattern.permute.xlu0 1
    %4452 = vperm.xlu0 %4451, %v4207
    %v4453 = vpop.permute.xlu0 %4452
    %4455 = vset.pattern.permute.xlu0 1
    %4456 = vperm.xlu0 %4455, %v4208
    %v4457 = vpop.permute.xlu0 %4456
    %4459 = vset.pattern.permute.xlu0 1
    %4460 = vperm.xlu0 %4459, %v4209
    %v4461 = vpop.permute.xlu0 %4460
    %4463 = vset.pattern.permute.xlu0 1
    %4464 = vperm.xlu0 %4463, %v4210
    %v4465 = vpop.permute.xlu0 %4464
    %4467 = vset.pattern.permute.xlu0 1
    %4468 = vperm.xlu0 %4467, %v4211
    %v4469 = vpop.permute.xlu0 %4468
    %4471 = vset.pattern.permute.xlu0 1
    %4472 = vperm.xlu0 %4471, %v4212
    %v4473 = vpop.permute.xlu0 %4472
    %4475 = vset.pattern.permute.xlu0 1
    %4476 = vperm.xlu0 %4475, %v4213
    %v4477 = vpop.permute.xlu0 %4476
    %4479 = vset.pattern.permute.xlu0 1
    %4480 = vperm.xlu0 %4479, %v4214
    %v4481 = vpop.permute.xlu0 %4480
    %4483 = vset.pattern.permute.xlu0 1
    %4484 = vperm.xlu0 %4483, %v4215
    %v4485 = vpop.permute.xlu0 %4484
    %4487 = vset.pattern.permute.xlu0 1
    %4488 = vperm.xlu0 %4487, %v4216
    %v4489 = vpop.permute.xlu0 %4488
    %4491 = vset.pattern.permute.xlu0 1
    %4492 = vperm.xlu0 %4491, %v4217
    %v4493 = vpop.permute.xlu0 %4492
    %4495 = vset.pattern.permute.xlu0 1
    %4496 = vperm.xlu0 %4495, %v4218
    %v4497 = vpop.permute.xlu0 %4496
    %4499 = vset.pattern.permute.xlu0 1
    %4500 = vperm.xlu0 %4499, %v4219
    %v4501 = vpop.permute.xlu0 %4500
    %4503 = vset.pattern.permute.xlu0 1
    %4504 = vperm.xlu0 %4503, %v4220
    %v4505 = vpop.permute.xlu0 %4504
    %4507 = vset.pattern.permute.xlu0 1
    %4508 = vperm.xlu0 %4507, %v4221
    %v4509 = vpop.permute.xlu0 %4508
    %v4511 = vmul.f32 %v4417, %v4391
    %v4512 = vmul.f32 %v4421, %v4392
    %v4513 = vmul.f32 %v4425, %v4393
    %v4514 = vmul.f32 %v4429, %v4394
    %v4515 = vmul.f32 %v4433, %v4395
    %v4516 = vmul.f32 %v4437, %v4396
    %v4517 = vmul.f32 %v4441, %v4397
    %v4518 = vmul.f32 %v4445, %v4398
    %v4519 = vmul.f32 %v4449, %v4399
    %v4520 = vmul.f32 %v4453, %v4400
    %v4521 = vmul.f32 %v4457, %v4401
    %v4522 = vmul.f32 %v4461, %v4402
    %v4523 = vmul.f32 %v4465, %v4403
    %v4524 = vmul.f32 %v4469, %v4404
    %v4525 = vmul.f32 %v4473, %v4405
    %v4526 = vmul.f32 %v4477, %v4406
    %v4527 = vmul.f32 %v4481, %v4407
    %v4528 = vmul.f32 %v4485, %v4408
    %v4529 = vmul.f32 %v4489, %v4409
    %v4530 = vmul.f32 %v4493, %v4410
    %v4531 = vmul.f32 %v4497, %v4411
    %v4532 = vmul.f32 %v4501, %v4412
    %v4533 = vmul.f32 %v4505, %v4413
    %v4534 = vmul.f32 %v4509, %v4414
    %v4535 = vadd.f32 %v4366, %v4511
    %v4536 = vadd.f32 %v4367, %v4512
    %v4537 = vadd.f32 %v4368, %v4513
    %v4538 = vadd.f32 %v4369, %v4514
    %v4539 = vadd.f32 %v4370, %v4515
    %v4540 = vadd.f32 %v4371, %v4516
    %v4541 = vadd.f32 %v4372, %v4517
    %v4542 = vadd.f32 %v4373, %v4518
    %v4543 = vadd.f32 %v4374, %v4519
    %v4544 = vadd.f32 %v4375, %v4520
    %v4545 = vadd.f32 %v4376, %v4521
    %v4546 = vadd.f32 %v4377, %v4522
    %v4547 = vadd.f32 %v4378, %v4523
    %v4548 = vadd.f32 %v4379, %v4524
    %v4549 = vadd.f32 %v4380, %v4525
    %v4550 = vadd.f32 %v4381, %v4526
    %v4551 = vadd.f32 %v4382, %v4527
    %v4552 = vadd.f32 %v4383, %v4528
    %v4553 = vadd.f32 %v4384, %v4529
    %v4554 = vadd.f32 %v4385, %v4530
    %v4555 = vadd.f32 %v4386, %v4531
    %v4556 = vadd.f32 %v4387, %v4532
    %v4557 = vadd.f32 %v4388, %v4533
    %v4558 = vadd.f32 %v4389, %v4534
    %s4559 = scalar_lea.vmem %s5, 384
    %v4560 = vld [vmem:[%s4559] sm:$0xff]
    %v4561 = vld [vmem:[%s4559 + $0x8] sm:$0xff]
    %v4562 = vld [vmem:[%s4559 + $0x10] sm:$0xff]
    %v4563 = vld [vmem:[%s4559 + $0x18] sm:$0xff]
    %v4564 = vld [vmem:[%s4559 + $0x20] sm:$0xff]
    %v4565 = vld [vmem:[%s4559 + $0x28] sm:$0xff]
    %v4566 = vld [vmem:[%s4559 + $0x30] sm:$0xff]
    %v4567 = vld [vmem:[%s4559 + $0x38] sm:$0xff]
    %v4568 = vld [vmem:[%s4559 + $0x40] sm:$0xff]
    %v4569 = vld [vmem:[%s4559 + $0x48] sm:$0xff]
    %v4570 = vld [vmem:[%s4559 + $0x50] sm:$0xff]
    %v4571 = vld [vmem:[%s4559 + $0x58] sm:$0xff]
    %v4572 = vld [vmem:[%s4559 + $0x60] sm:$0xff]
    %v4573 = vld [vmem:[%s4559 + $0x68] sm:$0xff]
    %v4574 = vld [vmem:[%s4559 + $0x70] sm:$0xff]
    %v4575 = vld [vmem:[%s4559 + $0x78] sm:$0xff]
    %v4576 = vld [vmem:[%s4559 + $0x80] sm:$0xff]
    %v4577 = vld [vmem:[%s4559 + $0x88] sm:$0xff]
    %v4578 = vld [vmem:[%s4559 + $0x90] sm:$0xff]
    %v4579 = vld [vmem:[%s4559 + $0x98] sm:$0xff]
    %v4580 = vld [vmem:[%s4559 + $0xa0] sm:$0xff]
    %v4581 = vld [vmem:[%s4559 + $0xa8] sm:$0xff]
    %v4582 = vld [vmem:[%s4559 + $0xb0] sm:$0xff]
    %v4583 = vld [vmem:[%s4559 + $0xb8] sm:$0xf]
    %4584 = vset.pattern.permute.xlu0 2
    %4585 = vperm.xlu0 %4584, %v4198
    %v4586 = vpop.permute.xlu0 %4585
    %4588 = vset.pattern.permute.xlu0 2
    %4589 = vperm.xlu0 %4588, %v4199
    %v4590 = vpop.permute.xlu0 %4589
    %4592 = vset.pattern.permute.xlu0 2
    %4593 = vperm.xlu0 %4592, %v4200
    %v4594 = vpop.permute.xlu0 %4593
    %4596 = vset.pattern.permute.xlu0 2
    %4597 = vperm.xlu0 %4596, %v4201
    %v4598 = vpop.permute.xlu0 %4597
    %4600 = vset.pattern.permute.xlu0 2
    %4601 = vperm.xlu0 %4600, %v4202
    %v4602 = vpop.permute.xlu0 %4601
    %4604 = vset.pattern.permute.xlu0 2
    %4605 = vperm.xlu0 %4604, %v4203
    %v4606 = vpop.permute.xlu0 %4605
    %4608 = vset.pattern.permute.xlu0 2
    %4609 = vperm.xlu0 %4608, %v4204
    %v4610 = vpop.permute.xlu0 %4609
    %4612 = vset.pattern.permute.xlu0 2
    %4613 = vperm.xlu0 %4612, %v4205
    %v4614 = vpop.permute.xlu0 %4613
    %4616 = vset.pattern.permute.xlu0 2
    %4617 = vperm.xlu0 %4616, %v4206
    %v4618 = vpop.permute.xlu0 %4617
    %4620 = vset.pattern.permute.xlu0 2
    %4621 = vperm.xlu0 %4620, %v4207
    %v4622 = vpop.permute.xlu0 %4621
    %4624 = vset.pattern.permute.xlu0 2
    %4625 = vperm.xlu0 %4624, %v4208
    %v4626 = vpop.permute.xlu0 %4625
    %4628 = vset.pattern.permute.xlu0 2
    %4629 = vperm.xlu0 %4628, %v4209
    %v4630 = vpop.permute.xlu0 %4629
    %4632 = vset.pattern.permute.xlu0 2
    %4633 = vperm.xlu0 %4632, %v4210
    %v4634 = vpop.permute.xlu0 %4633
    %4636 = vset.pattern.permute.xlu0 2
    %4637 = vperm.xlu0 %4636, %v4211
    %v4638 = vpop.permute.xlu0 %4637
    %4640 = vset.pattern.permute.xlu0 2
    %4641 = vperm.xlu0 %4640, %v4212
    %v4642 = vpop.permute.xlu0 %4641
    %4644 = vset.pattern.permute.xlu0 2
    %4645 = vperm.xlu0 %4644, %v4213
    %v4646 = vpop.permute.xlu0 %4645
    %4648 = vset.pattern.permute.xlu0 2
    %4649 = vperm.xlu0 %4648, %v4214
    %v4650 = vpop.permute.xlu0 %4649
    %4652 = vset.pattern.permute.xlu0 2
    %4653 = vperm.xlu0 %4652, %v4215
    %v4654 = vpop.permute.xlu0 %4653
    %4656 = vset.pattern.permute.xlu0 2
    %4657 = vperm.xlu0 %4656, %v4216
    %v4658 = vpop.permute.xlu0 %4657
    %4660 = vset.pattern.permute.xlu0 2
    %4661 = vperm.xlu0 %4660, %v4217
    %v4662 = vpop.permute.xlu0 %4661
    %4664 = vset.pattern.permute.xlu0 2
    %4665 = vperm.xlu0 %4664, %v4218
    %v4666 = vpop.permute.xlu0 %4665
    %4668 = vset.pattern.permute.xlu0 2
    %4669 = vperm.xlu0 %4668, %v4219
    %v4670 = vpop.permute.xlu0 %4669
    %4672 = vset.pattern.permute.xlu0 2
    %4673 = vperm.xlu0 %4672, %v4220
    %v4674 = vpop.permute.xlu0 %4673
    %4676 = vset.pattern.permute.xlu0 2
    %4677 = vperm.xlu0 %4676, %v4221
    %v4678 = vpop.permute.xlu0 %4677
    %v4680 = vmul.f32 %v4586, %v4560
    %v4681 = vmul.f32 %v4590, %v4561
    %v4682 = vmul.f32 %v4594, %v4562
    %v4683 = vmul.f32 %v4598, %v4563
    %v4684 = vmul.f32 %v4602, %v4564
    %v4685 = vmul.f32 %v4606, %v4565
    %v4686 = vmul.f32 %v4610, %v4566
    %v4687 = vmul.f32 %v4614, %v4567
    %v4688 = vmul.f32 %v4618, %v4568
    %v4689 = vmul.f32 %v4622, %v4569
    %v4690 = vmul.f32 %v4626, %v4570
    %v4691 = vmul.f32 %v4630, %v4571
    %v4692 = vmul.f32 %v4634, %v4572
    %v4693 = vmul.f32 %v4638, %v4573
    %v4694 = vmul.f32 %v4642, %v4574
    %v4695 = vmul.f32 %v4646, %v4575
    %v4696 = vmul.f32 %v4650, %v4576
    %v4697 = vmul.f32 %v4654, %v4577
    %v4698 = vmul.f32 %v4658, %v4578
    %v4699 = vmul.f32 %v4662, %v4579
    %v4700 = vmul.f32 %v4666, %v4580
    %v4701 = vmul.f32 %v4670, %v4581
    %v4702 = vmul.f32 %v4674, %v4582
    %v4703 = vmul.f32 %v4678, %v4583
    %v4704 = vadd.f32 %v4535, %v4680
    %v4705 = vadd.f32 %v4536, %v4681
    %v4706 = vadd.f32 %v4537, %v4682
    %v4707 = vadd.f32 %v4538, %v4683
    %v4708 = vadd.f32 %v4539, %v4684
    %v4709 = vadd.f32 %v4540, %v4685
    %v4710 = vadd.f32 %v4541, %v4686
    %v4711 = vadd.f32 %v4542, %v4687
    %v4712 = vadd.f32 %v4543, %v4688
    %v4713 = vadd.f32 %v4544, %v4689
    %v4714 = vadd.f32 %v4545, %v4690
    %v4715 = vadd.f32 %v4546, %v4691
    %v4716 = vadd.f32 %v4547, %v4692
    %v4717 = vadd.f32 %v4548, %v4693
    %v4718 = vadd.f32 %v4549, %v4694
    %v4719 = vadd.f32 %v4550, %v4695
    %v4720 = vadd.f32 %v4551, %v4696
    %v4721 = vadd.f32 %v4552, %v4697
    %v4722 = vadd.f32 %v4553, %v4698
    %v4723 = vadd.f32 %v4554, %v4699
    %v4724 = vadd.f32 %v4555, %v4700
    %v4725 = vadd.f32 %v4556, %v4701
    %v4726 = vadd.f32 %v4557, %v4702
    %v4727 = vadd.f32 %v4558, %v4703
    %s4728 = scalar_lea.vmem %s5, 576
    %v4729 = vld [vmem:[%s4728] sm:$0xff]
    %v4730 = vld [vmem:[%s4728 + $0x8] sm:$0xff]
    %v4731 = vld [vmem:[%s4728 + $0x10] sm:$0xff]
    %v4732 = vld [vmem:[%s4728 + $0x18] sm:$0xff]
    %v4733 = vld [vmem:[%s4728 + $0x20] sm:$0xff]
    %v4734 = vld [vmem:[%s4728 + $0x28] sm:$0xff]
    %v4735 = vld [vmem:[%s4728 + $0x30] sm:$0xff]
    %v4736 = vld [vmem:[%s4728 + $0x38] sm:$0xff]
    %v4737 = vld [vmem:[%s4728 + $0x40] sm:$0xff]
    %v4738 = vld [vmem:[%s4728 + $0x48] sm:$0xff]
    %v4739 = vld [vmem:[%s4728 + $0x50] sm:$0xff]
    %v4740 = vld [vmem:[%s4728 + $0x58] sm:$0xff]
    %v4741 = vld [vmem:[%s4728 + $0x60] sm:$0xff]
    %v4742 = vld [vmem:[%s4728 + $0x68] sm:$0xff]
    %v4743 = vld [vmem:[%s4728 + $0x70] sm:$0xff]
    %v4744 = vld [vmem:[%s4728 + $0x78] sm:$0xff]
    %v4745 = vld [vmem:[%s4728 + $0x80] sm:$0xff]
    %v4746 = vld [vmem:[%s4728 + $0x88] sm:$0xff]
    %v4747 = vld [vmem:[%s4728 + $0x90] sm:$0xff]
    %v4748 = vld [vmem:[%s4728 + $0x98] sm:$0xff]
    %v4749 = vld [vmem:[%s4728 + $0xa0] sm:$0xff]
    %v4750 = vld [vmem:[%s4728 + $0xa8] sm:$0xff]
    %v4751 = vld [vmem:[%s4728 + $0xb0] sm:$0xff]
    %v4752 = vld [vmem:[%s4728 + $0xb8] sm:$0xf]
    %4753 = vset.pattern.permute.xlu0 3
    %4754 = vperm.xlu0 %4753, %v4198
    %v4755 = vpop.permute.xlu0 %4754
    %4757 = vset.pattern.permute.xlu0 3
    %4758 = vperm.xlu0 %4757, %v4199
    %v4759 = vpop.permute.xlu0 %4758
    %4761 = vset.pattern.permute.xlu0 3
    %4762 = vperm.xlu0 %4761, %v4200
    %v4763 = vpop.permute.xlu0 %4762
    %4765 = vset.pattern.permute.xlu0 3
    %4766 = vperm.xlu0 %4765, %v4201
    %v4767 = vpop.permute.xlu0 %4766
    %4769 = vset.pattern.permute.xlu0 3
    %4770 = vperm.xlu0 %4769, %v4202
    %v4771 = vpop.permute.xlu0 %4770
    %4773 = vset.pattern.permute.xlu0 3
    %4774 = vperm.xlu0 %4773, %v4203
    %v4775 = vpop.permute.xlu0 %4774
    %4777 = vset.pattern.permute.xlu0 3
    %4778 = vperm.xlu0 %4777, %v4204
    %v4779 = vpop.permute.xlu0 %4778
    %4781 = vset.pattern.permute.xlu0 3
    %4782 = vperm.xlu0 %4781, %v4205
    %v4783 = vpop.permute.xlu0 %4782
    %4785 = vset.pattern.permute.xlu0 3
    %4786 = vperm.xlu0 %4785, %v4206
    %v4787 = vpop.permute.xlu0 %4786
    %4789 = vset.pattern.permute.xlu0 3
    %4790 = vperm.xlu0 %4789, %v4207
    %v4791 = vpop.permute.xlu0 %4790
    %4793 = vset.pattern.permute.xlu0 3
    %4794 = vperm.xlu0 %4793, %v4208
    %v4795 = vpop.permute.xlu0 %4794
    %4797 = vset.pattern.permute.xlu0 3
    %4798 = vperm.xlu0 %4797, %v4209
    %v4799 = vpop.permute.xlu0 %4798
    %4801 = vset.pattern.permute.xlu0 3
    %4802 = vperm.xlu0 %4801, %v4210
    %v4803 = vpop.permute.xlu0 %4802
    %4805 = vset.pattern.permute.xlu0 3
    %4806 = vperm.xlu0 %4805, %v4211
    %v4807 = vpop.permute.xlu0 %4806
    %4809 = vset.pattern.permute.xlu0 3
    %4810 = vperm.xlu0 %4809, %v4212
    %v4811 = vpop.permute.xlu0 %4810
    %4813 = vset.pattern.permute.xlu0 3
    %4814 = vperm.xlu0 %4813, %v4213
    %v4815 = vpop.permute.xlu0 %4814
    %4817 = vset.pattern.permute.xlu0 3
    %4818 = vperm.xlu0 %4817, %v4214
    %v4819 = vpop.permute.xlu0 %4818
    %4821 = vset.pattern.permute.xlu0 3
    %4822 = vperm.xlu0 %4821, %v4215
    %v4823 = vpop.permute.xlu0 %4822
    %4825 = vset.pattern.permute.xlu0 3
    %4826 = vperm.xlu0 %4825, %v4216
    %v4827 = vpop.permute.xlu0 %4826
    %4829 = vset.pattern.permute.xlu0 3
    %4830 = vperm.xlu0 %4829, %v4217
    %v4831 = vpop.permute.xlu0 %4830
    %4833 = vset.pattern.permute.xlu0 3
    %4834 = vperm.xlu0 %4833, %v4218
    %v4835 = vpop.permute.xlu0 %4834
    %4837 = vset.pattern.permute.xlu0 3
    %4838 = vperm.xlu0 %4837, %v4219
    %v4839 = vpop.permute.xlu0 %4838
    %4841 = vset.pattern.permute.xlu0 3
    %4842 = vperm.xlu0 %4841, %v4220
    %v4843 = vpop.permute.xlu0 %4842
    %4845 = vset.pattern.permute.xlu0 3
    %4846 = vperm.xlu0 %4845, %v4221
    %v4847 = vpop.permute.xlu0 %4846
    %v4849 = vmul.f32 %v4755, %v4729
    %v4850 = vmul.f32 %v4759, %v4730
    %v4851 = vmul.f32 %v4763, %v4731
    %v4852 = vmul.f32 %v4767, %v4732
    %v4853 = vmul.f32 %v4771, %v4733
    %v4854 = vmul.f32 %v4775, %v4734
    %v4855 = vmul.f32 %v4779, %v4735
    %v4856 = vmul.f32 %v4783, %v4736
    %v4857 = vmul.f32 %v4787, %v4737
    %v4858 = vmul.f32 %v4791, %v4738
    %v4859 = vmul.f32 %v4795, %v4739
    %v4860 = vmul.f32 %v4799, %v4740
    %v4861 = vmul.f32 %v4803, %v4741
    %v4862 = vmul.f32 %v4807, %v4742
    %v4863 = vmul.f32 %v4811, %v4743
    %v4864 = vmul.f32 %v4815, %v4744
    %v4865 = vmul.f32 %v4819, %v4745
    %v4866 = vmul.f32 %v4823, %v4746
    %v4867 = vmul.f32 %v4827, %v4747
    %v4868 = vmul.f32 %v4831, %v4748
    %v4869 = vmul.f32 %v4835, %v4749
    %v4870 = vmul.f32 %v4839, %v4750
    %v4871 = vmul.f32 %v4843, %v4751
    %v4872 = vmul.f32 %v4847, %v4752
    %v4873 = vadd.f32 %v4704, %v4849
    %v4874 = vadd.f32 %v4705, %v4850
    %v4875 = vadd.f32 %v4706, %v4851
    %v4876 = vadd.f32 %v4707, %v4852
    %v4877 = vadd.f32 %v4708, %v4853
    %v4878 = vadd.f32 %v4709, %v4854
    %v4879 = vadd.f32 %v4710, %v4855
    %v4880 = vadd.f32 %v4711, %v4856
    %v4881 = vadd.f32 %v4712, %v4857
    %v4882 = vadd.f32 %v4713, %v4858
    %v4883 = vadd.f32 %v4714, %v4859
    %v4884 = vadd.f32 %v4715, %v4860
    %v4885 = vadd.f32 %v4716, %v4861
    %v4886 = vadd.f32 %v4717, %v4862
    %v4887 = vadd.f32 %v4718, %v4863
    %v4888 = vadd.f32 %v4719, %v4864
    %v4889 = vadd.f32 %v4720, %v4865
    %v4890 = vadd.f32 %v4721, %v4866
    %v4891 = vadd.f32 %v4722, %v4867
    %v4892 = vadd.f32 %v4723, %v4868
    %v4893 = vadd.f32 %v4724, %v4869
    %v4894 = vadd.f32 %v4725, %v4870
    %v4895 = vadd.f32 %v4726, %v4871
    %v4896 = vadd.f32 %v4727, %v4872
    %s4897 = scalar_lea.vmem %s5, 768
    %v4898 = vld [vmem:[%s4897] sm:$0xff]
    %v4899 = vld [vmem:[%s4897 + $0x8] sm:$0xff]
    %v4900 = vld [vmem:[%s4897 + $0x10] sm:$0xff]
    %v4901 = vld [vmem:[%s4897 + $0x18] sm:$0xff]
    %v4902 = vld [vmem:[%s4897 + $0x20] sm:$0xff]
    %v4903 = vld [vmem:[%s4897 + $0x28] sm:$0xff]
    %v4904 = vld [vmem:[%s4897 + $0x30] sm:$0xff]
    %v4905 = vld [vmem:[%s4897 + $0x38] sm:$0xff]
    %v4906 = vld [vmem:[%s4897 + $0x40] sm:$0xff]
    %v4907 = vld [vmem:[%s4897 + $0x48] sm:$0xff]
    %v4908 = vld [vmem:[%s4897 + $0x50] sm:$0xff]
    %v4909 = vld [vmem:[%s4897 + $0x58] sm:$0xff]
    %v4910 = vld [vmem:[%s4897 + $0x60] sm:$0xff]
    %v4911 = vld [vmem:[%s4897 + $0x68] sm:$0xff]
    %v4912 = vld [vmem:[%s4897 + $0x70] sm:$0xff]
    %v4913 = vld [vmem:[%s4897 + $0x78] sm:$0xff]
    %v4914 = vld [vmem:[%s4897 + $0x80] sm:$0xff]
    %v4915 = vld [vmem:[%s4897 + $0x88] sm:$0xff]
    %v4916 = vld [vmem:[%s4897 + $0x90] sm:$0xff]
    %v4917 = vld [vmem:[%s4897 + $0x98] sm:$0xff]
    %v4918 = vld [vmem:[%s4897 + $0xa0] sm:$0xff]
    %v4919 = vld [vmem:[%s4897 + $0xa8] sm:$0xff]
    %v4920 = vld [vmem:[%s4897 + $0xb0] sm:$0xff]
    %v4921 = vld [vmem:[%s4897 + $0xb8] sm:$0xf]
    %4922 = vset.pattern.permute.xlu0 4
    %4923 = vperm.xlu0 %4922, %v4198
    %v4924 = vpop.permute.xlu0 %4923
    %4926 = vset.pattern.permute.xlu0 4
    %4927 = vperm.xlu0 %4926, %v4199
    %v4928 = vpop.permute.xlu0 %4927
    %4930 = vset.pattern.permute.xlu0 4
    %4931 = vperm.xlu0 %4930, %v4200
    %v4932 = vpop.permute.xlu0 %4931
    %4934 = vset.pattern.permute.xlu0 4
    %4935 = vperm.xlu0 %4934, %v4201
    %v4936 = vpop.permute.xlu0 %4935
    %4938 = vset.pattern.permute.xlu0 4
    %4939 = vperm.xlu0 %4938, %v4202
    %v4940 = vpop.permute.xlu0 %4939
    %4942 = vset.pattern.permute.xlu0 4
    %4943 = vperm.xlu0 %4942, %v4203
    %v4944 = vpop.permute.xlu0 %4943
    %4946 = vset.pattern.permute.xlu0 4
    %4947 = vperm.xlu0 %4946, %v4204
    %v4948 = vpop.permute.xlu0 %4947
    %4950 = vset.pattern.permute.xlu0 4
    %4951 = vperm.xlu0 %4950, %v4205
    %v4952 = vpop.permute.xlu0 %4951
    %4954 = vset.pattern.permute.xlu0 4
    %4955 = vperm.xlu0 %4954, %v4206
    %v4956 = vpop.permute.xlu0 %4955
    %4958 = vset.pattern.permute.xlu0 4
    %4959 = vperm.xlu0 %4958, %v4207
    %v4960 = vpop.permute.xlu0 %4959
    %4962 = vset.pattern.permute.xlu0 4
    %4963 = vperm.xlu0 %4962, %v4208
    %v4964 = vpop.permute.xlu0 %4963
    %4966 = vset.pattern.permute.xlu0 4
    %4967 = vperm.xlu0 %4966, %v4209
    %v4968 = vpop.permute.xlu0 %4967
    %4970 = vset.pattern.permute.xlu0 4
    %4971 = vperm.xlu0 %4970, %v4210
    %v4972 = vpop.permute.xlu0 %4971
    %4974 = vset.pattern.permute.xlu0 4
    %4975 = vperm.xlu0 %4974, %v4211
    %v4976 = vpop.permute.xlu0 %4975
    %4978 = vset.pattern.permute.xlu0 4
    %4979 = vperm.xlu0 %4978, %v4212
    %v4980 = vpop.permute.xlu0 %4979
    %4982 = vset.pattern.permute.xlu0 4
    %4983 = vperm.xlu0 %4982, %v4213
    %v4984 = vpop.permute.xlu0 %4983
    %4986 = vset.pattern.permute.xlu0 4
    %4987 = vperm.xlu0 %4986, %v4214
    %v4988 = vpop.permute.xlu0 %4987
    %4990 = vset.pattern.permute.xlu0 4
    %4991 = vperm.xlu0 %4990, %v4215
    %v4992 = vpop.permute.xlu0 %4991
    %4994 = vset.pattern.permute.xlu0 4
    %4995 = vperm.xlu0 %4994, %v4216
    %v4996 = vpop.permute.xlu0 %4995
    %4998 = vset.pattern.permute.xlu0 4
    %4999 = vperm.xlu0 %4998, %v4217
    %v5000 = vpop.permute.xlu0 %4999
    %5002 = vset.pattern.permute.xlu0 4
    %5003 = vperm.xlu0 %5002, %v4218
    %v5004 = vpop.permute.xlu0 %5003
    %5006 = vset.pattern.permute.xlu0 4
    %5007 = vperm.xlu0 %5006, %v4219
    %v5008 = vpop.permute.xlu0 %5007
    %5010 = vset.pattern.permute.xlu0 4
    %5011 = vperm.xlu0 %5010, %v4220
    %v5012 = vpop.permute.xlu0 %5011
    %5014 = vset.pattern.permute.xlu0 4
    %5015 = vperm.xlu0 %5014, %v4221
    %v5016 = vpop.permute.xlu0 %5015
    %v5018 = vmul.f32 %v4924, %v4898
    %v5019 = vmul.f32 %v4928, %v4899
    %v5020 = vmul.f32 %v4932, %v4900
    %v5021 = vmul.f32 %v4936, %v4901
    %v5022 = vmul.f32 %v4940, %v4902
    %v5023 = vmul.f32 %v4944, %v4903
    %v5024 = vmul.f32 %v4948, %v4904
    %v5025 = vmul.f32 %v4952, %v4905
    %v5026 = vmul.f32 %v4956, %v4906
    %v5027 = vmul.f32 %v4960, %v4907
    %v5028 = vmul.f32 %v4964, %v4908
    %v5029 = vmul.f32 %v4968, %v4909
    %v5030 = vmul.f32 %v4972, %v4910
    %v5031 = vmul.f32 %v4976, %v4911
    %v5032 = vmul.f32 %v4980, %v4912
    %v5033 = vmul.f32 %v4984, %v4913
    %v5034 = vmul.f32 %v4988, %v4914
    %v5035 = vmul.f32 %v4992, %v4915
    %v5036 = vmul.f32 %v4996, %v4916
    %v5037 = vmul.f32 %v5000, %v4917
    %v5038 = vmul.f32 %v5004, %v4918
    %v5039 = vmul.f32 %v5008, %v4919
    %v5040 = vmul.f32 %v5012, %v4920
    %v5041 = vmul.f32 %v5016, %v4921
    %v5042 = vadd.f32 %v4873, %v5018
    %v5043 = vadd.f32 %v4874, %v5019
    %v5044 = vadd.f32 %v4875, %v5020
    %v5045 = vadd.f32 %v4876, %v5021
    %v5046 = vadd.f32 %v4877, %v5022
    %v5047 = vadd.f32 %v4878, %v5023
    %v5048 = vadd.f32 %v4879, %v5024
    %v5049 = vadd.f32 %v4880, %v5025
    %v5050 = vadd.f32 %v4881, %v5026
    %v5051 = vadd.f32 %v4882, %v5027
    %v5052 = vadd.f32 %v4883, %v5028
    %v5053 = vadd.f32 %v4884, %v5029
    %v5054 = vadd.f32 %v4885, %v5030
    %v5055 = vadd.f32 %v4886, %v5031
    %v5056 = vadd.f32 %v4887, %v5032
    %v5057 = vadd.f32 %v4888, %v5033
    %v5058 = vadd.f32 %v4889, %v5034
    %v5059 = vadd.f32 %v4890, %v5035
    %v5060 = vadd.f32 %v4891, %v5036
    %v5061 = vadd.f32 %v4892, %v5037
    %v5062 = vadd.f32 %v4893, %v5038
    %v5063 = vadd.f32 %v4894, %v5039
    %v5064 = vadd.f32 %v4895, %v5040
    %v5065 = vadd.f32 %v4896, %v5041
    %s5066 = scalar_lea.vmem %s5, 960
    %v5067 = vld [vmem:[%s5066] sm:$0xff]
    %v5068 = vld [vmem:[%s5066 + $0x8] sm:$0xff]
    %v5069 = vld [vmem:[%s5066 + $0x10] sm:$0xff]
    %v5070 = vld [vmem:[%s5066 + $0x18] sm:$0xff]
    %v5071 = vld [vmem:[%s5066 + $0x20] sm:$0xff]
    %v5072 = vld [vmem:[%s5066 + $0x28] sm:$0xff]
    %v5073 = vld [vmem:[%s5066 + $0x30] sm:$0xff]
    %v5074 = vld [vmem:[%s5066 + $0x38] sm:$0xff]
    %v5075 = vld [vmem:[%s5066 + $0x40] sm:$0xff]
    %v5076 = vld [vmem:[%s5066 + $0x48] sm:$0xff]
    %v5077 = vld [vmem:[%s5066 + $0x50] sm:$0xff]
    %v5078 = vld [vmem:[%s5066 + $0x58] sm:$0xff]
    %v5079 = vld [vmem:[%s5066 + $0x60] sm:$0xff]
    %v5080 = vld [vmem:[%s5066 + $0x68] sm:$0xff]
    %v5081 = vld [vmem:[%s5066 + $0x70] sm:$0xff]
    %v5082 = vld [vmem:[%s5066 + $0x78] sm:$0xff]
    %v5083 = vld [vmem:[%s5066 + $0x80] sm:$0xff]
    %v5084 = vld [vmem:[%s5066 + $0x88] sm:$0xff]
    %v5085 = vld [vmem:[%s5066 + $0x90] sm:$0xff]
    %v5086 = vld [vmem:[%s5066 + $0x98] sm:$0xff]
    %v5087 = vld [vmem:[%s5066 + $0xa0] sm:$0xff]
    %v5088 = vld [vmem:[%s5066 + $0xa8] sm:$0xff]
    %v5089 = vld [vmem:[%s5066 + $0xb0] sm:$0xff]
    %v5090 = vld [vmem:[%s5066 + $0xb8] sm:$0xf]
    %5091 = vset.pattern.permute.xlu0 5
    %5092 = vperm.xlu0 %5091, %v4198
    %v5093 = vpop.permute.xlu0 %5092
    %5095 = vset.pattern.permute.xlu0 5
    %5096 = vperm.xlu0 %5095, %v4199
    %v5097 = vpop.permute.xlu0 %5096
    %5099 = vset.pattern.permute.xlu0 5
    %5100 = vperm.xlu0 %5099, %v4200
    %v5101 = vpop.permute.xlu0 %5100
    %5103 = vset.pattern.permute.xlu0 5
    %5104 = vperm.xlu0 %5103, %v4201
    %v5105 = vpop.permute.xlu0 %5104
    %5107 = vset.pattern.permute.xlu0 5
    %5108 = vperm.xlu0 %5107, %v4202
    %v5109 = vpop.permute.xlu0 %5108
    %5111 = vset.pattern.permute.xlu0 5
    %5112 = vperm.xlu0 %5111, %v4203
    %v5113 = vpop.permute.xlu0 %5112
    %5115 = vset.pattern.permute.xlu0 5
    %5116 = vperm.xlu0 %5115, %v4204
    %v5117 = vpop.permute.xlu0 %5116
    %5119 = vset.pattern.permute.xlu0 5
    %5120 = vperm.xlu0 %5119, %v4205
    %v5121 = vpop.permute.xlu0 %5120
    %5123 = vset.pattern.permute.xlu0 5
    %5124 = vperm.xlu0 %5123, %v4206
    %v5125 = vpop.permute.xlu0 %5124
    %5127 = vset.pattern.permute.xlu0 5
    %5128 = vperm.xlu0 %5127, %v4207
    %v5129 = vpop.permute.xlu0 %5128
    %5131 = vset.pattern.permute.xlu0 5
    %5132 = vperm.xlu0 %5131, %v4208
    %v5133 = vpop.permute.xlu0 %5132
    %5135 = vset.pattern.permute.xlu0 5
    %5136 = vperm.xlu0 %5135, %v4209
    %v5137 = vpop.permute.xlu0 %5136
    %5139 = vset.pattern.permute.xlu0 5
    %5140 = vperm.xlu0 %5139, %v4210
    %v5141 = vpop.permute.xlu0 %5140
    %5143 = vset.pattern.permute.xlu0 5
    %5144 = vperm.xlu0 %5143, %v4211
    %v5145 = vpop.permute.xlu0 %5144
    %5147 = vset.pattern.permute.xlu0 5
    %5148 = vperm.xlu0 %5147, %v4212
    %v5149 = vpop.permute.xlu0 %5148
    %5151 = vset.pattern.permute.xlu0 5
    %5152 = vperm.xlu0 %5151, %v4213
    %v5153 = vpop.permute.xlu0 %5152
    %5155 = vset.pattern.permute.xlu0 5
    %5156 = vperm.xlu0 %5155, %v4214
    %v5157 = vpop.permute.xlu0 %5156
    %5159 = vset.pattern.permute.xlu0 5
    %5160 = vperm.xlu0 %5159, %v4215
    %v5161 = vpop.permute.xlu0 %5160
    %5163 = vset.pattern.permute.xlu0 5
    %5164 = vperm.xlu0 %5163, %v4216
    %v5165 = vpop.permute.xlu0 %5164
    %5167 = vset.pattern.permute.xlu0 5
    %5168 = vperm.xlu0 %5167, %v4217
    %v5169 = vpop.permute.xlu0 %5168
    %5171 = vset.pattern.permute.xlu0 5
    %5172 = vperm.xlu0 %5171, %v4218
    %v5173 = vpop.permute.xlu0 %5172
    %5175 = vset.pattern.permute.xlu0 5
    %5176 = vperm.xlu0 %5175, %v4219
    %v5177 = vpop.permute.xlu0 %5176
    %5179 = vset.pattern.permute.xlu0 5
    %5180 = vperm.xlu0 %5179, %v4220
    %v5181 = vpop.permute.xlu0 %5180
    %5183 = vset.pattern.permute.xlu0 5
    %5184 = vperm.xlu0 %5183, %v4221
    %v5185 = vpop.permute.xlu0 %5184
    %v5187 = vmul.f32 %v5093, %v5067
    %v5188 = vmul.f32 %v5097, %v5068
    %v5189 = vmul.f32 %v5101, %v5069
    %v5190 = vmul.f32 %v5105, %v5070
    %v5191 = vmul.f32 %v5109, %v5071
    %v5192 = vmul.f32 %v5113, %v5072
    %v5193 = vmul.f32 %v5117, %v5073
    %v5194 = vmul.f32 %v5121, %v5074
    %v5195 = vmul.f32 %v5125, %v5075
    %v5196 = vmul.f32 %v5129, %v5076
    %v5197 = vmul.f32 %v5133, %v5077
    %v5198 = vmul.f32 %v5137, %v5078
    %v5199 = vmul.f32 %v5141, %v5079
    %v5200 = vmul.f32 %v5145, %v5080
    %v5201 = vmul.f32 %v5149, %v5081
    %v5202 = vmul.f32 %v5153, %v5082
    %v5203 = vmul.f32 %v5157, %v5083
    %v5204 = vmul.f32 %v5161, %v5084
    %v5205 = vmul.f32 %v5165, %v5085
    %v5206 = vmul.f32 %v5169, %v5086
    %v5207 = vmul.f32 %v5173, %v5087
    %v5208 = vmul.f32 %v5177, %v5088
    %v5209 = vmul.f32 %v5181, %v5089
    %v5210 = vmul.f32 %v5185, %v5090
    %v5211 = vadd.f32 %v5042, %v5187
    %v5212 = vadd.f32 %v5043, %v5188
    %v5213 = vadd.f32 %v5044, %v5189
    %v5214 = vadd.f32 %v5045, %v5190
    %v5215 = vadd.f32 %v5046, %v5191
    %v5216 = vadd.f32 %v5047, %v5192
    %v5217 = vadd.f32 %v5048, %v5193
    %v5218 = vadd.f32 %v5049, %v5194
    %v5219 = vadd.f32 %v5050, %v5195
    %v5220 = vadd.f32 %v5051, %v5196
    %v5221 = vadd.f32 %v5052, %v5197
    %v5222 = vadd.f32 %v5053, %v5198
    %v5223 = vadd.f32 %v5054, %v5199
    %v5224 = vadd.f32 %v5055, %v5200
    %v5225 = vadd.f32 %v5056, %v5201
    %v5226 = vadd.f32 %v5057, %v5202
    %v5227 = vadd.f32 %v5058, %v5203
    %v5228 = vadd.f32 %v5059, %v5204
    %v5229 = vadd.f32 %v5060, %v5205
    %v5230 = vadd.f32 %v5061, %v5206
    %v5231 = vadd.f32 %v5062, %v5207
    %v5232 = vadd.f32 %v5063, %v5208
    %v5233 = vadd.f32 %v5064, %v5209
    %v5234 = vadd.f32 %v5065, %v5210
    %s5235 = scalar_lea.vmem %s5, 1152
    %v5236 = vld [vmem:[%s5235] sm:$0xff]
    %v5237 = vld [vmem:[%s5235 + $0x8] sm:$0xff]
    %v5238 = vld [vmem:[%s5235 + $0x10] sm:$0xff]
    %v5239 = vld [vmem:[%s5235 + $0x18] sm:$0xff]
    %v5240 = vld [vmem:[%s5235 + $0x20] sm:$0xff]
    %v5241 = vld [vmem:[%s5235 + $0x28] sm:$0xff]
    %v5242 = vld [vmem:[%s5235 + $0x30] sm:$0xff]
    %v5243 = vld [vmem:[%s5235 + $0x38] sm:$0xff]
    %v5244 = vld [vmem:[%s5235 + $0x40] sm:$0xff]
    %v5245 = vld [vmem:[%s5235 + $0x48] sm:$0xff]
    %v5246 = vld [vmem:[%s5235 + $0x50] sm:$0xff]
    %v5247 = vld [vmem:[%s5235 + $0x58] sm:$0xff]
    %v5248 = vld [vmem:[%s5235 + $0x60] sm:$0xff]
    %v5249 = vld [vmem:[%s5235 + $0x68] sm:$0xff]
    %v5250 = vld [vmem:[%s5235 + $0x70] sm:$0xff]
    %v5251 = vld [vmem:[%s5235 + $0x78] sm:$0xff]
    %v5252 = vld [vmem:[%s5235 + $0x80] sm:$0xff]
    %v5253 = vld [vmem:[%s5235 + $0x88] sm:$0xff]
    %v5254 = vld [vmem:[%s5235 + $0x90] sm:$0xff]
    %v5255 = vld [vmem:[%s5235 + $0x98] sm:$0xff]
    %v5256 = vld [vmem:[%s5235 + $0xa0] sm:$0xff]
    %v5257 = vld [vmem:[%s5235 + $0xa8] sm:$0xff]
    %v5258 = vld [vmem:[%s5235 + $0xb0] sm:$0xff]
    %v5259 = vld [vmem:[%s5235 + $0xb8] sm:$0xf]
    %5260 = vset.pattern.permute.xlu0 6
    %5261 = vperm.xlu0 %5260, %v4198
    %v5262 = vpop.permute.xlu0 %5261
    %5264 = vset.pattern.permute.xlu0 6
    %5265 = vperm.xlu0 %5264, %v4199
    %v5266 = vpop.permute.xlu0 %5265
    %5268 = vset.pattern.permute.xlu0 6
    %5269 = vperm.xlu0 %5268, %v4200
    %v5270 = vpop.permute.xlu0 %5269
    %5272 = vset.pattern.permute.xlu0 6
    %5273 = vperm.xlu0 %5272, %v4201
    %v5274 = vpop.permute.xlu0 %5273
    %5276 = vset.pattern.permute.xlu0 6
    %5277 = vperm.xlu0 %5276, %v4202
    %v5278 = vpop.permute.xlu0 %5277
    %5280 = vset.pattern.permute.xlu0 6
    %5281 = vperm.xlu0 %5280, %v4203
    %v5282 = vpop.permute.xlu0 %5281
    %5284 = vset.pattern.permute.xlu0 6
    %5285 = vperm.xlu0 %5284, %v4204
    %v5286 = vpop.permute.xlu0 %5285
    %5288 = vset.pattern.permute.xlu0 6
    %5289 = vperm.xlu0 %5288, %v4205
    %v5290 = vpop.permute.xlu0 %5289
    %5292 = vset.pattern.permute.xlu0 6
    %5293 = vperm.xlu0 %5292, %v4206
    %v5294 = vpop.permute.xlu0 %5293
    %5296 = vset.pattern.permute.xlu0 6
    %5297 = vperm.xlu0 %5296, %v4207
    %v5298 = vpop.permute.xlu0 %5297
    %5300 = vset.pattern.permute.xlu0 6
    %5301 = vperm.xlu0 %5300, %v4208
    %v5302 = vpop.permute.xlu0 %5301
    %5304 = vset.pattern.permute.xlu0 6
    %5305 = vperm.xlu0 %5304, %v4209
    %v5306 = vpop.permute.xlu0 %5305
    %5308 = vset.pattern.permute.xlu0 6
    %5309 = vperm.xlu0 %5308, %v4210
    %v5310 = vpop.permute.xlu0 %5309
    %5312 = vset.pattern.permute.xlu0 6
    %5313 = vperm.xlu0 %5312, %v4211
    %v5314 = vpop.permute.xlu0 %5313
    %5316 = vset.pattern.permute.xlu0 6
    %5317 = vperm.xlu0 %5316, %v4212
    %v5318 = vpop.permute.xlu0 %5317
    %5320 = vset.pattern.permute.xlu0 6
    %5321 = vperm.xlu0 %5320, %v4213
    %v5322 = vpop.permute.xlu0 %5321
    %5324 = vset.pattern.permute.xlu0 6
    %5325 = vperm.xlu0 %5324, %v4214
    %v5326 = vpop.permute.xlu0 %5325
    %5328 = vset.pattern.permute.xlu0 6
    %5329 = vperm.xlu0 %5328, %v4215
    %v5330 = vpop.permute.xlu0 %5329
    %5332 = vset.pattern.permute.xlu0 6
    %5333 = vperm.xlu0 %5332, %v4216
    %v5334 = vpop.permute.xlu0 %5333
    %5336 = vset.pattern.permute.xlu0 6
    %5337 = vperm.xlu0 %5336, %v4217
    %v5338 = vpop.permute.xlu0 %5337
    %5340 = vset.pattern.permute.xlu0 6
    %5341 = vperm.xlu0 %5340, %v4218
    %v5342 = vpop.permute.xlu0 %5341
    %5344 = vset.pattern.permute.xlu0 6
    %5345 = vperm.xlu0 %5344, %v4219
    %v5346 = vpop.permute.xlu0 %5345
    %5348 = vset.pattern.permute.xlu0 6
    %5349 = vperm.xlu0 %5348, %v4220
    %v5350 = vpop.permute.xlu0 %5349
    %5352 = vset.pattern.permute.xlu0 6
    %5353 = vperm.xlu0 %5352, %v4221
    %v5354 = vpop.permute.xlu0 %5353
    %v5356 = vmul.f32 %v5262, %v5236
    %v5357 = vmul.f32 %v5266, %v5237
    %v5358 = vmul.f32 %v5270, %v5238
    %v5359 = vmul.f32 %v5274, %v5239
    %v5360 = vmul.f32 %v5278, %v5240
    %v5361 = vmul.f32 %v5282, %v5241
    %v5362 = vmul.f32 %v5286, %v5242
    %v5363 = vmul.f32 %v5290, %v5243
    %v5364 = vmul.f32 %v5294, %v5244
    %v5365 = vmul.f32 %v5298, %v5245
    %v5366 = vmul.f32 %v5302, %v5246
    %v5367 = vmul.f32 %v5306, %v5247
    %v5368 = vmul.f32 %v5310, %v5248
    %v5369 = vmul.f32 %v5314, %v5249
    %v5370 = vmul.f32 %v5318, %v5250
    %v5371 = vmul.f32 %v5322, %v5251
    %v5372 = vmul.f32 %v5326, %v5252
    %v5373 = vmul.f32 %v5330, %v5253
    %v5374 = vmul.f32 %v5334, %v5254
    %v5375 = vmul.f32 %v5338, %v5255
    %v5376 = vmul.f32 %v5342, %v5256
    %v5377 = vmul.f32 %v5346, %v5257
    %v5378 = vmul.f32 %v5350, %v5258
    %v5379 = vmul.f32 %v5354, %v5259
    %v5380 = vadd.f32 %v5211, %v5356
    %v5381 = vadd.f32 %v5212, %v5357
    %v5382 = vadd.f32 %v5213, %v5358
    %v5383 = vadd.f32 %v5214, %v5359
    %v5384 = vadd.f32 %v5215, %v5360
    %v5385 = vadd.f32 %v5216, %v5361
    %v5386 = vadd.f32 %v5217, %v5362
    %v5387 = vadd.f32 %v5218, %v5363
    %v5388 = vadd.f32 %v5219, %v5364
    %v5389 = vadd.f32 %v5220, %v5365
    %v5390 = vadd.f32 %v5221, %v5366
    %v5391 = vadd.f32 %v5222, %v5367
    %v5392 = vadd.f32 %v5223, %v5368
    %v5393 = vadd.f32 %v5224, %v5369
    %v5394 = vadd.f32 %v5225, %v5370
    %v5395 = vadd.f32 %v5226, %v5371
    %v5396 = vadd.f32 %v5227, %v5372
    %v5397 = vadd.f32 %v5228, %v5373
    %v5398 = vadd.f32 %v5229, %v5374
    %v5399 = vadd.f32 %v5230, %v5375
    %v5400 = vadd.f32 %v5231, %v5376
    %v5401 = vadd.f32 %v5232, %v5377
    %v5402 = vadd.f32 %v5233, %v5378
    %v5403 = vadd.f32 %v5234, %v5379
    %s5404 = scalar_lea.vmem %s5, 1344
    %v5405 = vld [vmem:[%s5404] sm:$0xff]
    %v5406 = vld [vmem:[%s5404 + $0x8] sm:$0xff]
    %v5407 = vld [vmem:[%s5404 + $0x10] sm:$0xff]
    %v5408 = vld [vmem:[%s5404 + $0x18] sm:$0xff]
    %v5409 = vld [vmem:[%s5404 + $0x20] sm:$0xff]
    %v5410 = vld [vmem:[%s5404 + $0x28] sm:$0xff]
    %v5411 = vld [vmem:[%s5404 + $0x30] sm:$0xff]
    %v5412 = vld [vmem:[%s5404 + $0x38] sm:$0xff]
    %v5413 = vld [vmem:[%s5404 + $0x40] sm:$0xff]
    %v5414 = vld [vmem:[%s5404 + $0x48] sm:$0xff]
    %v5415 = vld [vmem:[%s5404 + $0x50] sm:$0xff]
    %v5416 = vld [vmem:[%s5404 + $0x58] sm:$0xff]
    %v5417 = vld [vmem:[%s5404 + $0x60] sm:$0xff]
    %v5418 = vld [vmem:[%s5404 + $0x68] sm:$0xff]
    %v5419 = vld [vmem:[%s5404 + $0x70] sm:$0xff]
    %v5420 = vld [vmem:[%s5404 + $0x78] sm:$0xff]
    %v5421 = vld [vmem:[%s5404 + $0x80] sm:$0xff]
    %v5422 = vld [vmem:[%s5404 + $0x88] sm:$0xff]
    %v5423 = vld [vmem:[%s5404 + $0x90] sm:$0xff]
    %v5424 = vld [vmem:[%s5404 + $0x98] sm:$0xff]
    %v5425 = vld [vmem:[%s5404 + $0xa0] sm:$0xff]
    %v5426 = vld [vmem:[%s5404 + $0xa8] sm:$0xff]
    %v5427 = vld [vmem:[%s5404 + $0xb0] sm:$0xff]
    %v5428 = vld [vmem:[%s5404 + $0xb8] sm:$0xf]
    %5429 = vset.pattern.permute.xlu0 7
    %5430 = vperm.xlu0 %5429, %v4198
    %v5431 = vpop.permute.xlu0 %5430
    %5433 = vset.pattern.permute.xlu0 7
    %5434 = vperm.xlu0 %5433, %v4199
    %v5435 = vpop.permute.xlu0 %5434
    %5437 = vset.pattern.permute.xlu0 7
    %5438 = vperm.xlu0 %5437, %v4200
    %v5439 = vpop.permute.xlu0 %5438
    %5441 = vset.pattern.permute.xlu0 7
    %5442 = vperm.xlu0 %5441, %v4201
    %v5443 = vpop.permute.xlu0 %5442
    %5445 = vset.pattern.permute.xlu0 7
    %5446 = vperm.xlu0 %5445, %v4202
    %v5447 = vpop.permute.xlu0 %5446
    %5449 = vset.pattern.permute.xlu0 7
    %5450 = vperm.xlu0 %5449, %v4203
    %v5451 = vpop.permute.xlu0 %5450
    %5453 = vset.pattern.permute.xlu0 7
    %5454 = vperm.xlu0 %5453, %v4204
    %v5455 = vpop.permute.xlu0 %5454
    %5457 = vset.pattern.permute.xlu0 7
    %5458 = vperm.xlu0 %5457, %v4205
    %v5459 = vpop.permute.xlu0 %5458
    %5461 = vset.pattern.permute.xlu0 7
    %5462 = vperm.xlu0 %5461, %v4206
    %v5463 = vpop.permute.xlu0 %5462
    %5465 = vset.pattern.permute.xlu0 7
    %5466 = vperm.xlu0 %5465, %v4207
    %v5467 = vpop.permute.xlu0 %5466
    %5469 = vset.pattern.permute.xlu0 7
    %5470 = vperm.xlu0 %5469, %v4208
    %v5471 = vpop.permute.xlu0 %5470
    %5473 = vset.pattern.permute.xlu0 7
    %5474 = vperm.xlu0 %5473, %v4209
    %v5475 = vpop.permute.xlu0 %5474
    %5477 = vset.pattern.permute.xlu0 7
    %5478 = vperm.xlu0 %5477, %v4210
    %v5479 = vpop.permute.xlu0 %5478
    %5481 = vset.pattern.permute.xlu0 7
    %5482 = vperm.xlu0 %5481, %v4211
    %v5483 = vpop.permute.xlu0 %5482
    %5485 = vset.pattern.permute.xlu0 7
    %5486 = vperm.xlu0 %5485, %v4212
    %v5487 = vpop.permute.xlu0 %5486
    %5489 = vset.pattern.permute.xlu0 7
    %5490 = vperm.xlu0 %5489, %v4213
    %v5491 = vpop.permute.xlu0 %5490
    %5493 = vset.pattern.permute.xlu0 7
    %5494 = vperm.xlu0 %5493, %v4214
    %v5495 = vpop.permute.xlu0 %5494
    %5497 = vset.pattern.permute.xlu0 7
    %5498 = vperm.xlu0 %5497, %v4215
    %v5499 = vpop.permute.xlu0 %5498
    %5501 = vset.pattern.permute.xlu0 7
    %5502 = vperm.xlu0 %5501, %v4216
    %v5503 = vpop.permute.xlu0 %5502
    %5505 = vset.pattern.permute.xlu0 7
    %5506 = vperm.xlu0 %5505, %v4217
    %v5507 = vpop.permute.xlu0 %5506
    %5509 = vset.pattern.permute.xlu0 7
    %5510 = vperm.xlu0 %5509, %v4218
    %v5511 = vpop.permute.xlu0 %5510
    %5513 = vset.pattern.permute.xlu0 7
    %5514 = vperm.xlu0 %5513, %v4219
    %v5515 = vpop.permute.xlu0 %5514
    %5517 = vset.pattern.permute.xlu0 7
    %5518 = vperm.xlu0 %5517, %v4220
    %v5519 = vpop.permute.xlu0 %5518
    %5521 = vset.pattern.permute.xlu0 7
    %5522 = vperm.xlu0 %5521, %v4221
    %v5523 = vpop.permute.xlu0 %5522
    %v5525 = vmul.f32 %v5431, %v5405
    %v5526 = vmul.f32 %v5435, %v5406
    %v5527 = vmul.f32 %v5439, %v5407
    %v5528 = vmul.f32 %v5443, %v5408
    %v5529 = vmul.f32 %v5447, %v5409
    %v5530 = vmul.f32 %v5451, %v5410
    %v5531 = vmul.f32 %v5455, %v5411
    %v5532 = vmul.f32 %v5459, %v5412
    %v5533 = vmul.f32 %v5463, %v5413
    %v5534 = vmul.f32 %v5467, %v5414
    %v5535 = vmul.f32 %v5471, %v5415
    %v5536 = vmul.f32 %v5475, %v5416
    %v5537 = vmul.f32 %v5479, %v5417
    %v5538 = vmul.f32 %v5483, %v5418
    %v5539 = vmul.f32 %v5487, %v5419
    %v5540 = vmul.f32 %v5491, %v5420
    %v5541 = vmul.f32 %v5495, %v5421
    %v5542 = vmul.f32 %v5499, %v5422
    %v5543 = vmul.f32 %v5503, %v5423
    %v5544 = vmul.f32 %v5507, %v5424
    %v5545 = vmul.f32 %v5511, %v5425
    %v5546 = vmul.f32 %v5515, %v5426
    %v5547 = vmul.f32 %v5519, %v5427
    %v5548 = vmul.f32 %v5523, %v5428
    %v5549 = vadd.f32 %v5380, %v5525
    %v5550 = vadd.f32 %v5381, %v5526
    %v5551 = vadd.f32 %v5382, %v5527
    %v5552 = vadd.f32 %v5383, %v5528
    %v5553 = vadd.f32 %v5384, %v5529
    %v5554 = vadd.f32 %v5385, %v5530
    %v5555 = vadd.f32 %v5386, %v5531
    %v5556 = vadd.f32 %v5387, %v5532
    %v5557 = vadd.f32 %v5388, %v5533
    %v5558 = vadd.f32 %v5389, %v5534
    %v5559 = vadd.f32 %v5390, %v5535
    %v5560 = vadd.f32 %v5391, %v5536
    %v5561 = vadd.f32 %v5392, %v5537
    %v5562 = vadd.f32 %v5393, %v5538
    %v5563 = vadd.f32 %v5394, %v5539
    %v5564 = vadd.f32 %v5395, %v5540
    %v5565 = vadd.f32 %v5396, %v5541
    %v5566 = vadd.f32 %v5397, %v5542
    %v5567 = vadd.f32 %v5398, %v5543
    %v5568 = vadd.f32 %v5399, %v5544
    %v5569 = vadd.f32 %v5400, %v5545
    %v5570 = vadd.f32 %v5401, %v5546
    %v5571 = vadd.f32 %v5402, %v5547
    %v5572 = vadd.f32 %v5403, %v5548
    %vm5573 = vcmask 97280
    %v5574 = vsel %vm5573, %v5549, 0.0
    %v5575 = vsel %vm5573, %v5550, 0.0
    %v5576 = vadd.f32 %v5574, %v5575
    %v5577 = vsel %vm5573, %v5551, 0.0
    %v5578 = vadd.f32 %v5576, %v5577
    %v5579 = vsel %vm5573, %v5552, 0.0
    %v5580 = vadd.f32 %v5578, %v5579
    %v5581 = vsel %vm5573, %v5553, 0.0
    %v5582 = vadd.f32 %v5580, %v5581
    %v5583 = vsel %vm5573, %v5554, 0.0
    %v5584 = vadd.f32 %v5582, %v5583
    %v5585 = vsel %vm5573, %v5555, 0.0
    %v5586 = vadd.f32 %v5584, %v5585
    %v5587 = vsel %vm5573, %v5556, 0.0
    %v5588 = vadd.f32 %v5586, %v5587
    %v5589 = vsel %vm5573, %v5557, 0.0
    %v5590 = vadd.f32 %v5588, %v5589
    %v5591 = vsel %vm5573, %v5558, 0.0
    %v5592 = vadd.f32 %v5590, %v5591
    %v5593 = vsel %vm5573, %v5559, 0.0
    %v5594 = vadd.f32 %v5592, %v5593
    %v5595 = vsel %vm5573, %v5560, 0.0
    %v5596 = vadd.f32 %v5594, %v5595
    %v5597 = vrot.slane %v5596, 4
    %v5598 = vadd.f32 %v5596, %v5597
    %v5599 = vrot.slane %v5598, 2
    %v5600 = vadd.f32 %v5598, %v5599
    %v5601 = vrot.slane %v5600, 1
    %v5602 = vadd.f32 %v5600, %v5601
    %v5603 = vsel %vm5573, %v5561, 0.0
    %v5604 = vsel %vm5573, %v5562, 0.0
    %v5605 = vadd.f32 %v5603, %v5604
    %v5606 = vsel %vm5573, %v5563, 0.0
    %v5607 = vadd.f32 %v5605, %v5606
    %v5608 = vsel %vm5573, %v5564, 0.0
    %v5609 = vadd.f32 %v5607, %v5608
    %v5610 = vsel %vm5573, %v5565, 0.0
    %v5611 = vadd.f32 %v5609, %v5610
    %v5612 = vsel %vm5573, %v5566, 0.0
    %v5613 = vadd.f32 %v5611, %v5612
    %v5614 = vsel %vm5573, %v5567, 0.0
    %v5615 = vadd.f32 %v5613, %v5614
    %v5616 = vsel %vm5573, %v5568, 0.0
    %v5617 = vadd.f32 %v5615, %v5616
    %v5618 = vsel %vm5573, %v5569, 0.0
    %v5619 = vadd.f32 %v5617, %v5618
    %v5620 = vsel %vm5573, %v5570, 0.0
    %v5621 = vadd.f32 %v5619, %v5620
    %v5622 = vsel %vm5573, %v5571, 0.0
    %v5623 = vadd.f32 %v5621, %v5622
    %vm5624 = vcmask 93184
    %v5625 = vsel %vm5624, %v5572, 0.0
    %v5626 = vadd.f32 %v5623, %v5625
    %v5627 = vrot.slane %v5626, 4
    %v5628 = vadd.f32 %v5626, %v5627
    %v5629 = vrot.slane %v5628, 2
    %v5630 = vadd.f32 %v5628, %v5629
    %v5631 = vrot.slane %v5630, 1
    %v5632 = vadd.f32 %v5630, %v5631
    %vm5633 = vcmask 1040384
    %v5634 = vsel %vm5633, %v5602, %v5632
    %v5635 = vld [vmem:[%s6] sm:$0x1]
    %v5637 = vlaneseq
    %v5638 = vshrl.u32 %v5637, 7
    %v5639 = vsub.s32 0, %v5638
    %v5640 = vrot.slane %v5635, %v5639
    %v5642 = vadd.f32 %v5634, %v5640
    %v5643 = vmax.f32 %v5642, 0.0
    %v5644 = vld [vmem:[%s7] sm:$0xff]
    %v5645 = vld [vmem:[%s7 + $0x8] sm:$0xf]
    %v5646 = vld [vmem:[%s8] sm:$0x1]
    %v5648 = vlaneseq
    %v5649 = vshrl.u32 %v5648, 7
    %v5650 = vsub.s32 0, %v5649
    %v5651 = vrot.slane %v5646, %v5650
    %v5654 = vsel %vm5573, %v5643, 0
    %v5657 = vsel %vm2679, %v5645, 0
    %5659 = vmatprep.subr.mxu0 0.0
    %5660 = vmatpush1.msra.mxu0 %v5644
    %5661 = vmatprep.subr.mxu0 0.0
    %5662 = vmatpush1.msra.mxu0 %v5657
    %5663 = vmatprep.subr.mxu0 0.0
    %5664 = vmatpush1.msra.mxu0 0.0
    %5665 = vmatprep.subr.mxu0 0.0
    %5666 = vmatpush1.msra.mxu0 0.0
    %5667 = vmatprep.subr.mxu0 0.0
    %5668 = vmatpush1.msra.mxu0 0.0
    %5669 = vmatprep.subr.mxu0 0.0
    %5670 = vmatpush1.msra.mxu0 0.0
    %5671 = vmatprep.subr.mxu0 0.0
    %5672 = vmatpush1.msra.mxu0 0.0
    %5673 = vmatprep.subr.mxu0 0.0
    %5674 = vmatpush1.msra.mxu0 0.0
    %5675 = vmatprep.subr.mxu0 0.0
    %5676 = vmatpush1.msra.mxu0 0.0
    %5677 = vmatprep.subr.mxu0 0.0
    %5678 = vmatpush1.msra.mxu0 0.0
    %5679 = vmatprep.subr.mxu0 0.0
    %5680 = vmatpush1.msra.mxu0 0.0
    %5681 = vmatprep.subr.mxu0 0.0
    %5682 = vmatpush1.msra.mxu0 0.0
    %5683 = vmatprep.subr.mxu0 0.0
    %5684 = vmatpush1.msra.mxu0 0.0
    %5685 = vmatprep.subr.mxu0 0.0
    %5686 = vmatpush1.msra.mxu0 0.0
    %5687 = vmatprep.subr.mxu0 0.0
    %5688 = vmatpush1.msra.mxu0 0.0
    %5689 = vmatprep.subr.mxu0 0.0
    %5690 = vmatpush1.msra.mxu0 0.0
    %5691 = vmatprep.subr.mxu0 0.0
    %5692 = vmatpush1.msra.mxu0 0.0
    %5693 = vmatprep.subr.mxu0 0.0
    %5694 = vmatpush1.msra.mxu0 0.0
    %5695 = vmatprep.subr.mxu0 0.0
    %5696 = vmatpush1.msra.mxu0 0.0
    %5697 = vmatprep.subr.mxu0 0.0
    %5698 = vmatpush1.msra.mxu0 0.0
    %5699 = vmatprep.subr.mxu0 0.0
    %5700 = vmatpush1.msra.mxu0 0.0
    %5701 = vmatprep.subr.mxu0 0.0
    %5702 = vmatpush1.msra.mxu0 0.0
    %5703 = vmatprep.subr.mxu0 0.0
    %5704 = vmatpush1.msra.mxu0 0.0
    %5705 = vmatprep.subr.mxu0 0.0
    %5706 = vmatpush1.msra.mxu0 0.0
    %5707 = vmatprep.subr.mxu0 0.0
    %5708 = vmatpush1.msra.mxu0 0.0
    %5709 = vmatprep.subr.mxu0 0.0
    %5710 = vmatpush1.msra.mxu0 0.0
    %5711 = vmatprep.subr.mxu0 0.0
    %5712 = vmatpush1.msra.mxu0 0.0
    %5713 = vmatprep.subr.mxu0 0.0
    %5714 = vmatpush1.msra.mxu0 0.0
    %5715 = vmatprep.subr.mxu0 0.0
    %5716 = vmatpush1.msra.mxu0 0.0
    %5717 = vmatprep.subr.mxu0 0.0
    %5718 = vmatpush1.msra.mxu0 0.0
    %5719 = vmatprep.subr.mxu0 0.0
    %5720 = vmatpush1.msra.mxu0 0.0
    %5721 = vmatprep.subr.mxu0 0.0
    %5722 = vmatpush1.msra.mxu0 0.0
    %5723 = vmatprep.mubr.f32.mxu0 0.0
    %5724 = vmatmul.mubr.f32.gmra.mrb[0].mxu0 %v5654
    %v5725 = vpop.f32.mrb[0].mxu0
    %v5726 = vadd.f32 %v5651, %v5725
    %v5727 = vpop.f32.mrb[0].mxu0
    %5728 = vdwg.mxu0
    %vm5729 = vcmask 41984
    %5730 = vst.msk [vmem:[#allocation3] sm:$0x3] %vm5729, %v5726
    // Predicated region
    $region38: #{deepsense_forward.1} parent=1 // pred_check
      _
    $region39: #{deepsense_forward.1} parent=1 // pred_check_branch
      %5732 = sbr.rel (0) target = $region41
    $region40: #{deepsense_forward.1} parent=1 // pred_region
      %s5734 = ssub.s32 32, 32
      %5735 = vsyncadd [#allocation4], %s5734
      %s5737 = sshll.u32 [#allocation3], 4
      %s5738 = int_to_ptr.vmem [resolvable:$true] %s5737
      %5740 = dma.vmem_to_hbm [thread:$0]  %s5738, 32, %s9, [#allocation4]
    $region41: #{deepsense_forward.1} parent=1 // pred_fallthru
      _
    // Predicated region
    $region42: #{deepsense_forward.1} parent=1 // pred_check
      _
    $region43: #{deepsense_forward.1} parent=1 // pred_check_branch
      %5742 = sbr.rel (0) target = $region45
    $region44: #{deepsense_forward.1} parent=1 // pred_region
      %5743 = dma.done [#allocation4], 32
    $region45: #{deepsense_forward.1} parent=1 // pred_fallthru
      _
    %5744 = vsyncpa [#allocation4], 1

</llo_original>
